<compile_context>
chip_gen: v6e
topology: v6e:2x2x1
jax: 0.10.0
libtpu: 0.0.40
codegen_flags: <defaults>
</compile_context>

<pallas_src>
import numpy as np

import jax
import jax.numpy as jnp
from jax.experimental import pallas as pl
from jax.experimental.pallas import tpu as pltpu


# ----------------------------------------------------------------------------
# Pallas kernel: the entire network for one tile of batch rows.
# ----------------------------------------------------------------------------
def _mnist_fused_kernel(x_ref, m1_ref, s1_ref, c1_ref,
                        m2_ref, s2_ref, c2_ref,
                        m3_ref, s3_ref, c3_ref,
                        w4_ref, b4_ref, w5_ref, b5_ref, o_ref):
    f32, bf16 = jnp.float32, jnp.bfloat16
    # conv1 + BN + ReLU                      (TM, 256)  -> (TM, 1024)
    h = jnp.dot(x_ref[...], m1_ref[...], preferred_element_type=f32)
    h = jnp.maximum(h * s1_ref[...] + c1_ref[...], 0.0)
    # conv2 + BN + ReLU                      (TM, 1024) -> (TM, 512)
    h = jnp.dot(h.astype(bf16), m2_ref[...], preferred_element_type=f32)
    h = jnp.maximum(h * s2_ref[...] + c2_ref[...], 0.0)
    # conv3 + BN + ReLU                      (TM, 512)  -> (TM, 256)
    h = jnp.dot(h.astype(bf16), m3_ref[...], preferred_element_type=f32)
    h = jnp.maximum(h * s3_ref[...] + c3_ref[...], 0.0)
    # avg-pool (folded into w4) + linear1 + ReLU   (TM, 256) -> (TM, 128 padded)
    h = jnp.dot(h.astype(bf16), w4_ref[...], preferred_element_type=f32)
    h = jnp.maximum(h + b4_ref[...], 0.0)
    # linear2 + ReLU                         (TM, 128)  -> (TM, 128 padded)
    h = jnp.dot(h.astype(bf16), w5_ref[...], preferred_element_type=f32)
    o_ref[...] = jnp.maximum(h + b5_ref[...], 0.0)
    # TODO(synk): Dropout2d(0.2)/Dropout(0.5) skipped -- eval-mode identities.


def mnist_fused(x_rows, prep, tm):
    """x_rows: (Npad, 256) bf16 with Npad % tm == 0. Returns (Npad, 128) f32."""
    n_pad, k_in = x_rows.shape

    def full(a):  # whole-array weight block; index never changes -> fetched once
        return pl.BlockSpec(a.shape, lambda i: (0,) * a.ndim)

    w_args = (prep["m1"], prep["s1"], prep["c1"],
              prep["m2"], prep["s2"], prep["c2"],
              prep["m3"], prep["s3"], prep["c3"],
              prep["w4"], prep["b4"], prep["w5"], prep["b5"])
    return pl.pallas_call(
        _mnist_fused_kernel,
        out_shape=jax.ShapeDtypeStruct((n_pad, 128), jnp.float32),
        grid=(n_pad // tm,),
        in_specs=[pl.BlockSpec((tm, k_in), lambda i: (i, 0))]
                 + [full(a) for a in w_args],
        out_specs=pl.BlockSpec((tm, 128), lambda i: (i, 0)),
        compiler_params=pltpu.CompilerParams(
            dimension_semantics=("parallel",),   # megacore-friendly batch axis
            vmem_limit_bytes=64 << 20),
    )(x_rows, *w_args)


# ----------------------------------------------------------------------------
# One-time host-side parameter prep (hoisted out of the hot path).
# ----------------------------------------------------------------------------
def _conv_to_dense(w_hwio, h_in, w_in, stride=2, pad=1):
    """Constant-fold (im2col o weight matmul) into one dense operator.

    Flat layouts: rows = (ih*W + iw)*Cin + ci, cols = (oh*Wo + ow)*Cout + co.
    """
    kh, kw, cin, cout = w_hwio.shape
    ho = (h_in + 2 * pad - kh) // stride + 1
    wo = (w_in + 2 * pad - kw) // stride + 1
    wn = np.asarray(w_hwio, np.float32)
    dense = np.zeros((h_in * w_in * cin, ho * wo * cout), np.float32)
    for oh in range(ho):
        for ow in range(wo):
            c0 = (oh * wo + ow) * cout
            for di in range(kh):
                ih = oh * stride + di - pad
                if not 0 <= ih < h_in:
                    continue
                for dj in range(kw):
                    iw = ow * stride + dj - pad
                    if not 0 <= iw < w_in:
                        continue
                    r0 = (ih * w_in + iw) * cin
                    dense[r0:r0 + cin, c0:c0 + cout] += wn[di, dj]
    return dense, ho, wo


def _pad_to(a, shape):
    out = np.zeros(shape, np.float32)
    out[tuple(slice(0, s) for s in a.shape)] = a
    return out


def prepare_params(params, eps=1e-5):
    prep = {}
    h_in, w_in = 16, 16
    for idx, name in enumerate(("layer1", "layer2", "layer3"), start=1):
        p = params[name]
        dense, ho, wo = _conv_to_dense(p["w"], h_in, w_in)
        s = np.asarray(p["gamma"]) / np.sqrt(np.asarray(p["var"]) + eps)
        b = (np.asarray(p["b"]) - np.asarray(p["mean"])) * s + np.asarray(p["beta"])
        prep[f"m{idx}"] = jnp.asarray(dense, jnp.bfloat16)
        prep[f"s{idx}"] = jnp.asarray(np.tile(s, ho * wo)[None, :], jnp.float32)
        prep[f"c{idx}"] = jnp.asarray(np.tile(b, ho * wo)[None, :], jnp.float32)
        h_in, w_in = ho, wo
    # AdaptiveAvgPool2d((1,1)) is linear -> fold the 1/(ho*wo) mean into linear1.
    # Linear head is zero-padded to 128 lanes (padding is exact: zero weights +
    # zero bias stay zero through ReLU and contribute nothing downstream).
    n_pix = h_in * w_in                                        # 2*2 = 4
    w1 = np.asarray(params["linear1"]["w"], np.float32)        # (64, 16)
    w4 = np.tile(w1, (n_pix, 1)) / n_pix                       # (256, 16)
    b4 = np.asarray(params["linear1"]["b"], np.float32)        # (16,)
    w5 = np.asarray(params["linear2"]["w"], np.float32)        # (16, 10)
    b5 = np.asarray(params["linear2"]["b"], np.float32)        # (10,)
    prep["w4"] = jnp.asarray(_pad_to(w4, (256, 128)), jnp.bfloat16)
    prep["b4"] = jnp.asarray(_pad_to(b4[None, :], (1, 128)), jnp.float32)
    prep["w5"] = jnp.asarray(_pad_to(w5, (128, 128)), jnp.bfloat16)
    prep["b5"] = jnp.asarray(_pad_to(b5[None, :], (1, 128)), jnp.float32)
    return prep


# ----------------------------------------------------------------------------
# Parameter init (deterministic, PyTorch-fresh-init-like).
# ----------------------------------------------------------------------------
def init_params(key):
    ks = list(jax.random.split(key, 8))

    def conv_block(k, cin, cout):
        k1, k2, k3, k4, k5, k6 = jax.random.split(k, 6)
        bound = 1.0 / jnp.sqrt(cin * 9.0)
        return dict(
            w=jax.random.uniform(k1, (3, 3, cin, cout), jnp.float32, -bound, bound),
            b=jax.random.uniform(k2, (cout,), jnp.float32, -bound, bound),
            gamma=1.0 + 0.1 * jax.random.normal(k3, (cout,), jnp.float32),
            beta=0.1 * jax.random.normal(k4, (cout,), jnp.float32),
            mean=0.1 * jax.random.normal(k5, (cout,), jnp.float32),
            var=jax.random.uniform(k6, (cout,), jnp.float32, 0.5, 1.5))

    def linear_block(k, cin, cout):
        k1, k2 = jax.random.split(k, 2)
        bound = 1.0 / jnp.sqrt(float(cin))
        return dict(w=jax.random.uniform(k1, (cin, cout), jnp.float32, -bound, bound),
                    b=jax.random.uniform(k2, (cout,), jnp.float32, -bound, bound))

    return dict(layer1=conv_block(ks[0], 1, 16),
                layer2=conv_block(ks[1], 16, 32),
                layer3=conv_block(ks[2], 32, 64),
                linear1=linear_block(ks[3], 64, 16),
                linear2=linear_block(ks[4], 16, 10))


# ----------------------------------------------------------------------------
# Forward pass (thin XLA glue around the single fused kernel).
# ----------------------------------------------------------------------------
def _round_up(x, m):
    return (x + m - 1) // m * m


@jax.jit
def forward(prep, x_nchw):
    n, c, h, w = x_nchw.shape
    # NCHW -> NHWC -> flatten each image in (h, w, c) order (matches prep mats).
    x = jnp.transpose(x_nchw, (0, 2, 3, 1)).reshape(n, h * w * c)
    tm = min(128, _round_up(n, 16))      # bf16-friendly row tile, mult of 16
    n_pad = _round_up(n, tm)
    if n_pad != n:
        x = jnp.pad(x, ((0, n_pad - n), (0, 0)))
    logits = mnist_fused(x.astype(jnp.bfloat16), prep, tm)
    return logits[:n, :10]


# ----------------------------------------------------------------------------
# Pure-JAX reference (for an in-script correctness check).
# ----------------------------------------------------------------------------
def _reference_forward(params, x_nchw, eps=1e-5):
    x = jnp.transpose(x_nchw, (0, 2, 3, 1)).astype(jnp.float32)
    for name in ("layer1", "layer2", "layer3"):
        p = params[name]
        y = jax.lax.conv_general_dilated(
            x, p["w"], window_strides=(2, 2), padding=((1, 1), (1, 1)),
            dimension_numbers=("NHWC", "HWIO", "NHWC"))
        s = p["gamma"] / jnp.sqrt(p["var"] + eps)
        x = jnp.maximum((y + p["b"] - p["mean"]) * s + p["beta"], 0.0)
    feat = jnp.mean(x, axis=(1, 2))
    h = jnp.maximum(feat @ params["linear1"]["w"] + params["linear1"]["b"], 0.0)
    return jnp.maximum(h @ params["linear2"]["w"] + params["linear2"]["b"], 0.0)


if __name__ == "__main__":
    key = jax.random.PRNGKey(0)
    k_param, k_x = jax.random.split(key)
    params = init_params(k_param)
    prep = prepare_params(params)              # one-time weight preprocessing

    # Small MNIST-like input: batch=2, 1 channel, 16x16 spatial (NCHW).
    x = jax.random.normal(k_x, (2, 1, 16, 16), jnp.float32)

    out = jax.block_until_ready(forward(prep, x))
    assert out.shape == (2, 10)

    ref = jax.block_until_ready(_reference_forward(params, x))
    np.testing.assert_allclose(np.asarray(out), np.asarray(ref),
                               rtol=0.1, atol=0.05)
    print("KERNEL_OK")
</pallas_src>

<mosaic_0001>
module attributes {stable_mosaic.version = 11 : i64} {
  func.func @_mnist_fused_kernel(%arg0: i32, %arg1: memref<16x256xbf16, #tpu.memory_space<vmem>>, %arg2: memref<256x1024xbf16, #tpu.memory_space<vmem>>, %arg3: memref<1x1024xf32, #tpu.memory_space<vmem>>, %arg4: memref<1x1024xf32, #tpu.memory_space<vmem>>, %arg5: memref<1024x512xbf16, #tpu.memory_space<vmem>>, %arg6: memref<1x512xf32, #tpu.memory_space<vmem>>, %arg7: memref<1x512xf32, #tpu.memory_space<vmem>>, %arg8: memref<512x256xbf16, #tpu.memory_space<vmem>>, %arg9: memref<1x256xf32, #tpu.memory_space<vmem>>, %arg10: memref<1x256xf32, #tpu.memory_space<vmem>>, %arg11: memref<256x128xbf16, #tpu.memory_space<vmem>>, %arg12: memref<1x128xf32, #tpu.memory_space<vmem>>, %arg13: memref<128x128xbf16, #tpu.memory_space<vmem>>, %arg14: memref<1x128xf32, #tpu.memory_space<vmem>>, %arg15: memref<16x128xf32, #tpu.memory_space<vmem>>) attributes {dimension_semantics = [#tpu.dimension_semantics<parallel>], iteration_bounds = array<i64: 1>, scalar_prefetch = 0 : i64, scratch_operands = 0 : i64, tpu.core_type = #tpu.core_type<tc>, window_params = [{transform_indices = @transform_0, window_bounds = array<i64: 16, 256>}, {pipeline_mode = #tpu.pipeline_mode<synchronous>, transform_indices = @transform_1, window_bounds = array<i64: 256, 1024>}, {pipeline_mode = #tpu.pipeline_mode<synchronous>, transform_indices = @transform_2, window_bounds = array<i64: 1, 1024>}, {pipeline_mode = #tpu.pipeline_mode<synchronous>, transform_indices = @transform_3, window_bounds = array<i64: 1, 1024>}, {pipeline_mode = #tpu.pipeline_mode<synchronous>, transform_indices = @transform_4, window_bounds = array<i64: 1024, 512>}, {pipeline_mode = #tpu.pipeline_mode<synchronous>, transform_indices = @transform_5, window_bounds = array<i64: 1, 512>}, {pipeline_mode = #tpu.pipeline_mode<synchronous>, transform_indices = @transform_6, window_bounds = array<i64: 1, 512>}, {pipeline_mode = #tpu.pipeline_mode<synchronous>, transform_indices = @transform_7, window_bounds = array<i64: 512, 256>}, {pipeline_mode = #tpu.pipeline_mode<synchronous>, transform_indices = @transform_8, window_bounds = array<i64: 1, 256>}, {pipeline_mode = #tpu.pipeline_mode<synchronous>, transform_indices = @transform_9, window_bounds = array<i64: 1, 256>}, {pipeline_mode = #tpu.pipeline_mode<synchronous>, transform_indices = @transform_10, window_bounds = array<i64: 256, 128>}, {pipeline_mode = #tpu.pipeline_mode<synchronous>, transform_indices = @transform_11, window_bounds = array<i64: 1, 128>}, {pipeline_mode = #tpu.pipeline_mode<synchronous>, transform_indices = @transform_12, window_bounds = array<i64: 128, 128>}, {pipeline_mode = #tpu.pipeline_mode<synchronous>, transform_indices = @transform_13, window_bounds = array<i64: 1, 128>}, {transform_indices = @transform_14, window_bounds = array<i64: 16, 128>}]} {
    %c0 = arith.constant 0 : index
    %c0_0 = arith.constant 0 : index
    %0 = vector.load %arg1[%c0, %c0_0] : memref<16x256xbf16, #tpu.memory_space<vmem>>, vector<16x256xbf16>
    %c0_1 = arith.constant 0 : index
    %c0_2 = arith.constant 0 : index
    %1 = vector.load %arg2[%c0_1, %c0_2] : memref<256x1024xbf16, #tpu.memory_space<vmem>>, vector<256x1024xbf16>
    %cst = arith.constant dense<0.000000e+00> : vector<16x1024xf32>
    %2 = tpu.matmul %0, %1, %cst {dimension_numbers = #tpu.dot_dimension_numbers<[1], [0], [0], [1], [0, 0, 1, 1], [], []>} : vector<16x256xbf16>, vector<256x1024xbf16>, vector<16x1024xf32> -> vector<16x1024xf32>
    %c0_3 = arith.constant 0 : index
    %c0_4 = arith.constant 0 : index
    %3 = vector.load %arg3[%c0_3, %c0_4] : memref<1x1024xf32, #tpu.memory_space<vmem>>, vector<1x1024xf32>
    %4 = vector.broadcast %3 : vector<1x1024xf32> to vector<16x1024xf32>
    %5 = arith.mulf %2, %4 : vector<16x1024xf32>
    %c0_5 = arith.constant 0 : index
    %c0_6 = arith.constant 0 : index
    %6 = vector.load %arg4[%c0_5, %c0_6] : memref<1x1024xf32, #tpu.memory_space<vmem>>, vector<1x1024xf32>
    %7 = vector.broadcast %6 : vector<1x1024xf32> to vector<16x1024xf32>
    %8 = arith.addf %5, %7 : vector<16x1024xf32>
    %cst_7 = arith.constant 0.000000e+00 : f32
    %9 = vector.broadcast %cst_7 : f32 to vector<16x1024xf32>
    %10 = arith.maximumf %8, %9 : vector<16x1024xf32>
    %11 = arith.truncf %10 : vector<16x1024xf32> to vector<16x1024xbf16>
    %c0_8 = arith.constant 0 : index
    %c0_9 = arith.constant 0 : index
    %12 = vector.load %arg5[%c0_8, %c0_9] : memref<1024x512xbf16, #tpu.memory_space<vmem>>, vector<1024x512xbf16>
    %cst_10 = arith.constant dense<0.000000e+00> : vector<16x512xf32>
    %13 = tpu.matmul %11, %12, %cst_10 {dimension_numbers = #tpu.dot_dimension_numbers<[1], [0], [0], [1], [0, 0, 1, 1], [], []>} : vector<16x1024xbf16>, vector<1024x512xbf16>, vector<16x512xf32> -> vector<16x512xf32>
    %c0_11 = arith.constant 0 : index
    %c0_12 = arith.constant 0 : index
    %14 = vector.load %arg6[%c0_11, %c0_12] : memref<1x512xf32, #tpu.memory_space<vmem>>, vector<1x512xf32>
    %15 = vector.broadcast %14 : vector<1x512xf32> to vector<16x512xf32>
    %16 = arith.mulf %13, %15 : vector<16x512xf32>
    %c0_13 = arith.constant 0 : index
    %c0_14 = arith.constant 0 : index
    %17 = vector.load %arg7[%c0_13, %c0_14] : memref<1x512xf32, #tpu.memory_space<vmem>>, vector<1x512xf32>
    %18 = vector.broadcast %17 : vector<1x512xf32> to vector<16x512xf32>
    %19 = arith.addf %16, %18 : vector<16x512xf32>
    %cst_15 = arith.constant 0.000000e+00 : f32
    %20 = vector.broadcast %cst_15 : f32 to vector<16x512xf32>
    %21 = arith.maximumf %19, %20 : vector<16x512xf32>
    %22 = arith.truncf %21 : vector<16x512xf32> to vector<16x512xbf16>
    %c0_16 = arith.constant 0 : index
    %c0_17 = arith.constant 0 : index
    %23 = vector.load %arg8[%c0_16, %c0_17] : memref<512x256xbf16, #tpu.memory_space<vmem>>, vector<512x256xbf16>
    %cst_18 = arith.constant dense<0.000000e+00> : vector<16x256xf32>
    %24 = tpu.matmul %22, %23, %cst_18 {dimension_numbers = #tpu.dot_dimension_numbers<[1], [0], [0], [1], [0, 0, 1, 1], [], []>} : vector<16x512xbf16>, vector<512x256xbf16>, vector<16x256xf32> -> vector<16x256xf32>
    %c0_19 = arith.constant 0 : index
    %c0_20 = arith.constant 0 : index
    %25 = vector.load %arg9[%c0_19, %c0_20] : memref<1x256xf32, #tpu.memory_space<vmem>>, vector<1x256xf32>
    %26 = vector.broadcast %25 : vector<1x256xf32> to vector<16x256xf32>
    %27 = arith.mulf %24, %26 : vector<16x256xf32>
    %c0_21 = arith.constant 0 : index
    %c0_22 = arith.constant 0 : index
    %28 = vector.load %arg10[%c0_21, %c0_22] : memref<1x256xf32, #tpu.memory_space<vmem>>, vector<1x256xf32>
    %29 = vector.broadcast %28 : vector<1x256xf32> to vector<16x256xf32>
    %30 = arith.addf %27, %29 : vector<16x256xf32>
    %cst_23 = arith.constant 0.000000e+00 : f32
    %31 = vector.broadcast %cst_23 : f32 to vector<16x256xf32>
    %32 = arith.maximumf %30, %31 : vector<16x256xf32>
    %33 = arith.truncf %32 : vector<16x256xf32> to vector<16x256xbf16>
    %c0_24 = arith.constant 0 : index
    %c0_25 = arith.constant 0 : index
    %34 = vector.load %arg11[%c0_24, %c0_25] : memref<256x128xbf16, #tpu.memory_space<vmem>>, vector<256x128xbf16>
    %cst_26 = arith.constant dense<0.000000e+00> : vector<16x128xf32>
    %35 = tpu.matmul %33, %34, %cst_26 {dimension_numbers = #tpu.dot_dimension_numbers<[1], [0], [0], [1], [0, 0, 1, 1], [], []>} : vector<16x256xbf16>, vector<256x128xbf16>, vector<16x128xf32> -> vector<16x128xf32>
    %c0_27 = arith.constant 0 : index
    %c0_28 = arith.constant 0 : index
    %36 = vector.load %arg12[%c0_27, %c0_28] : memref<1x128xf32, #tpu.memory_space<vmem>>, vector<1x128xf32>
    %37 = vector.broadcast %36 : vector<1x128xf32> to vector<16x128xf32>
    %38 = arith.addf %35, %37 : vector<16x128xf32>
    %cst_29 = arith.constant 0.000000e+00 : f32
    %39 = vector.broadcast %cst_29 : f32 to vector<16x128xf32>
    %40 = arith.maximumf %38, %39 : vector<16x128xf32>
    %41 = arith.truncf %40 : vector<16x128xf32> to vector<16x128xbf16>
    %c0_30 = arith.constant 0 : index
    %c0_31 = arith.constant 0 : index
    %42 = vector.load %arg13[%c0_30, %c0_31] : memref<128x128xbf16, #tpu.memory_space<vmem>>, vector<128x128xbf16>
    %cst_32 = arith.constant dense<0.000000e+00> : vector<16x128xf32>
    %43 = tpu.matmul %41, %42, %cst_32 {dimension_numbers = #tpu.dot_dimension_numbers<[1], [0], [0], [1], [0, 0, 1, 1], [], []>} : vector<16x128xbf16>, vector<128x128xbf16>, vector<16x128xf32> -> vector<16x128xf32>
    %c0_33 = arith.constant 0 : index
    %c0_34 = arith.constant 0 : index
    %44 = vector.load %arg14[%c0_33, %c0_34] : memref<1x128xf32, #tpu.memory_space<vmem>>, vector<1x128xf32>
    %45 = vector.broadcast %44 : vector<1x128xf32> to vector<16x128xf32>
    %46 = arith.addf %43, %45 : vector<16x128xf32>
    %cst_35 = arith.constant 0.000000e+00 : f32
    %47 = vector.broadcast %cst_35 : f32 to vector<16x128xf32>
    %48 = arith.maximumf %46, %47 : vector<16x128xf32>
    %c0_36 = arith.constant 0 : index
    %c0_37 = arith.constant 0 : index
    %49 = vector.load %arg15[%c0_36, %c0_37] : memref<16x128xf32, #tpu.memory_space<vmem>>, vector<16x128xf32>
    tpu.vector_store %arg15[%c0_36, %c0_37], %48 {strides = array<i32>} : memref<16x128xf32, #tpu.memory_space<vmem>>, vector<16x128xf32>,
    return
  }
  func.func @transform_0(%arg0: i32) -> (i32, i32) {
    %c0_i32 = arith.constant 0 : i32
    %c0_i32_0 = arith.constant 0 : i32
    return %arg0, %c0_i32 : i32, i32
  }
  func.func @transform_1(%arg0: i32) -> (i32, i32) {
    %c0_i32 = arith.constant 0 : i32
    %c0_i32_0 = arith.constant 0 : i32
    %c0_i32_1 = arith.constant 0 : i32
    return %c0_i32, %c0_i32_0 : i32, i32
  }
  func.func @transform_2(%arg0: i32) -> (i32, i32) {
    %c0_i32 = arith.constant 0 : i32
    %c0_i32_0 = arith.constant 0 : i32
    %c0_i32_1 = arith.constant 0 : i32
    return %c0_i32, %c0_i32_0 : i32, i32
  }
  func.func @transform_3(%arg0: i32) -> (i32, i32) {
    %c0_i32 = arith.constant 0 : i32
    %c0_i32_0 = arith.constant 0 : i32
    %c0_i32_1 = arith.constant 0 : i32
    return %c0_i32, %c0_i32_0 : i32, i32
  }
  func.func @transform_4(%arg0: i32) -> (i32, i32) {
    %c0_i32 = arith.constant 0 : i32
    %c0_i32_0 = arith.constant 0 : i32
    %c0_i32_1 = arith.constant 0 : i32
    return %c0_i32, %c0_i32_0 : i32, i32
  }
  func.func @transform_5(%arg0: i32) -> (i32, i32) {
    %c0_i32 = arith.constant 0 : i32
    %c0_i32_0 = arith.constant 0 : i32
    %c0_i32_1 = arith.constant 0 : i32
    return %c0_i32, %c0_i32_0 : i32, i32
  }
  func.func @transform_6(%arg0: i32) -> (i32, i32) {
    %c0_i32 = arith.constant 0 : i32
    %c0_i32_0 = arith.constant 0 : i32
    %c0_i32_1 = arith.constant 0 : i32
    return %c0_i32, %c0_i32_0 : i32, i32
  }
  func.func @transform_7(%arg0: i32) -> (i32, i32) {
    %c0_i32 = arith.constant 0 : i32
    %c0_i32_0 = arith.constant 0 : i32
    %c0_i32_1 = arith.constant 0 : i32
    return %c0_i32, %c0_i32_0 : i32, i32
  }
  func.func @transform_8(%arg0: i32) -> (i32, i32) {
    %c0_i32 = arith.constant 0 : i32
    %c0_i32_0 = arith.constant 0 : i32
    %c0_i32_1 = arith.constant 0 : i32
    return %c0_i32, %c0_i32_0 : i32, i32
  }
  func.func @transform_9(%arg0: i32) -> (i32, i32) {
    %c0_i32 = arith.constant 0 : i32
    %c0_i32_0 = arith.constant 0 : i32
    %c0_i32_1 = arith.constant 0 : i32
    return %c0_i32, %c0_i32_0 : i32, i32
  }
  func.func @transform_10(%arg0: i32) -> (i32, i32) {
    %c0_i32 = arith.constant 0 : i32
    %c0_i32_0 = arith.constant 0 : i32
    %c0_i32_1 = arith.constant 0 : i32
    return %c0_i32, %c0_i32_0 : i32, i32
  }
  func.func @transform_11(%arg0: i32) -> (i32, i32) {
    %c0_i32 = arith.constant 0 : i32
    %c0_i32_0 = arith.constant 0 : i32
    %c0_i32_1 = arith.constant 0 : i32
    return %c0_i32, %c0_i32_0 : i32, i32
  }
  func.func @transform_12(%arg0: i32) -> (i32, i32) {
    %c0_i32 = arith.constant 0 : i32
    %c0_i32_0 = arith.constant 0 : i32
    %c0_i32_1 = arith.constant 0 : i32
    return %c0_i32, %c0_i32_0 : i32, i32
  }
  func.func @transform_13(%arg0: i32) -> (i32, i32) {
    %c0_i32 = arith.constant 0 : i32
    %c0_i32_0 = arith.constant 0 : i32
    %c0_i32_1 = arith.constant 0 : i32
    return %c0_i32, %c0_i32_0 : i32, i32
  }
  func.func @transform_14(%arg0: i32) -> (i32, i32) {
    %c0_i32 = arith.constant 0 : i32
    %c0_i32_0 = arith.constant 0 : i32
    return %arg0, %c0_i32 : i32, i32
  }
}

</mosaic_0001>

<llo_original>
// kernel: forward.1
$region0: #{forward.1}
  #allocation0 [shape = 'u32[]', space=smem, size = 0x4, offset = 0x4, fixed_abs, tag = 'smem constant byte address 0x4 - core index']
  #allocation1 [shape = 'u32[144,128]{1,0:T(1,128)}', space=vmem, size = 0x12000, scoped, tag = 'internal scratch']
  %s0 = inlined_call_operand.vmem [shape: bf16[16,256], index: 0, kind: input, shape index: {}]
  %s1 = inlined_call_operand.hbm [shape: bf16[256,1024], index: 1, kind: input, shape index: {}]
  %s2 = inlined_call_operand.vmem [shape: f32[1,1024], index: 2, kind: input, shape index: {}]
  %s3 = inlined_call_operand.vmem [shape: f32[1,1024], index: 3, kind: input, shape index: {}]
  %s4 = inlined_call_operand.hbm [shape: bf16[1024,512], index: 4, kind: input, shape index: {}]
  %s5 = inlined_call_operand.vmem [shape: f32[1,512], index: 5, kind: input, shape index: {}]
  %s6 = inlined_call_operand.vmem [shape: f32[1,512], index: 6, kind: input, shape index: {}]
  %s7 = inlined_call_operand.hbm [shape: bf16[512,256], index: 7, kind: input, shape index: {}]
  %s8 = inlined_call_operand.vmem [shape: f32[1,256], index: 8, kind: input, shape index: {}]
  %s9 = inlined_call_operand.vmem [shape: f32[1,256], index: 9, kind: input, shape index: {}]
  %s10 = inlined_call_operand.hbm [shape: bf16[256,128], index: 10, kind: input, shape index: {}]
  %s11 = inlined_call_operand.vmem [shape: f32[1,128], index: 11, kind: input, shape index: {}]
  %s12 = inlined_call_operand.vmem [shape: bf16[128,128], index: 12, kind: input, shape index: {}]
  %s13 = inlined_call_operand.vmem [shape: f32[1,128], index: 13, kind: input, shape index: {}]
  %s14 = inlined_call_operand.vmem [shape: f32[16,128], index: 14, kind: output, shape index: {}]
  %s15 = sld [smem:[#allocation0]]
  $region82: #{forward.1} parent=0
    _
  %s17 = ssub.s32 1, %s15
  %s18 = scalar_select 0, %s17, %s15
  $region1: #{forward.1} parent=0
    #allocation2 [shape = 'u8[524288]{0}', space=vmem, size = 0x80000, scoped, tag = 'input window, operand 1, single buffered']
    #allocation3 [shape = 's32[1]{0}', space=sflag, size = 0x4, scoped, tag = 'scoped memory for forward.1']
    #allocation4 [shape = 'u8[1048576]{0}', space=vmem, size = 0x100000, scoped, tag = 'input window, operand 4, single buffered']
    #allocation5 [shape = 's32[1]{0}', space=sflag, size = 0x4, scoped, tag = 'scoped memory for forward.1']
    #allocation6 [shape = 'u8[262144]{0}', space=vmem, size = 0x40000, scoped, tag = 'input window, operand 7, single buffered']
    #allocation7 [shape = 'u8[65536]{0}', space=vmem, size = 0x10000, scoped, tag = 'input window, operand 10, single buffered']
    #allocation8 [shape = 's32[1]{0}', space=sflag, size = 0x4, scoped, tag = 'scoped memory for forward.1']
    %19 = vsyncpa [#allocation3], 0
    %20 = vsyncpa [#allocation5], 0
    %21 = vsyncpa [#allocation8], 0
    // Predicated region
    $region2: #{forward.1} parent=1 // pred_check
      _
    $region3: #{forward.1} parent=1 // pred_check_branch
      %23 = sbr.rel (0) target = $region5
    $region4: #{forward.1} parent=1 // pred_region
      _
    $region5: #{forward.1} parent=1 // pred_fallthru
      _
    // Predicated region
    $region6: #{forward.1} parent=1 // pred_check
      _
    $region7: #{forward.1} parent=1 // pred_check_branch
      %25 = sbr.rel (0) target = $region9
    $region8: #{forward.1} parent=1 // pred_region
      %s27 = ssub.s32 16384, 16384
      %28 = vsyncadd [#allocation3], %s27
      %s29 = sshll.u32 [#allocation2], 4
      %s30 = int_to_ptr.vmem [resolvable:$true] %s29
      %35 = dma.hbm_to_vmem [thread:$0]  %s1, 16384, %s30, [#allocation3], 512, 512, 32
    $region9: #{forward.1} parent=1 // pred_fallthru
      _
    // Predicated region
    $region10: #{forward.1} parent=1 // pred_check
      _
    $region11: #{forward.1} parent=1 // pred_check_branch
      %37 = sbr.rel (0) target = $region13
    $region12: #{forward.1} parent=1 // pred_region
      _
    $region13: #{forward.1} parent=1 // pred_fallthru
      _
    // Predicated region
    $region14: #{forward.1} parent=1 // pred_check
      _
    $region15: #{forward.1} parent=1 // pred_check_branch
      %39 = sbr.rel (0) target = $region17
    $region16: #{forward.1} parent=1 // pred_region
      _
    $region17: #{forward.1} parent=1 // pred_fallthru
      _
    // Predicated region
    $region18: #{forward.1} parent=1 // pred_check
      _
    $region19: #{forward.1} parent=1 // pred_check_branch
      %41 = sbr.rel (0) target = $region21
    $region20: #{forward.1} parent=1 // pred_region
      %s43 = ssub.s32 32768, 32768
      %44 = vsyncadd [#allocation5], %s43
      %s45 = sshll.u32 [#allocation4], 4
      %s46 = int_to_ptr.vmem [resolvable:$true] %s45
      %51 = dma.hbm_to_vmem [thread:$0]  %s4, 32768, %s46, [#allocation5], 256, 256, 16
    $region21: #{forward.1} parent=1 // pred_fallthru
      _
    // Predicated region
    $region22: #{forward.1} parent=1 // pred_check
      _
    $region23: #{forward.1} parent=1 // pred_check_branch
      %53 = sbr.rel (0) target = $region25
    $region24: #{forward.1} parent=1 // pred_region
      _
    $region25: #{forward.1} parent=1 // pred_fallthru
      _
    // Predicated region
    $region26: #{forward.1} parent=1 // pred_check
      _
    $region27: #{forward.1} parent=1 // pred_check_branch
      %55 = sbr.rel (0) target = $region29
    $region28: #{forward.1} parent=1 // pred_region
      _
    $region29: #{forward.1} parent=1 // pred_fallthru
      _
    // Predicated region
    $region30: #{forward.1} parent=1 // pred_check
      _
    $region31: #{forward.1} parent=1 // pred_check_branch
      %57 = sbr.rel (0) target = $region33
    $region32: #{forward.1} parent=1 // pred_region
      %s59 = ssub.s32 8192, 8192
      %60 = vsyncadd [#allocation5], %s59
      %s61 = sshll.u32 [#allocation6], 4
      %s62 = int_to_ptr.vmem [resolvable:$true] %s61
      %67 = dma.hbm_to_vmem [thread:$0]  %s7, 8192, %s62, [#allocation5], 128, 128, 8
    $region33: #{forward.1} parent=1 // pred_fallthru
      _
    // Predicated region
    $region34: #{forward.1} parent=1 // pred_check
      _
    $region35: #{forward.1} parent=1 // pred_check_branch
      %69 = sbr.rel (0) target = $region37
    $region36: #{forward.1} parent=1 // pred_region
      _
    $region37: #{forward.1} parent=1 // pred_fallthru
      _
    // Predicated region
    $region38: #{forward.1} parent=1 // pred_check
      _
    $region39: #{forward.1} parent=1 // pred_check_branch
      %71 = sbr.rel (0) target = $region41
    $region40: #{forward.1} parent=1 // pred_region
      _
    $region41: #{forward.1} parent=1 // pred_fallthru
      _
    // Predicated region
    $region42: #{forward.1} parent=1 // pred_check
      _
    $region43: #{forward.1} parent=1 // pred_check_branch
      %73 = sbr.rel (0) target = $region45
    $region44: #{forward.1} parent=1 // pred_region
      %s75 = ssub.s32 2048, 2048
      %76 = vsyncadd [#allocation8], %s75
      %s77 = sshll.u32 [#allocation7], 4
      %s78 = int_to_ptr.vmem [resolvable:$true] %s77
      %83 = dma.hbm_to_vmem [thread:$0]  %s10, 2048, %s78, [#allocation8], 64, 64, 4
    $region45: #{forward.1} parent=1 // pred_fallthru
      _
    // Predicated region
    $region46: #{forward.1} parent=1 // pred_check
      _
    $region47: #{forward.1} parent=1 // pred_check_branch
      %85 = sbr.rel (0) target = $region49
    $region48: #{forward.1} parent=1 // pred_region
      _
    $region49: #{forward.1} parent=1 // pred_fallthru
      _
    // Predicated region
    $region50: #{forward.1} parent=1 // pred_check
      _
    $region51: #{forward.1} parent=1 // pred_check_branch
      %87 = sbr.rel (0) target = $region53
    $region52: #{forward.1} parent=1 // pred_region
      _
    $region53: #{forward.1} parent=1 // pred_fallthru
      _
    // Predicated region
    $region54: #{forward.1} parent=1 // pred_check
      _
    $region55: #{forward.1} parent=1 // pred_check_branch
      %89 = sbr.rel (0) target = $region57
    $region56: #{forward.1} parent=1 // pred_region
      _
    $region57: #{forward.1} parent=1 // pred_fallthru
      _
    // Predicated region
    $region58: #{forward.1} parent=1 // pred_check
      _
    $region59: #{forward.1} parent=1 // pred_check_branch
      %91 = sbr.rel (0) target = $region61
    $region60: #{forward.1} parent=1 // pred_region
      %92 = dma.done [#allocation3], 16384
    $region61: #{forward.1} parent=1 // pred_fallthru
      _
    // Predicated region
    $region62: #{forward.1} parent=1 // pred_check
      _
    $region63: #{forward.1} parent=1 // pred_check_branch
      %94 = sbr.rel (0) target = $region65
    $region64: #{forward.1} parent=1 // pred_region
      %95 = dma.done [#allocation5], 32768
    $region65: #{forward.1} parent=1 // pred_fallthru
      _
    // Predicated region
    $region66: #{forward.1} parent=1 // pred_check
      _
    $region67: #{forward.1} parent=1 // pred_check_branch
      %97 = sbr.rel (0) target = $region69
    $region68: #{forward.1} parent=1 // pred_region
      %98 = dma.done [#allocation5], 8192
    $region69: #{forward.1} parent=1 // pred_fallthru
      _
    // Predicated region
    $region70: #{forward.1} parent=1 // pred_check
      _
    $region71: #{forward.1} parent=1 // pred_check_branch
      %100 = sbr.rel (0) target = $region73
    $region72: #{forward.1} parent=1 // pred_region
      %101 = dma.done [#allocation8], 2048
    $region73: #{forward.1} parent=1 // pred_fallthru
      _
    %v103 = vld [vmem:[%s0] sm:$0xff]
    %v104 = vld [vmem:[%s0 + $0x8] sm:$0xff]
    %v105 = vld [vmem:[#allocation2] sm:$0xff]
    %v106 = vld [vmem:[#allocation2 + $0x8] sm:$0xff]
    %v107 = vld [vmem:[#allocation2 + $0x10] sm:$0xff]
    %v108 = vld [vmem:[#allocation2 + $0x18] sm:$0xff]
    %v109 = vld [vmem:[#allocation2 + $0x20] sm:$0xff]
    %v110 = vld [vmem:[#allocation2 + $0x28] sm:$0xff]
    %v111 = vld [vmem:[#allocation2 + $0x30] sm:$0xff]
    %v112 = vld [vmem:[#allocation2 + $0x38] sm:$0xff]
    %v113 = vld [vmem:[#allocation2 + $0x40] sm:$0xff]
    %v114 = vld [vmem:[#allocation2 + $0x48] sm:$0xff]
    %v115 = vld [vmem:[#allocation2 + $0x50] sm:$0xff]
    %v116 = vld [vmem:[#allocation2 + $0x58] sm:$0xff]
    %v117 = vld [vmem:[#allocation2 + $0x60] sm:$0xff]
    %v118 = vld [vmem:[#allocation2 + $0x68] sm:$0xff]
    %v119 = vld [vmem:[#allocation2 + $0x70] sm:$0xff]
    %v120 = vld [vmem:[#allocation2 + $0x78] sm:$0xff]
    %v121 = vld [vmem:[#allocation2 + $0x80] sm:$0xff]
    %v122 = vld [vmem:[#allocation2 + $0x88] sm:$0xff]
    %v123 = vld [vmem:[#allocation2 + $0x90] sm:$0xff]
    %v124 = vld [vmem:[#allocation2 + $0x98] sm:$0xff]
    %v125 = vld [vmem:[#allocation2 + $0xa0] sm:$0xff]
    %v126 = vld [vmem:[#allocation2 + $0xa8] sm:$0xff]
    %v127 = vld [vmem:[#allocation2 + $0xb0] sm:$0xff]
    %v128 = vld [vmem:[#allocation2 + $0xb8] sm:$0xff]
    %v129 = vld [vmem:[#allocation2 + $0xc0] sm:$0xff]
    %v130 = vld [vmem:[#allocation2 + $0xc8] sm:$0xff]
    %v131 = vld [vmem:[#allocation2 + $0xd0] sm:$0xff]
    %v132 = vld [vmem:[#allocation2 + $0xd8] sm:$0xff]
    %v133 = vld [vmem:[#allocation2 + $0xe0] sm:$0xff]
    %v134 = vld [vmem:[#allocation2 + $0xe8] sm:$0xff]
    %v135 = vld [vmem:[#allocation2 + $0xf0] sm:$0xff]
    %v136 = vld [vmem:[#allocation2 + $0xf8] sm:$0xff]
    %v137 = vld [vmem:[#allocation2 + $0x100] sm:$0xff]
    %v138 = vld [vmem:[#allocation2 + $0x108] sm:$0xff]
    %v139 = vld [vmem:[#allocation2 + $0x110] sm:$0xff]
    %v140 = vld [vmem:[#allocation2 + $0x118] sm:$0xff]
    %v141 = vld [vmem:[#allocation2 + $0x120] sm:$0xff]
    %v142 = vld [vmem:[#allocation2 + $0x128] sm:$0xff]
    %v143 = vld [vmem:[#allocation2 + $0x130] sm:$0xff]
    %v144 = vld [vmem:[#allocation2 + $0x138] sm:$0xff]
    %v145 = vld [vmem:[#allocation2 + $0x140] sm:$0xff]
    %v146 = vld [vmem:[#allocation2 + $0x148] sm:$0xff]
    %v147 = vld [vmem:[#allocation2 + $0x150] sm:$0xff]
    %v148 = vld [vmem:[#allocation2 + $0x158] sm:$0xff]
    %v149 = vld [vmem:[#allocation2 + $0x160] sm:$0xff]
    %v150 = vld [vmem:[#allocation2 + $0x168] sm:$0xff]
    %v151 = vld [vmem:[#allocation2 + $0x170] sm:$0xff]
    %v152 = vld [vmem:[#allocation2 + $0x178] sm:$0xff]
    %v153 = vld [vmem:[#allocation2 + $0x180] sm:$0xff]
    %v154 = vld [vmem:[#allocation2 + $0x188] sm:$0xff]
    %v155 = vld [vmem:[#allocation2 + $0x190] sm:$0xff]
    %v156 = vld [vmem:[#allocation2 + $0x198] sm:$0xff]
    %v157 = vld [vmem:[#allocation2 + $0x1a0] sm:$0xff]
    %v158 = vld [vmem:[#allocation2 + $0x1a8] sm:$0xff]
    %v159 = vld [vmem:[#allocation2 + $0x1b0] sm:$0xff]
    %v160 = vld [vmem:[#allocation2 + $0x1b8] sm:$0xff]
    %v161 = vld [vmem:[#allocation2 + $0x1c0] sm:$0xff]
    %v162 = vld [vmem:[#allocation2 + $0x1c8] sm:$0xff]
    %v163 = vld [vmem:[#allocation2 + $0x1d0] sm:$0xff]
    %v164 = vld [vmem:[#allocation2 + $0x1d8] sm:$0xff]
    %v165 = vld [vmem:[#allocation2 + $0x1e0] sm:$0xff]
    %v166 = vld [vmem:[#allocation2 + $0x1e8] sm:$0xff]
    %v167 = vld [vmem:[#allocation2 + $0x1f0] sm:$0xff]
    %v168 = vld [vmem:[#allocation2 + $0x1f8] sm:$0xff]
    %v169 = vld [vmem:[#allocation2 + $0x200] sm:$0xff]
    %v170 = vld [vmem:[#allocation2 + $0x208] sm:$0xff]
    %v171 = vld [vmem:[#allocation2 + $0x210] sm:$0xff]
    %v172 = vld [vmem:[#allocation2 + $0x218] sm:$0xff]
    %v173 = vld [vmem:[#allocation2 + $0x220] sm:$0xff]
    %v174 = vld [vmem:[#allocation2 + $0x228] sm:$0xff]
    %v175 = vld [vmem:[#allocation2 + $0x230] sm:$0xff]
    %v176 = vld [vmem:[#allocation2 + $0x238] sm:$0xff]
    %v177 = vld [vmem:[#allocation2 + $0x240] sm:$0xff]
    %v178 = vld [vmem:[#allocation2 + $0x248] sm:$0xff]
    %v179 = vld [vmem:[#allocation2 + $0x250] sm:$0xff]
    %v180 = vld [vmem:[#allocation2 + $0x258] sm:$0xff]
    %v181 = vld [vmem:[#allocation2 + $0x260] sm:$0xff]
    %v182 = vld [vmem:[#allocation2 + $0x268] sm:$0xff]
    %v183 = vld [vmem:[#allocation2 + $0x270] sm:$0xff]
    %v184 = vld [vmem:[#allocation2 + $0x278] sm:$0xff]
    %v185 = vld [vmem:[#allocation2 + $0x280] sm:$0xff]
    %v186 = vld [vmem:[#allocation2 + $0x288] sm:$0xff]
    %v187 = vld [vmem:[#allocation2 + $0x290] sm:$0xff]
    %v188 = vld [vmem:[#allocation2 + $0x298] sm:$0xff]
    %v189 = vld [vmem:[#allocation2 + $0x2a0] sm:$0xff]
    %v190 = vld [vmem:[#allocation2 + $0x2a8] sm:$0xff]
    %v191 = vld [vmem:[#allocation2 + $0x2b0] sm:$0xff]
    %v192 = vld [vmem:[#allocation2 + $0x2b8] sm:$0xff]
    %v193 = vld [vmem:[#allocation2 + $0x2c0] sm:$0xff]
    %v194 = vld [vmem:[#allocation2 + $0x2c8] sm:$0xff]
    %v195 = vld [vmem:[#allocation2 + $0x2d0] sm:$0xff]
    %v196 = vld [vmem:[#allocation2 + $0x2d8] sm:$0xff]
    %v197 = vld [vmem:[#allocation2 + $0x2e0] sm:$0xff]
    %v198 = vld [vmem:[#allocation2 + $0x2e8] sm:$0xff]
    %v199 = vld [vmem:[#allocation2 + $0x2f0] sm:$0xff]
    %v200 = vld [vmem:[#allocation2 + $0x2f8] sm:$0xff]
    %v201 = vld [vmem:[#allocation2 + $0x300] sm:$0xff]
    %v202 = vld [vmem:[#allocation2 + $0x308] sm:$0xff]
    %v203 = vld [vmem:[#allocation2 + $0x310] sm:$0xff]
    %v204 = vld [vmem:[#allocation2 + $0x318] sm:$0xff]
    %v205 = vld [vmem:[#allocation2 + $0x320] sm:$0xff]
    %v206 = vld [vmem:[#allocation2 + $0x328] sm:$0xff]
    %v207 = vld [vmem:[#allocation2 + $0x330] sm:$0xff]
    %v208 = vld [vmem:[#allocation2 + $0x338] sm:$0xff]
    %v209 = vld [vmem:[#allocation2 + $0x340] sm:$0xff]
    %v210 = vld [vmem:[#allocation2 + $0x348] sm:$0xff]
    %v211 = vld [vmem:[#allocation2 + $0x350] sm:$0xff]
    %v212 = vld [vmem:[#allocation2 + $0x358] sm:$0xff]
    %v213 = vld [vmem:[#allocation2 + $0x360] sm:$0xff]
    %v214 = vld [vmem:[#allocation2 + $0x368] sm:$0xff]
    %v215 = vld [vmem:[#allocation2 + $0x370] sm:$0xff]
    %v216 = vld [vmem:[#allocation2 + $0x378] sm:$0xff]
    %v217 = vld [vmem:[#allocation2 + $0x380] sm:$0xff]
    %v218 = vld [vmem:[#allocation2 + $0x388] sm:$0xff]
    %v219 = vld [vmem:[#allocation2 + $0x390] sm:$0xff]
    %v220 = vld [vmem:[#allocation2 + $0x398] sm:$0xff]
    %v221 = vld [vmem:[#allocation2 + $0x3a0] sm:$0xff]
    %v222 = vld [vmem:[#allocation2 + $0x3a8] sm:$0xff]
    %v223 = vld [vmem:[#allocation2 + $0x3b0] sm:$0xff]
    %v224 = vld [vmem:[#allocation2 + $0x3b8] sm:$0xff]
    %v225 = vld [vmem:[#allocation2 + $0x3c0] sm:$0xff]
    %v226 = vld [vmem:[#allocation2 + $0x3c8] sm:$0xff]
    %v227 = vld [vmem:[#allocation2 + $0x3d0] sm:$0xff]
    %v228 = vld [vmem:[#allocation2 + $0x3d8] sm:$0xff]
    %v229 = vld [vmem:[#allocation2 + $0x3e0] sm:$0xff]
    %v230 = vld [vmem:[#allocation2 + $0x3e8] sm:$0xff]
    %v231 = vld [vmem:[#allocation2 + $0x3f0] sm:$0xff]
    %v232 = vld [vmem:[#allocation2 + $0x3f8] sm:$0xff]
    %v235 = vunpack.c.l.b16 %v103
    %v236 = vunpack.c.h.b16 %v103
    %v237 = vunpack.c.l.b16 %v104
    %v238 = vunpack.c.h.b16 %v104
    %v239 = vpack.c.b16 %v237, %v235
    %v240 = vpack.c.b16 %v238, %v236
    %v371 = vunpack.c.l.b16 %v105
    %v372 = vunpack.c.h.b16 %v105
    %v373 = vunpack.c.l.b16 %v106
    %v374 = vunpack.c.h.b16 %v106
    %v375 = vunpack.c.l.b16 %v107
    %v376 = vunpack.c.h.b16 %v107
    %v377 = vunpack.c.l.b16 %v108
    %v378 = vunpack.c.h.b16 %v108
    %v379 = vunpack.c.l.b16 %v109
    %v380 = vunpack.c.h.b16 %v109
    %v381 = vunpack.c.l.b16 %v110
    %v382 = vunpack.c.h.b16 %v110
    %v383 = vunpack.c.l.b16 %v111
    %v384 = vunpack.c.h.b16 %v111
    %v385 = vunpack.c.l.b16 %v112
    %v386 = vunpack.c.h.b16 %v112
    %v387 = vunpack.c.l.b16 %v113
    %v388 = vunpack.c.h.b16 %v113
    %v389 = vunpack.c.l.b16 %v114
    %v390 = vunpack.c.h.b16 %v114
    %v391 = vunpack.c.l.b16 %v115
    %v392 = vunpack.c.h.b16 %v115
    %v393 = vunpack.c.l.b16 %v116
    %v394 = vunpack.c.h.b16 %v116
    %v395 = vunpack.c.l.b16 %v117
    %v396 = vunpack.c.h.b16 %v117
    %v397 = vunpack.c.l.b16 %v118
    %v398 = vunpack.c.h.b16 %v118
    %v399 = vunpack.c.l.b16 %v119
    %v400 = vunpack.c.h.b16 %v119
    %v401 = vunpack.c.l.b16 %v120
    %v402 = vunpack.c.h.b16 %v120
    %v403 = vunpack.c.l.b16 %v121
    %v404 = vunpack.c.h.b16 %v121
    %v405 = vunpack.c.l.b16 %v122
    %v406 = vunpack.c.h.b16 %v122
    %v407 = vunpack.c.l.b16 %v123
    %v408 = vunpack.c.h.b16 %v123
    %v409 = vunpack.c.l.b16 %v124
    %v410 = vunpack.c.h.b16 %v124
    %v411 = vunpack.c.l.b16 %v125
    %v412 = vunpack.c.h.b16 %v125
    %v413 = vunpack.c.l.b16 %v126
    %v414 = vunpack.c.h.b16 %v126
    %v415 = vunpack.c.l.b16 %v127
    %v416 = vunpack.c.h.b16 %v127
    %v417 = vunpack.c.l.b16 %v128
    %v418 = vunpack.c.h.b16 %v128
    %v419 = vunpack.c.l.b16 %v129
    %v420 = vunpack.c.h.b16 %v129
    %v421 = vunpack.c.l.b16 %v130
    %v422 = vunpack.c.h.b16 %v130
    %v423 = vunpack.c.l.b16 %v131
    %v424 = vunpack.c.h.b16 %v131
    %v425 = vunpack.c.l.b16 %v132
    %v426 = vunpack.c.h.b16 %v132
    %v427 = vunpack.c.l.b16 %v133
    %v428 = vunpack.c.h.b16 %v133
    %v429 = vunpack.c.l.b16 %v134
    %v430 = vunpack.c.h.b16 %v134
    %v431 = vunpack.c.l.b16 %v135
    %v432 = vunpack.c.h.b16 %v135
    %v433 = vunpack.c.l.b16 %v136
    %v434 = vunpack.c.h.b16 %v136
    %v435 = vunpack.c.l.b16 %v137
    %v436 = vunpack.c.h.b16 %v137
    %v437 = vunpack.c.l.b16 %v138
    %v438 = vunpack.c.h.b16 %v138
    %v439 = vunpack.c.l.b16 %v139
    %v440 = vunpack.c.h.b16 %v139
    %v441 = vunpack.c.l.b16 %v140
    %v442 = vunpack.c.h.b16 %v140
    %v443 = vunpack.c.l.b16 %v141
    %v444 = vunpack.c.h.b16 %v141
    %v445 = vunpack.c.l.b16 %v142
    %v446 = vunpack.c.h.b16 %v142
    %v447 = vunpack.c.l.b16 %v143
    %v448 = vunpack.c.h.b16 %v143
    %v449 = vunpack.c.l.b16 %v144
    %v450 = vunpack.c.h.b16 %v144
    %v451 = vunpack.c.l.b16 %v145
    %v452 = vunpack.c.h.b16 %v145
    %v453 = vunpack.c.l.b16 %v146
    %v454 = vunpack.c.h.b16 %v146
    %v455 = vunpack.c.l.b16 %v147
    %v456 = vunpack.c.h.b16 %v147
    %v457 = vunpack.c.l.b16 %v148
    %v458 = vunpack.c.h.b16 %v148
    %v459 = vunpack.c.l.b16 %v149
    %v460 = vunpack.c.h.b16 %v149
    %v461 = vunpack.c.l.b16 %v150
    %v462 = vunpack.c.h.b16 %v150
    %v463 = vunpack.c.l.b16 %v151
    %v464 = vunpack.c.h.b16 %v151
    %v465 = vunpack.c.l.b16 %v152
    %v466 = vunpack.c.h.b16 %v152
    %v467 = vunpack.c.l.b16 %v153
    %v468 = vunpack.c.h.b16 %v153
    %v469 = vunpack.c.l.b16 %v154
    %v470 = vunpack.c.h.b16 %v154
    %v471 = vunpack.c.l.b16 %v155
    %v472 = vunpack.c.h.b16 %v155
    %v473 = vunpack.c.l.b16 %v156
    %v474 = vunpack.c.h.b16 %v156
    %v475 = vunpack.c.l.b16 %v157
    %v476 = vunpack.c.h.b16 %v157
    %v477 = vunpack.c.l.b16 %v158
    %v478 = vunpack.c.h.b16 %v158
    %v479 = vunpack.c.l.b16 %v159
    %v480 = vunpack.c.h.b16 %v159
    %v481 = vunpack.c.l.b16 %v160
    %v482 = vunpack.c.h.b16 %v160
    %v483 = vunpack.c.l.b16 %v161
    %v484 = vunpack.c.h.b16 %v161
    %v485 = vunpack.c.l.b16 %v162
    %v486 = vunpack.c.h.b16 %v162
    %v487 = vunpack.c.l.b16 %v163
    %v488 = vunpack.c.h.b16 %v163
    %v489 = vunpack.c.l.b16 %v164
    %v490 = vunpack.c.h.b16 %v164
    %v491 = vunpack.c.l.b16 %v165
    %v492 = vunpack.c.h.b16 %v165
    %v493 = vunpack.c.l.b16 %v166
    %v494 = vunpack.c.h.b16 %v166
    %v495 = vunpack.c.l.b16 %v167
    %v496 = vunpack.c.h.b16 %v167
    %v497 = vunpack.c.l.b16 %v168
    %v498 = vunpack.c.h.b16 %v168
    %v499 = vunpack.c.l.b16 %v169
    %v500 = vunpack.c.h.b16 %v169
    %v501 = vunpack.c.l.b16 %v170
    %v502 = vunpack.c.h.b16 %v170
    %v503 = vunpack.c.l.b16 %v171
    %v504 = vunpack.c.h.b16 %v171
    %v505 = vunpack.c.l.b16 %v172
    %v506 = vunpack.c.h.b16 %v172
    %v507 = vunpack.c.l.b16 %v173
    %v508 = vunpack.c.h.b16 %v173
    %v509 = vunpack.c.l.b16 %v174
    %v510 = vunpack.c.h.b16 %v174
    %v511 = vunpack.c.l.b16 %v175
    %v512 = vunpack.c.h.b16 %v175
    %v513 = vunpack.c.l.b16 %v176
    %v514 = vunpack.c.h.b16 %v176
    %v515 = vunpack.c.l.b16 %v177
    %v516 = vunpack.c.h.b16 %v177
    %v517 = vunpack.c.l.b16 %v178
    %v518 = vunpack.c.h.b16 %v178
    %v519 = vunpack.c.l.b16 %v179
    %v520 = vunpack.c.h.b16 %v179
    %v521 = vunpack.c.l.b16 %v180
    %v522 = vunpack.c.h.b16 %v180
    %v523 = vunpack.c.l.b16 %v181
    %v524 = vunpack.c.h.b16 %v181
    %v525 = vunpack.c.l.b16 %v182
    %v526 = vunpack.c.h.b16 %v182
    %v527 = vunpack.c.l.b16 %v183
    %v528 = vunpack.c.h.b16 %v183
    %v529 = vunpack.c.l.b16 %v184
    %v530 = vunpack.c.h.b16 %v184
    %v531 = vunpack.c.l.b16 %v185
    %v532 = vunpack.c.h.b16 %v185
    %v533 = vunpack.c.l.b16 %v186
    %v534 = vunpack.c.h.b16 %v186
    %v535 = vunpack.c.l.b16 %v187
    %v536 = vunpack.c.h.b16 %v187
    %v537 = vunpack.c.l.b16 %v188
    %v538 = vunpack.c.h.b16 %v188
    %v539 = vunpack.c.l.b16 %v189
    %v540 = vunpack.c.h.b16 %v189
    %v541 = vunpack.c.l.b16 %v190
    %v542 = vunpack.c.h.b16 %v190
    %v543 = vunpack.c.l.b16 %v191
    %v544 = vunpack.c.h.b16 %v191
    %v545 = vunpack.c.l.b16 %v192
    %v546 = vunpack.c.h.b16 %v192
    %v547 = vunpack.c.l.b16 %v193
    %v548 = vunpack.c.h.b16 %v193
    %v549 = vunpack.c.l.b16 %v194
    %v550 = vunpack.c.h.b16 %v194
    %v551 = vunpack.c.l.b16 %v195
    %v552 = vunpack.c.h.b16 %v195
    %v553 = vunpack.c.l.b16 %v196
    %v554 = vunpack.c.h.b16 %v196
    %v555 = vunpack.c.l.b16 %v197
    %v556 = vunpack.c.h.b16 %v197
    %v557 = vunpack.c.l.b16 %v198
    %v558 = vunpack.c.h.b16 %v198
    %v559 = vunpack.c.l.b16 %v199
    %v560 = vunpack.c.h.b16 %v199
    %v561 = vunpack.c.l.b16 %v200
    %v562 = vunpack.c.h.b16 %v200
    %v563 = vunpack.c.l.b16 %v201
    %v564 = vunpack.c.h.b16 %v201
    %v565 = vunpack.c.l.b16 %v202
    %v566 = vunpack.c.h.b16 %v202
    %v567 = vunpack.c.l.b16 %v203
    %v568 = vunpack.c.h.b16 %v203
    %v569 = vunpack.c.l.b16 %v204
    %v570 = vunpack.c.h.b16 %v204
    %v571 = vunpack.c.l.b16 %v205
    %v572 = vunpack.c.h.b16 %v205
    %v573 = vunpack.c.l.b16 %v206
    %v574 = vunpack.c.h.b16 %v206
    %v575 = vunpack.c.l.b16 %v207
    %v576 = vunpack.c.h.b16 %v207
    %v577 = vunpack.c.l.b16 %v208
    %v578 = vunpack.c.h.b16 %v208
    %v579 = vunpack.c.l.b16 %v209
    %v580 = vunpack.c.h.b16 %v209
    %v581 = vunpack.c.l.b16 %v210
    %v582 = vunpack.c.h.b16 %v210
    %v583 = vunpack.c.l.b16 %v211
    %v584 = vunpack.c.h.b16 %v211
    %v585 = vunpack.c.l.b16 %v212
    %v586 = vunpack.c.h.b16 %v212
    %v587 = vunpack.c.l.b16 %v213
    %v588 = vunpack.c.h.b16 %v213
    %v589 = vunpack.c.l.b16 %v214
    %v590 = vunpack.c.h.b16 %v214
    %v591 = vunpack.c.l.b16 %v215
    %v592 = vunpack.c.h.b16 %v215
    %v593 = vunpack.c.l.b16 %v216
    %v594 = vunpack.c.h.b16 %v216
    %v595 = vunpack.c.l.b16 %v217
    %v596 = vunpack.c.h.b16 %v217
    %v597 = vunpack.c.l.b16 %v218
    %v598 = vunpack.c.h.b16 %v218
    %v599 = vunpack.c.l.b16 %v219
    %v600 = vunpack.c.h.b16 %v219
    %v601 = vunpack.c.l.b16 %v220
    %v602 = vunpack.c.h.b16 %v220
    %v603 = vunpack.c.l.b16 %v221
    %v604 = vunpack.c.h.b16 %v221
    %v605 = vunpack.c.l.b16 %v222
    %v606 = vunpack.c.h.b16 %v222
    %v607 = vunpack.c.l.b16 %v223
    %v608 = vunpack.c.h.b16 %v223
    %v609 = vunpack.c.l.b16 %v224
    %v610 = vunpack.c.h.b16 %v224
    %v611 = vunpack.c.l.b16 %v225
    %v612 = vunpack.c.h.b16 %v225
    %v613 = vunpack.c.l.b16 %v226
    %v614 = vunpack.c.h.b16 %v226
    %v615 = vunpack.c.l.b16 %v227
    %v616 = vunpack.c.h.b16 %v227
    %v617 = vunpack.c.l.b16 %v228
    %v618 = vunpack.c.h.b16 %v228
    %v619 = vunpack.c.l.b16 %v229
    %v620 = vunpack.c.h.b16 %v229
    %v621 = vunpack.c.l.b16 %v230
    %v622 = vunpack.c.h.b16 %v230
    %v623 = vunpack.c.l.b16 %v231
    %v624 = vunpack.c.h.b16 %v231
    %v625 = vunpack.c.l.b16 %v232
    %v626 = vunpack.c.h.b16 %v232
    %v627 = vpack.c.b16 %v379, %v371
    %v628 = vpack.c.b16 %v380, %v372
    %v629 = vpack.c.b16 %v381, %v373
    %v630 = vpack.c.b16 %v382, %v374
    %v631 = vpack.c.b16 %v383, %v375
    %v632 = vpack.c.b16 %v384, %v376
    %v633 = vpack.c.b16 %v385, %v377
    %v634 = vpack.c.b16 %v386, %v378
    %v635 = vpack.c.b16 %v395, %v387
    %v636 = vpack.c.b16 %v396, %v388
    %v637 = vpack.c.b16 %v397, %v389
    %v638 = vpack.c.b16 %v398, %v390
    %v639 = vpack.c.b16 %v399, %v391
    %v640 = vpack.c.b16 %v400, %v392
    %v641 = vpack.c.b16 %v401, %v393
    %v642 = vpack.c.b16 %v402, %v394
    %v643 = vpack.c.b16 %v411, %v403
    %v644 = vpack.c.b16 %v412, %v404
    %v645 = vpack.c.b16 %v413, %v405
    %v646 = vpack.c.b16 %v414, %v406
    %v647 = vpack.c.b16 %v415, %v407
    %v648 = vpack.c.b16 %v416, %v408
    %v649 = vpack.c.b16 %v417, %v409
    %v650 = vpack.c.b16 %v418, %v410
    %v651 = vpack.c.b16 %v427, %v419
    %v652 = vpack.c.b16 %v428, %v420
    %v653 = vpack.c.b16 %v429, %v421
    %v654 = vpack.c.b16 %v430, %v422
    %v655 = vpack.c.b16 %v431, %v423
    %v656 = vpack.c.b16 %v432, %v424
    %v657 = vpack.c.b16 %v433, %v425
    %v658 = vpack.c.b16 %v434, %v426
    %v659 = vpack.c.b16 %v443, %v435
    %v660 = vpack.c.b16 %v444, %v436
    %v661 = vpack.c.b16 %v445, %v437
    %v662 = vpack.c.b16 %v446, %v438
    %v663 = vpack.c.b16 %v447, %v439
    %v664 = vpack.c.b16 %v448, %v440
    %v665 = vpack.c.b16 %v449, %v441
    %v666 = vpack.c.b16 %v450, %v442
    %v667 = vpack.c.b16 %v459, %v451
    %v668 = vpack.c.b16 %v460, %v452
    %v669 = vpack.c.b16 %v461, %v453
    %v670 = vpack.c.b16 %v462, %v454
    %v671 = vpack.c.b16 %v463, %v455
    %v672 = vpack.c.b16 %v464, %v456
    %v673 = vpack.c.b16 %v465, %v457
    %v674 = vpack.c.b16 %v466, %v458
    %v675 = vpack.c.b16 %v475, %v467
    %v676 = vpack.c.b16 %v476, %v468
    %v677 = vpack.c.b16 %v477, %v469
    %v678 = vpack.c.b16 %v478, %v470
    %v679 = vpack.c.b16 %v479, %v471
    %v680 = vpack.c.b16 %v480, %v472
    %v681 = vpack.c.b16 %v481, %v473
    %v682 = vpack.c.b16 %v482, %v474
    %v683 = vpack.c.b16 %v491, %v483
    %v684 = vpack.c.b16 %v492, %v484
    %v685 = vpack.c.b16 %v493, %v485
    %v686 = vpack.c.b16 %v494, %v486
    %v687 = vpack.c.b16 %v495, %v487
    %v688 = vpack.c.b16 %v496, %v488
    %v689 = vpack.c.b16 %v497, %v489
    %v690 = vpack.c.b16 %v498, %v490
    %v691 = vpack.c.b16 %v507, %v499
    %v692 = vpack.c.b16 %v508, %v500
    %v693 = vpack.c.b16 %v509, %v501
    %v694 = vpack.c.b16 %v510, %v502
    %v695 = vpack.c.b16 %v511, %v503
    %v696 = vpack.c.b16 %v512, %v504
    %v697 = vpack.c.b16 %v513, %v505
    %v698 = vpack.c.b16 %v514, %v506
    %v699 = vpack.c.b16 %v523, %v515
    %v700 = vpack.c.b16 %v524, %v516
    %v701 = vpack.c.b16 %v525, %v517
    %v702 = vpack.c.b16 %v526, %v518
    %v703 = vpack.c.b16 %v527, %v519
    %v704 = vpack.c.b16 %v528, %v520
    %v705 = vpack.c.b16 %v529, %v521
    %v706 = vpack.c.b16 %v530, %v522
    %v707 = vpack.c.b16 %v539, %v531
    %v708 = vpack.c.b16 %v540, %v532
    %v709 = vpack.c.b16 %v541, %v533
    %v710 = vpack.c.b16 %v542, %v534
    %v711 = vpack.c.b16 %v543, %v535
    %v712 = vpack.c.b16 %v544, %v536
    %v713 = vpack.c.b16 %v545, %v537
    %v714 = vpack.c.b16 %v546, %v538
    %v715 = vpack.c.b16 %v555, %v547
    %v716 = vpack.c.b16 %v556, %v548
    %v717 = vpack.c.b16 %v557, %v549
    %v718 = vpack.c.b16 %v558, %v550
    %v719 = vpack.c.b16 %v559, %v551
    %v720 = vpack.c.b16 %v560, %v552
    %v721 = vpack.c.b16 %v561, %v553
    %v722 = vpack.c.b16 %v562, %v554
    %v723 = vpack.c.b16 %v571, %v563
    %v724 = vpack.c.b16 %v572, %v564
    %v725 = vpack.c.b16 %v573, %v565
    %v726 = vpack.c.b16 %v574, %v566
    %v727 = vpack.c.b16 %v575, %v567
    %v728 = vpack.c.b16 %v576, %v568
    %v729 = vpack.c.b16 %v577, %v569
    %v730 = vpack.c.b16 %v578, %v570
    %v731 = vpack.c.b16 %v587, %v579
    %v732 = vpack.c.b16 %v588, %v580
    %v733 = vpack.c.b16 %v589, %v581
    %v734 = vpack.c.b16 %v590, %v582
    %v735 = vpack.c.b16 %v591, %v583
    %v736 = vpack.c.b16 %v592, %v584
    %v737 = vpack.c.b16 %v593, %v585
    %v738 = vpack.c.b16 %v594, %v586
    %v739 = vpack.c.b16 %v603, %v595
    %v740 = vpack.c.b16 %v604, %v596
    %v741 = vpack.c.b16 %v605, %v597
    %v742 = vpack.c.b16 %v606, %v598
    %v743 = vpack.c.b16 %v607, %v599
    %v744 = vpack.c.b16 %v608, %v600
    %v745 = vpack.c.b16 %v609, %v601
    %v746 = vpack.c.b16 %v610, %v602
    %v747 = vpack.c.b16 %v619, %v611
    %v748 = vpack.c.b16 %v620, %v612
    %v749 = vpack.c.b16 %v621, %v613
    %v750 = vpack.c.b16 %v622, %v614
    %v751 = vpack.c.b16 %v623, %v615
    %v752 = vpack.c.b16 %v624, %v616
    %v753 = vpack.c.b16 %v625, %v617
    %v754 = vpack.c.b16 %v626, %v618
    %883 = vmatprep.subr.bf16.mxu0 %v684
    %884 = vmatpush1.bf16.msra.mxu0 %v683
    %885 = vmatprep.subr.bf16.mxu0 %v676
    %886 = vmatpush1.bf16.msra.mxu0 %v675
    %887 = vmatprep.subr.bf16.mxu0 %v668
    %888 = vmatpush1.bf16.msra.mxu0 %v667
    %889 = vmatprep.subr.bf16.mxu0 %v660
    %890 = vmatpush1.bf16.msra.mxu0 %v659
    %891 = vmatprep.subr.bf16.mxu0 %v652
    %892 = vmatpush1.bf16.msra.mxu0 %v651
    %893 = vmatprep.subr.bf16.mxu0 %v644
    %894 = vmatpush1.bf16.msra.mxu0 %v643
    %895 = vmatprep.subr.bf16.mxu0 %v636
    %896 = vmatpush1.bf16.msra.mxu0 %v635
    %897 = vmatprep.subr.bf16.mxu0 %v628
    %898 = vmatpush1.bf16.msra.mxu0 %v627
    %899 = vmatprep.subr.bf16.mxu0 %v748
    %900 = vmatpush2.bf16.msra.mxu0 %v747
    %901 = vmatprep.subr.bf16.mxu0 %v740
    %902 = vmatpush2.bf16.msra.mxu0 %v739
    %903 = vmatprep.subr.bf16.mxu0 %v732
    %904 = vmatpush2.bf16.msra.mxu0 %v731
    %905 = vmatprep.subr.bf16.mxu0 %v724
    %906 = vmatpush2.bf16.msra.mxu0 %v723
    %907 = vmatprep.subr.bf16.mxu0 %v716
    %908 = vmatpush2.bf16.msra.mxu0 %v715
    %909 = vmatprep.subr.bf16.mxu0 %v708
    %910 = vmatpush2.bf16.msra.mxu0 %v707
    %911 = vmatprep.subr.bf16.mxu0 %v700
    %912 = vmatpush2.bf16.msra.mxu0 %v699
    %913 = vmatprep.subr.bf16.mxu0 %v692
    %914 = vmatpush2.bf16.msra.mxu0 %v691
    %915 = vmatprep.mubr.bf16.mxu0 %v240
    %916 = vmatmul.mubr.bf16.gmra.mxu0 %v239
    %v917 = vpop.f32.mrf.mxu0
    %v918 = vadd.f32 0.0, %v917
    %v919 = vpop.f32.mrf.mxu0
    %v920 = vadd.f32 0.0, %v919
    %v921 = vpop.f32.mrf.mxu0
    %v922 = vadd.f32 0.0, %v921
    %v923 = vpop.f32.mrf.mxu0
    %v924 = vadd.f32 0.0, %v923
    %925 = vdwg.mxu0
    %926 = vmatprep.subr.bf16.mxu0 %v686
    %927 = vmatpush1.bf16.msra.mxu0 %v685
    %928 = vmatprep.subr.bf16.mxu0 %v678
    %929 = vmatpush1.bf16.msra.mxu0 %v677
    %930 = vmatprep.subr.bf16.mxu0 %v670
    %931 = vmatpush1.bf16.msra.mxu0 %v669
    %932 = vmatprep.subr.bf16.mxu0 %v662
    %933 = vmatpush1.bf16.msra.mxu0 %v661
    %934 = vmatprep.subr.bf16.mxu0 %v654
    %935 = vmatpush1.bf16.msra.mxu0 %v653
    %936 = vmatprep.subr.bf16.mxu0 %v646
    %937 = vmatpush1.bf16.msra.mxu0 %v645
    %938 = vmatprep.subr.bf16.mxu0 %v638
    %939 = vmatpush1.bf16.msra.mxu0 %v637
    %940 = vmatprep.subr.bf16.mxu0 %v630
    %941 = vmatpush1.bf16.msra.mxu0 %v629
    %942 = vmatprep.subr.bf16.mxu0 %v750
    %943 = vmatpush2.bf16.msra.mxu0 %v749
    %944 = vmatprep.subr.bf16.mxu0 %v742
    %945 = vmatpush2.bf16.msra.mxu0 %v741
    %946 = vmatprep.subr.bf16.mxu0 %v734
    %947 = vmatpush2.bf16.msra.mxu0 %v733
    %948 = vmatprep.subr.bf16.mxu0 %v726
    %949 = vmatpush2.bf16.msra.mxu0 %v725
    %950 = vmatprep.subr.bf16.mxu0 %v718
    %951 = vmatpush2.bf16.msra.mxu0 %v717
    %952 = vmatprep.subr.bf16.mxu0 %v710
    %953 = vmatpush2.bf16.msra.mxu0 %v709
    %954 = vmatprep.subr.bf16.mxu0 %v702
    %955 = vmatpush2.bf16.msra.mxu0 %v701
    %956 = vmatprep.subr.bf16.mxu0 %v694
    %957 = vmatpush2.bf16.msra.mxu0 %v693
    %958 = vmatprep.mubr.bf16.mxu0 %v240
    %959 = vmatmul.mubr.bf16.gmra.mxu0 %v239
    %v960 = vpop.f32.mrf.mxu0
    %v961 = vadd.f32 0.0, %v960
    %v962 = vpop.f32.mrf.mxu0
    %v963 = vadd.f32 0.0, %v962
    %v964 = vpop.f32.mrf.mxu0
    %v965 = vadd.f32 0.0, %v964
    %v966 = vpop.f32.mrf.mxu0
    %v967 = vadd.f32 0.0, %v966
    %968 = vdwg.mxu0
    %969 = vmatprep.subr.bf16.mxu0 %v688
    %970 = vmatpush1.bf16.msra.mxu0 %v687
    %971 = vmatprep.subr.bf16.mxu0 %v680
    %972 = vmatpush1.bf16.msra.mxu0 %v679
    %973 = vmatprep.subr.bf16.mxu0 %v672
    %974 = vmatpush1.bf16.msra.mxu0 %v671
    %975 = vmatprep.subr.bf16.mxu0 %v664
    %976 = vmatpush1.bf16.msra.mxu0 %v663
    %977 = vmatprep.subr.bf16.mxu0 %v656
    %978 = vmatpush1.bf16.msra.mxu0 %v655
    %979 = vmatprep.subr.bf16.mxu0 %v648
    %980 = vmatpush1.bf16.msra.mxu0 %v647
    %981 = vmatprep.subr.bf16.mxu0 %v640
    %982 = vmatpush1.bf16.msra.mxu0 %v639
    %983 = vmatprep.subr.bf16.mxu0 %v632
    %984 = vmatpush1.bf16.msra.mxu0 %v631
    %985 = vmatprep.subr.bf16.mxu0 %v752
    %986 = vmatpush2.bf16.msra.mxu0 %v751
    %987 = vmatprep.subr.bf16.mxu0 %v744
    %988 = vmatpush2.bf16.msra.mxu0 %v743
    %989 = vmatprep.subr.bf16.mxu0 %v736
    %990 = vmatpush2.bf16.msra.mxu0 %v735
    %991 = vmatprep.subr.bf16.mxu0 %v728
    %992 = vmatpush2.bf16.msra.mxu0 %v727
    %993 = vmatprep.subr.bf16.mxu0 %v720
    %994 = vmatpush2.bf16.msra.mxu0 %v719
    %995 = vmatprep.subr.bf16.mxu0 %v712
    %996 = vmatpush2.bf16.msra.mxu0 %v711
    %997 = vmatprep.subr.bf16.mxu0 %v704
    %998 = vmatpush2.bf16.msra.mxu0 %v703
    %999 = vmatprep.subr.bf16.mxu0 %v696
    %1000 = vmatpush2.bf16.msra.mxu0 %v695
    %1001 = vmatprep.mubr.bf16.mxu0 %v240
    %1002 = vmatmul.mubr.bf16.gmra.mxu0 %v239
    %v1003 = vpop.f32.mrf.mxu0
    %v1004 = vadd.f32 0.0, %v1003
    %v1005 = vpop.f32.mrf.mxu0
    %v1006 = vadd.f32 0.0, %v1005
    %v1007 = vpop.f32.mrf.mxu0
    %v1008 = vadd.f32 0.0, %v1007
    %v1009 = vpop.f32.mrf.mxu0
    %v1010 = vadd.f32 0.0, %v1009
    %1011 = vdwg.mxu0
    %1012 = vmatprep.subr.bf16.mxu0 %v690
    %1013 = vmatpush1.bf16.msra.mxu0 %v689
    %1014 = vmatprep.subr.bf16.mxu0 %v682
    %1015 = vmatpush1.bf16.msra.mxu0 %v681
    %1016 = vmatprep.subr.bf16.mxu0 %v674
    %1017 = vmatpush1.bf16.msra.mxu0 %v673
    %1018 = vmatprep.subr.bf16.mxu0 %v666
    %1019 = vmatpush1.bf16.msra.mxu0 %v665
    %1020 = vmatprep.subr.bf16.mxu0 %v658
    %1021 = vmatpush1.bf16.msra.mxu0 %v657
    %1022 = vmatprep.subr.bf16.mxu0 %v650
    %1023 = vmatpush1.bf16.msra.mxu0 %v649
    %1024 = vmatprep.subr.bf16.mxu0 %v642
    %1025 = vmatpush1.bf16.msra.mxu0 %v641
    %1026 = vmatprep.subr.bf16.mxu0 %v634
    %1027 = vmatpush1.bf16.msra.mxu0 %v633
    %1028 = vmatprep.subr.bf16.mxu0 %v754
    %1029 = vmatpush2.bf16.msra.mxu0 %v753
    %1030 = vmatprep.subr.bf16.mxu0 %v746
    %1031 = vmatpush2.bf16.msra.mxu0 %v745
    %1032 = vmatprep.subr.bf16.mxu0 %v738
    %1033 = vmatpush2.bf16.msra.mxu0 %v737
    %1034 = vmatprep.subr.bf16.mxu0 %v730
    %1035 = vmatpush2.bf16.msra.mxu0 %v729
    %1036 = vmatprep.subr.bf16.mxu0 %v722
    %1037 = vmatpush2.bf16.msra.mxu0 %v721
    %1038 = vmatprep.subr.bf16.mxu0 %v714
    %1039 = vmatpush2.bf16.msra.mxu0 %v713
    %1040 = vmatprep.subr.bf16.mxu0 %v706
    %1041 = vmatpush2.bf16.msra.mxu0 %v705
    %1042 = vmatprep.subr.bf16.mxu0 %v698
    %1043 = vmatpush2.bf16.msra.mxu0 %v697
    %1044 = vmatprep.mubr.bf16.mxu0 %v240
    %1045 = vmatmul.mubr.bf16.gmra.mxu0 %v239
    %v1046 = vpop.f32.mrf.mxu0
    %v1047 = vadd.f32 0.0, %v1046
    %v1048 = vpop.f32.mrf.mxu0
    %v1049 = vadd.f32 0.0, %v1048
    %v1050 = vpop.f32.mrf.mxu0
    %v1051 = vadd.f32 0.0, %v1050
    %v1052 = vpop.f32.mrf.mxu0
    %v1053 = vadd.f32 0.0, %v1052
    %1054 = vdwg.mxu0
    %v1055 = vld [vmem:[%s2] sm:$0xff]
    %v1057 = vlaneseq
    %v1058 = vshrl.u32 %v1057, 7
    %v1059 = vsub.s32 0, %v1058
    %v1060 = vrot.slane %v1055, %v1059
    %v1061 = vlaneseq
    %v1062 = vshrl.u32 %v1061, 7
    %v1063 = vsub.s32 1, %v1062
    %v1064 = vrot.slane %v1055, %v1063
    %v1065 = vlaneseq
    %v1066 = vshrl.u32 %v1065, 7
    %v1067 = vsub.s32 2, %v1066
    %v1068 = vrot.slane %v1055, %v1067
    %v1069 = vlaneseq
    %v1070 = vshrl.u32 %v1069, 7
    %v1071 = vsub.s32 3, %v1070
    %v1072 = vrot.slane %v1055, %v1071
    %v1073 = vlaneseq
    %v1074 = vshrl.u32 %v1073, 7
    %v1075 = vsub.s32 4, %v1074
    %v1076 = vrot.slane %v1055, %v1075
    %v1077 = vlaneseq
    %v1078 = vshrl.u32 %v1077, 7
    %v1079 = vsub.s32 5, %v1078
    %v1080 = vrot.slane %v1055, %v1079
    %v1081 = vlaneseq
    %v1082 = vshrl.u32 %v1081, 7
    %v1083 = vsub.s32 6, %v1082
    %v1084 = vrot.slane %v1055, %v1083
    %v1085 = vlaneseq
    %v1086 = vshrl.u32 %v1085, 7
    %v1087 = vsub.s32 7, %v1086
    %v1088 = vrot.slane %v1055, %v1087
    %v1097 = vmul.f32 %v918, %v1060
    %v1098 = vmul.f32 %v920, %v1064
    %v1099 = vmul.f32 %v961, %v1068
    %v1100 = vmul.f32 %v963, %v1072
    %v1101 = vmul.f32 %v1004, %v1076
    %v1102 = vmul.f32 %v1006, %v1080
    %v1103 = vmul.f32 %v1047, %v1084
    %v1104 = vmul.f32 %v1049, %v1088
    %v1105 = vmul.f32 %v922, %v1060
    %v1106 = vmul.f32 %v924, %v1064
    %v1107 = vmul.f32 %v965, %v1068
    %v1108 = vmul.f32 %v967, %v1072
    %v1109 = vmul.f32 %v1008, %v1076
    %v1110 = vmul.f32 %v1010, %v1080
    %v1111 = vmul.f32 %v1051, %v1084
    %v1112 = vmul.f32 %v1053, %v1088
    %v1113 = vld [vmem:[%s3] sm:$0xff]
    %v1115 = vlaneseq
    %v1116 = vshrl.u32 %v1115, 7
    %v1117 = vsub.s32 0, %v1116
    %v1118 = vrot.slane %v1113, %v1117
    %v1119 = vlaneseq
    %v1120 = vshrl.u32 %v1119, 7
    %v1121 = vsub.s32 1, %v1120
    %v1122 = vrot.slane %v1113, %v1121
    %v1123 = vlaneseq
    %v1124 = vshrl.u32 %v1123, 7
    %v1125 = vsub.s32 2, %v1124
    %v1126 = vrot.slane %v1113, %v1125
    %v1127 = vlaneseq
    %v1128 = vshrl.u32 %v1127, 7
    %v1129 = vsub.s32 3, %v1128
    %v1130 = vrot.slane %v1113, %v1129
    %v1131 = vlaneseq
    %v1132 = vshrl.u32 %v1131, 7
    %v1133 = vsub.s32 4, %v1132
    %v1134 = vrot.slane %v1113, %v1133
    %v1135 = vlaneseq
    %v1136 = vshrl.u32 %v1135, 7
    %v1137 = vsub.s32 5, %v1136
    %v1138 = vrot.slane %v1113, %v1137
    %v1139 = vlaneseq
    %v1140 = vshrl.u32 %v1139, 7
    %v1141 = vsub.s32 6, %v1140
    %v1142 = vrot.slane %v1113, %v1141
    %v1143 = vlaneseq
    %v1144 = vshrl.u32 %v1143, 7
    %v1145 = vsub.s32 7, %v1144
    %v1146 = vrot.slane %v1113, %v1145
    %v1155 = vadd.f32 %v1097, %v1118
    %v1156 = vadd.f32 %v1098, %v1122
    %v1157 = vadd.f32 %v1099, %v1126
    %v1158 = vadd.f32 %v1100, %v1130
    %v1159 = vadd.f32 %v1101, %v1134
    %v1160 = vadd.f32 %v1102, %v1138
    %v1161 = vadd.f32 %v1103, %v1142
    %v1162 = vadd.f32 %v1104, %v1146
    %v1163 = vadd.f32 %v1105, %v1118
    %v1164 = vadd.f32 %v1106, %v1122
    %v1165 = vadd.f32 %v1107, %v1126
    %v1166 = vadd.f32 %v1108, %v1130
    %v1167 = vadd.f32 %v1109, %v1134
    %v1168 = vadd.f32 %v1110, %v1138
    %v1169 = vadd.f32 %v1111, %v1142
    %v1170 = vadd.f32 %v1112, %v1146
    %v1171 = vmax.f32 %v1155, 0.0
    %v1172 = vmax.f32 %v1156, 0.0
    %v1173 = vmax.f32 %v1157, 0.0
    %v1174 = vmax.f32 %v1158, 0.0
    %v1175 = vmax.f32 %v1159, 0.0
    %v1176 = vmax.f32 %v1160, 0.0
    %v1177 = vmax.f32 %v1161, 0.0
    %v1178 = vmax.f32 %v1162, 0.0
    %v1179 = vmax.f32 %v1163, 0.0
    %v1180 = vmax.f32 %v1164, 0.0
    %v1181 = vmax.f32 %v1165, 0.0
    %v1182 = vmax.f32 %v1166, 0.0
    %v1183 = vmax.f32 %v1167, 0.0
    %v1184 = vmax.f32 %v1168, 0.0
    %v1185 = vmax.f32 %v1169, 0.0
    %v1186 = vmax.f32 %v1170, 0.0
    %v1187 = vpack.c.bf16 %v1179, %v1171
    %v1188 = vpack.c.bf16 %v1180, %v1172
    %v1189 = vpack.c.bf16 %v1181, %v1173
    %v1190 = vpack.c.bf16 %v1182, %v1174
    %v1191 = vpack.c.bf16 %v1183, %v1175
    %v1192 = vpack.c.bf16 %v1184, %v1176
    %v1193 = vpack.c.bf16 %v1185, %v1177
    %v1194 = vpack.c.bf16 %v1186, %v1178
    %v1195 = vld [vmem:[#allocation4] sm:$0xff]
    %v1196 = vld [vmem:[#allocation4 + $0x8] sm:$0xff]
    %v1197 = vld [vmem:[#allocation4 + $0x10] sm:$0xff]
    %v1198 = vld [vmem:[#allocation4 + $0x18] sm:$0xff]
    %v1199 = vld [vmem:[#allocation4 + $0x20] sm:$0xff]
    %v1200 = vld [vmem:[#allocation4 + $0x28] sm:$0xff]
    %v1201 = vld [vmem:[#allocation4 + $0x30] sm:$0xff]
    %v1202 = vld [vmem:[#allocation4 + $0x38] sm:$0xff]
    %v1203 = vld [vmem:[#allocation4 + $0x40] sm:$0xff]
    %v1204 = vld [vmem:[#allocation4 + $0x48] sm:$0xff]
    %v1205 = vld [vmem:[#allocation4 + $0x50] sm:$0xff]
    %v1206 = vld [vmem:[#allocation4 + $0x58] sm:$0xff]
    %v1207 = vld [vmem:[#allocation4 + $0x60] sm:$0xff]
    %v1208 = vld [vmem:[#allocation4 + $0x68] sm:$0xff]
    %v1209 = vld [vmem:[#allocation4 + $0x70] sm:$0xff]
    %v1210 = vld [vmem:[#allocation4 + $0x78] sm:$0xff]
    %v1211 = vld [vmem:[#allocation4 + $0x80] sm:$0xff]
    %v1212 = vld [vmem:[#allocation4 + $0x88] sm:$0xff]
    %v1213 = vld [vmem:[#allocation4 + $0x90] sm:$0xff]
    %v1214 = vld [vmem:[#allocation4 + $0x98] sm:$0xff]
    %v1215 = vld [vmem:[#allocation4 + $0xa0] sm:$0xff]
    %v1216 = vld [vmem:[#allocation4 + $0xa8] sm:$0xff]
    %v1217 = vld [vmem:[#allocation4 + $0xb0] sm:$0xff]
    %v1218 = vld [vmem:[#allocation4 + $0xb8] sm:$0xff]
    %v1219 = vld [vmem:[#allocation4 + $0xc0] sm:$0xff]
    %v1220 = vld [vmem:[#allocation4 + $0xc8] sm:$0xff]
    %v1221 = vld [vmem:[#allocation4 + $0xd0] sm:$0xff]
    %v1222 = vld [vmem:[#allocation4 + $0xd8] sm:$0xff]
    %v1223 = vld [vmem:[#allocation4 + $0xe0] sm:$0xff]
    %v1224 = vld [vmem:[#allocation4 + $0xe8] sm:$0xff]
    %v1225 = vld [vmem:[#allocation4 + $0xf0] sm:$0xff]
    %v1226 = vld [vmem:[#allocation4 + $0xf8] sm:$0xff]
    %v1227 = vld [vmem:[#allocation4 + $0x100] sm:$0xff]
    %v1228 = vld [vmem:[#allocation4 + $0x108] sm:$0xff]
    %v1229 = vld [vmem:[#allocation4 + $0x110] sm:$0xff]
    %v1230 = vld [vmem:[#allocation4 + $0x118] sm:$0xff]
    %v1231 = vld [vmem:[#allocation4 + $0x120] sm:$0xff]
    %v1232 = vld [vmem:[#allocation4 + $0x128] sm:$0xff]
    %v1233 = vld [vmem:[#allocation4 + $0x130] sm:$0xff]
    %v1234 = vld [vmem:[#allocation4 + $0x138] sm:$0xff]
    %v1235 = vld [vmem:[#allocation4 + $0x140] sm:$0xff]
    %v1236 = vld [vmem:[#allocation4 + $0x148] sm:$0xff]
    %v1237 = vld [vmem:[#allocation4 + $0x150] sm:$0xff]
    %v1238 = vld [vmem:[#allocation4 + $0x158] sm:$0xff]
    %v1239 = vld [vmem:[#allocation4 + $0x160] sm:$0xff]
    %v1240 = vld [vmem:[#allocation4 + $0x168] sm:$0xff]
    %v1241 = vld [vmem:[#allocation4 + $0x170] sm:$0xff]
    %v1242 = vld [vmem:[#allocation4 + $0x178] sm:$0xff]
    %v1243 = vld [vmem:[#allocation4 + $0x180] sm:$0xff]
    %v1244 = vld [vmem:[#allocation4 + $0x188] sm:$0xff]
    %v1245 = vld [vmem:[#allocation4 + $0x190] sm:$0xff]
    %v1246 = vld [vmem:[#allocation4 + $0x198] sm:$0xff]
    %v1247 = vld [vmem:[#allocation4 + $0x1a0] sm:$0xff]
    %v1248 = vld [vmem:[#allocation4 + $0x1a8] sm:$0xff]
    %v1249 = vld [vmem:[#allocation4 + $0x1b0] sm:$0xff]
    %v1250 = vld [vmem:[#allocation4 + $0x1b8] sm:$0xff]
    %v1251 = vld [vmem:[#allocation4 + $0x1c0] sm:$0xff]
    %v1252 = vld [vmem:[#allocation4 + $0x1c8] sm:$0xff]
    %v1253 = vld [vmem:[#allocation4 + $0x1d0] sm:$0xff]
    %v1254 = vld [vmem:[#allocation4 + $0x1d8] sm:$0xff]
    %v1255 = vld [vmem:[#allocation4 + $0x1e0] sm:$0xff]
    %v1256 = vld [vmem:[#allocation4 + $0x1e8] sm:$0xff]
    %v1257 = vld [vmem:[#allocation4 + $0x1f0] sm:$0xff]
    %v1258 = vld [vmem:[#allocation4 + $0x1f8] sm:$0xff]
    %v1259 = vld [vmem:[#allocation4 + $0x200] sm:$0xff]
    %v1260 = vld [vmem:[#allocation4 + $0x208] sm:$0xff]
    %v1261 = vld [vmem:[#allocation4 + $0x210] sm:$0xff]
    %v1262 = vld [vmem:[#allocation4 + $0x218] sm:$0xff]
    %v1263 = vld [vmem:[#allocation4 + $0x220] sm:$0xff]
    %v1264 = vld [vmem:[#allocation4 + $0x228] sm:$0xff]
    %v1265 = vld [vmem:[#allocation4 + $0x230] sm:$0xff]
    %v1266 = vld [vmem:[#allocation4 + $0x238] sm:$0xff]
    %v1267 = vld [vmem:[#allocation4 + $0x240] sm:$0xff]
    %v1268 = vld [vmem:[#allocation4 + $0x248] sm:$0xff]
    %v1269 = vld [vmem:[#allocation4 + $0x250] sm:$0xff]
    %v1270 = vld [vmem:[#allocation4 + $0x258] sm:$0xff]
    %v1271 = vld [vmem:[#allocation4 + $0x260] sm:$0xff]
    %v1272 = vld [vmem:[#allocation4 + $0x268] sm:$0xff]
    %v1273 = vld [vmem:[#allocation4 + $0x270] sm:$0xff]
    %v1274 = vld [vmem:[#allocation4 + $0x278] sm:$0xff]
    %v1275 = vld [vmem:[#allocation4 + $0x280] sm:$0xff]
    %v1276 = vld [vmem:[#allocation4 + $0x288] sm:$0xff]
    %v1277 = vld [vmem:[#allocation4 + $0x290] sm:$0xff]
    %v1278 = vld [vmem:[#allocation4 + $0x298] sm:$0xff]
    %v1279 = vld [vmem:[#allocation4 + $0x2a0] sm:$0xff]
    %v1280 = vld [vmem:[#allocation4 + $0x2a8] sm:$0xff]
    %v1281 = vld [vmem:[#allocation4 + $0x2b0] sm:$0xff]
    %v1282 = vld [vmem:[#allocation4 + $0x2b8] sm:$0xff]
    %v1283 = vld [vmem:[#allocation4 + $0x2c0] sm:$0xff]
    %v1284 = vld [vmem:[#allocation4 + $0x2c8] sm:$0xff]
    %v1285 = vld [vmem:[#allocation4 + $0x2d0] sm:$0xff]
    %v1286 = vld [vmem:[#allocation4 + $0x2d8] sm:$0xff]
    %v1287 = vld [vmem:[#allocation4 + $0x2e0] sm:$0xff]
    %v1288 = vld [vmem:[#allocation4 + $0x2e8] sm:$0xff]
    %v1289 = vld [vmem:[#allocation4 + $0x2f0] sm:$0xff]
    %v1290 = vld [vmem:[#allocation4 + $0x2f8] sm:$0xff]
    %v1291 = vld [vmem:[#allocation4 + $0x300] sm:$0xff]
    %v1292 = vld [vmem:[#allocation4 + $0x308] sm:$0xff]
    %v1293 = vld [vmem:[#allocation4 + $0x310] sm:$0xff]
    %v1294 = vld [vmem:[#allocation4 + $0x318] sm:$0xff]
    %v1295 = vld [vmem:[#allocation4 + $0x320] sm:$0xff]
    %v1296 = vld [vmem:[#allocation4 + $0x328] sm:$0xff]
    %v1297 = vld [vmem:[#allocation4 + $0x330] sm:$0xff]
    %v1298 = vld [vmem:[#allocation4 + $0x338] sm:$0xff]
    %v1299 = vld [vmem:[#allocation4 + $0x340] sm:$0xff]
    %v1300 = vld [vmem:[#allocation4 + $0x348] sm:$0xff]
    %v1301 = vld [vmem:[#allocation4 + $0x350] sm:$0xff]
    %v1302 = vld [vmem:[#allocation4 + $0x358] sm:$0xff]
    %v1303 = vld [vmem:[#allocation4 + $0x360] sm:$0xff]
    %v1304 = vld [vmem:[#allocation4 + $0x368] sm:$0xff]
    %v1305 = vld [vmem:[#allocation4 + $0x370] sm:$0xff]
    %v1306 = vld [vmem:[#allocation4 + $0x378] sm:$0xff]
    %v1307 = vld [vmem:[#allocation4 + $0x380] sm:$0xff]
    %v1308 = vld [vmem:[#allocation4 + $0x388] sm:$0xff]
    %v1309 = vld [vmem:[#allocation4 + $0x390] sm:$0xff]
    %v1310 = vld [vmem:[#allocation4 + $0x398] sm:$0xff]
    %v1311 = vld [vmem:[#allocation4 + $0x3a0] sm:$0xff]
    %v1312 = vld [vmem:[#allocation4 + $0x3a8] sm:$0xff]
    %v1313 = vld [vmem:[#allocation4 + $0x3b0] sm:$0xff]
    %v1314 = vld [vmem:[#allocation4 + $0x3b8] sm:$0xff]
    %v1315 = vld [vmem:[#allocation4 + $0x3c0] sm:$0xff]
    %v1316 = vld [vmem:[#allocation4 + $0x3c8] sm:$0xff]
    %v1317 = vld [vmem:[#allocation4 + $0x3d0] sm:$0xff]
    %v1318 = vld [vmem:[#allocation4 + $0x3d8] sm:$0xff]
    %v1319 = vld [vmem:[#allocation4 + $0x3e0] sm:$0xff]
    %v1320 = vld [vmem:[#allocation4 + $0x3e8] sm:$0xff]
    %v1321 = vld [vmem:[#allocation4 + $0x3f0] sm:$0xff]
    %v1322 = vld [vmem:[#allocation4 + $0x3f8] sm:$0xff]
    %v1323 = vld [vmem:[#allocation4 + $0x400] sm:$0xff]
    %v1324 = vld [vmem:[#allocation4 + $0x408] sm:$0xff]
    %v1325 = vld [vmem:[#allocation4 + $0x410] sm:$0xff]
    %v1326 = vld [vmem:[#allocation4 + $0x418] sm:$0xff]
    %v1327 = vld [vmem:[#allocation4 + $0x420] sm:$0xff]
    %v1328 = vld [vmem:[#allocation4 + $0x428] sm:$0xff]
    %v1329 = vld [vmem:[#allocation4 + $0x430] sm:$0xff]
    %v1330 = vld [vmem:[#allocation4 + $0x438] sm:$0xff]
    %v1331 = vld [vmem:[#allocation4 + $0x440] sm:$0xff]
    %v1332 = vld [vmem:[#allocation4 + $0x448] sm:$0xff]
    %v1333 = vld [vmem:[#allocation4 + $0x450] sm:$0xff]
    %v1334 = vld [vmem:[#allocation4 + $0x458] sm:$0xff]
    %v1335 = vld [vmem:[#allocation4 + $0x460] sm:$0xff]
    %v1336 = vld [vmem:[#allocation4 + $0x468] sm:$0xff]
    %v1337 = vld [vmem:[#allocation4 + $0x470] sm:$0xff]
    %v1338 = vld [vmem:[#allocation4 + $0x478] sm:$0xff]
    %v1339 = vld [vmem:[#allocation4 + $0x480] sm:$0xff]
    %v1340 = vld [vmem:[#allocation4 + $0x488] sm:$0xff]
    %v1341 = vld [vmem:[#allocation4 + $0x490] sm:$0xff]
    %v1342 = vld [vmem:[#allocation4 + $0x498] sm:$0xff]
    %v1343 = vld [vmem:[#allocation4 + $0x4a0] sm:$0xff]
    %v1344 = vld [vmem:[#allocation4 + $0x4a8] sm:$0xff]
    %v1345 = vld [vmem:[#allocation4 + $0x4b0] sm:$0xff]
    %v1346 = vld [vmem:[#allocation4 + $0x4b8] sm:$0xff]
    %v1347 = vld [vmem:[#allocation4 + $0x4c0] sm:$0xff]
    %v1348 = vld [vmem:[#allocation4 + $0x4c8] sm:$0xff]
    %v1349 = vld [vmem:[#allocation4 + $0x4d0] sm:$0xff]
    %v1350 = vld [vmem:[#allocation4 + $0x4d8] sm:$0xff]
    %v1351 = vld [vmem:[#allocation4 + $0x4e0] sm:$0xff]
    %v1352 = vld [vmem:[#allocation4 + $0x4e8] sm:$0xff]
    %v1353 = vld [vmem:[#allocation4 + $0x4f0] sm:$0xff]
    %v1354 = vld [vmem:[#allocation4 + $0x4f8] sm:$0xff]
    %v1355 = vld [vmem:[#allocation4 + $0x500] sm:$0xff]
    %v1356 = vld [vmem:[#allocation4 + $0x508] sm:$0xff]
    %v1357 = vld [vmem:[#allocation4 + $0x510] sm:$0xff]
    %v1358 = vld [vmem:[#allocation4 + $0x518] sm:$0xff]
    %v1359 = vld [vmem:[#allocation4 + $0x520] sm:$0xff]
    %v1360 = vld [vmem:[#allocation4 + $0x528] sm:$0xff]
    %v1361 = vld [vmem:[#allocation4 + $0x530] sm:$0xff]
    %v1362 = vld [vmem:[#allocation4 + $0x538] sm:$0xff]
    %v1363 = vld [vmem:[#allocation4 + $0x540] sm:$0xff]
    %v1364 = vld [vmem:[#allocation4 + $0x548] sm:$0xff]
    %v1365 = vld [vmem:[#allocation4 + $0x550] sm:$0xff]
    %v1366 = vld [vmem:[#allocation4 + $0x558] sm:$0xff]
    %v1367 = vld [vmem:[#allocation4 + $0x560] sm:$0xff]
    %v1368 = vld [vmem:[#allocation4 + $0x568] sm:$0xff]
    %v1369 = vld [vmem:[#allocation4 + $0x570] sm:$0xff]
    %v1370 = vld [vmem:[#allocation4 + $0x578] sm:$0xff]
    %v1371 = vld [vmem:[#allocation4 + $0x580] sm:$0xff]
    %v1372 = vld [vmem:[#allocation4 + $0x588] sm:$0xff]
    %v1373 = vld [vmem:[#allocation4 + $0x590] sm:$0xff]
    %v1374 = vld [vmem:[#allocation4 + $0x598] sm:$0xff]
    %v1375 = vld [vmem:[#allocation4 + $0x5a0] sm:$0xff]
    %v1376 = vld [vmem:[#allocation4 + $0x5a8] sm:$0xff]
    %v1377 = vld [vmem:[#allocation4 + $0x5b0] sm:$0xff]
    %v1378 = vld [vmem:[#allocation4 + $0x5b8] sm:$0xff]
    %v1379 = vld [vmem:[#allocation4 + $0x5c0] sm:$0xff]
    %v1380 = vld [vmem:[#allocation4 + $0x5c8] sm:$0xff]
    %v1381 = vld [vmem:[#allocation4 + $0x5d0] sm:$0xff]
    %v1382 = vld [vmem:[#allocation4 + $0x5d8] sm:$0xff]
    %v1383 = vld [vmem:[#allocation4 + $0x5e0] sm:$0xff]
    %v1384 = vld [vmem:[#allocation4 + $0x5e8] sm:$0xff]
    %v1385 = vld [vmem:[#allocation4 + $0x5f0] sm:$0xff]
    %v1386 = vld [vmem:[#allocation4 + $0x5f8] sm:$0xff]
    %v1387 = vld [vmem:[#allocation4 + $0x600] sm:$0xff]
    %v1388 = vld [vmem:[#allocation4 + $0x608] sm:$0xff]
    %v1389 = vld [vmem:[#allocation4 + $0x610] sm:$0xff]
    %v1390 = vld [vmem:[#allocation4 + $0x618] sm:$0xff]
    %v1391 = vld [vmem:[#allocation4 + $0x620] sm:$0xff]
    %v1392 = vld [vmem:[#allocation4 + $0x628] sm:$0xff]
    %v1393 = vld [vmem:[#allocation4 + $0x630] sm:$0xff]
    %v1394 = vld [vmem:[#allocation4 + $0x638] sm:$0xff]
    %v1395 = vld [vmem:[#allocation4 + $0x640] sm:$0xff]
    %v1396 = vld [vmem:[#allocation4 + $0x648] sm:$0xff]
    %v1397 = vld [vmem:[#allocation4 + $0x650] sm:$0xff]
    %v1398 = vld [vmem:[#allocation4 + $0x658] sm:$0xff]
    %v1399 = vld [vmem:[#allocation4 + $0x660] sm:$0xff]
    %v1400 = vld [vmem:[#allocation4 + $0x668] sm:$0xff]
    %v1401 = vld [vmem:[#allocation4 + $0x670] sm:$0xff]
    %v1402 = vld [vmem:[#allocation4 + $0x678] sm:$0xff]
    %v1403 = vld [vmem:[#allocation4 + $0x680] sm:$0xff]
    %v1404 = vld [vmem:[#allocation4 + $0x688] sm:$0xff]
    %v1405 = vld [vmem:[#allocation4 + $0x690] sm:$0xff]
    %v1406 = vld [vmem:[#allocation4 + $0x698] sm:$0xff]
    %v1407 = vld [vmem:[#allocation4 + $0x6a0] sm:$0xff]
    %v1408 = vld [vmem:[#allocation4 + $0x6a8] sm:$0xff]
    %v1409 = vld [vmem:[#allocation4 + $0x6b0] sm:$0xff]
    %v1410 = vld [vmem:[#allocation4 + $0x6b8] sm:$0xff]
    %v1411 = vld [vmem:[#allocation4 + $0x6c0] sm:$0xff]
    %v1412 = vld [vmem:[#allocation4 + $0x6c8] sm:$0xff]
    %v1413 = vld [vmem:[#allocation4 + $0x6d0] sm:$0xff]
    %v1414 = vld [vmem:[#allocation4 + $0x6d8] sm:$0xff]
    %v1415 = vld [vmem:[#allocation4 + $0x6e0] sm:$0xff]
    %v1416 = vld [vmem:[#allocation4 + $0x6e8] sm:$0xff]
    %v1417 = vld [vmem:[#allocation4 + $0x6f0] sm:$0xff]
    %v1418 = vld [vmem:[#allocation4 + $0x6f8] sm:$0xff]
    %v1419 = vld [vmem:[#allocation4 + $0x700] sm:$0xff]
    %v1420 = vld [vmem:[#allocation4 + $0x708] sm:$0xff]
    %v1421 = vld [vmem:[#allocation4 + $0x710] sm:$0xff]
    %v1422 = vld [vmem:[#allocation4 + $0x718] sm:$0xff]
    %v1423 = vld [vmem:[#allocation4 + $0x720] sm:$0xff]
    %v1424 = vld [vmem:[#allocation4 + $0x728] sm:$0xff]
    %v1425 = vld [vmem:[#allocation4 + $0x730] sm:$0xff]
    %v1426 = vld [vmem:[#allocation4 + $0x738] sm:$0xff]
    %v1427 = vld [vmem:[#allocation4 + $0x740] sm:$0xff]
    %v1428 = vld [vmem:[#allocation4 + $0x748] sm:$0xff]
    %v1429 = vld [vmem:[#allocation4 + $0x750] sm:$0xff]
    %v1430 = vld [vmem:[#allocation4 + $0x758] sm:$0xff]
    %v1431 = vld [vmem:[#allocation4 + $0x760] sm:$0xff]
    %v1432 = vld [vmem:[#allocation4 + $0x768] sm:$0xff]
    %v1433 = vld [vmem:[#allocation4 + $0x770] sm:$0xff]
    %v1434 = vld [vmem:[#allocation4 + $0x778] sm:$0xff]
    %v1435 = vld [vmem:[#allocation4 + $0x780] sm:$0xff]
    %v1436 = vld [vmem:[#allocation4 + $0x788] sm:$0xff]
    %v1437 = vld [vmem:[#allocation4 + $0x790] sm:$0xff]
    %v1438 = vld [vmem:[#allocation4 + $0x798] sm:$0xff]
    %v1439 = vld [vmem:[#allocation4 + $0x7a0] sm:$0xff]
    %v1440 = vld [vmem:[#allocation4 + $0x7a8] sm:$0xff]
    %v1441 = vld [vmem:[#allocation4 + $0x7b0] sm:$0xff]
    %v1442 = vld [vmem:[#allocation4 + $0x7b8] sm:$0xff]
    %v1443 = vld [vmem:[#allocation4 + $0x7c0] sm:$0xff]
    %v1444 = vld [vmem:[#allocation4 + $0x7c8] sm:$0xff]
    %v1445 = vld [vmem:[#allocation4 + $0x7d0] sm:$0xff]
    %v1446 = vld [vmem:[#allocation4 + $0x7d8] sm:$0xff]
    %v1447 = vld [vmem:[#allocation4 + $0x7e0] sm:$0xff]
    %v1448 = vld [vmem:[#allocation4 + $0x7e8] sm:$0xff]
    %v1449 = vld [vmem:[#allocation4 + $0x7f0] sm:$0xff]
    %v1450 = vld [vmem:[#allocation4 + $0x7f8] sm:$0xff]
    %v1707 = vunpack.c.l.b16 %v1195
    %v1708 = vunpack.c.h.b16 %v1195
    %v1709 = vunpack.c.l.b16 %v1196
    %v1710 = vunpack.c.h.b16 %v1196
    %v1711 = vunpack.c.l.b16 %v1197
    %v1712 = vunpack.c.h.b16 %v1197
    %v1713 = vunpack.c.l.b16 %v1198
    %v1714 = vunpack.c.h.b16 %v1198
    %v1715 = vunpack.c.l.b16 %v1199
    %v1716 = vunpack.c.h.b16 %v1199
    %v1717 = vunpack.c.l.b16 %v1200
    %v1718 = vunpack.c.h.b16 %v1200
    %v1719 = vunpack.c.l.b16 %v1201
    %v1720 = vunpack.c.h.b16 %v1201
    %v1721 = vunpack.c.l.b16 %v1202
    %v1722 = vunpack.c.h.b16 %v1202
    %v1723 = vunpack.c.l.b16 %v1203
    %v1724 = vunpack.c.h.b16 %v1203
    %v1725 = vunpack.c.l.b16 %v1204
    %v1726 = vunpack.c.h.b16 %v1204
    %v1727 = vunpack.c.l.b16 %v1205
    %v1728 = vunpack.c.h.b16 %v1205
    %v1729 = vunpack.c.l.b16 %v1206
    %v1730 = vunpack.c.h.b16 %v1206
    %v1731 = vunpack.c.l.b16 %v1207
    %v1732 = vunpack.c.h.b16 %v1207
    %v1733 = vunpack.c.l.b16 %v1208
    %v1734 = vunpack.c.h.b16 %v1208
    %v1735 = vunpack.c.l.b16 %v1209
    %v1736 = vunpack.c.h.b16 %v1209
    %v1737 = vunpack.c.l.b16 %v1210
    %v1738 = vunpack.c.h.b16 %v1210
    %v1739 = vunpack.c.l.b16 %v1211
    %v1740 = vunpack.c.h.b16 %v1211
    %v1741 = vunpack.c.l.b16 %v1212
    %v1742 = vunpack.c.h.b16 %v1212
    %v1743 = vunpack.c.l.b16 %v1213
    %v1744 = vunpack.c.h.b16 %v1213
    %v1745 = vunpack.c.l.b16 %v1214
    %v1746 = vunpack.c.h.b16 %v1214
    %v1747 = vunpack.c.l.b16 %v1215
    %v1748 = vunpack.c.h.b16 %v1215
    %v1749 = vunpack.c.l.b16 %v1216
    %v1750 = vunpack.c.h.b16 %v1216
    %v1751 = vunpack.c.l.b16 %v1217
    %v1752 = vunpack.c.h.b16 %v1217
    %v1753 = vunpack.c.l.b16 %v1218
    %v1754 = vunpack.c.h.b16 %v1218
    %v1755 = vunpack.c.l.b16 %v1219
    %v1756 = vunpack.c.h.b16 %v1219
    %v1757 = vunpack.c.l.b16 %v1220
    %v1758 = vunpack.c.h.b16 %v1220
    %v1759 = vunpack.c.l.b16 %v1221
    %v1760 = vunpack.c.h.b16 %v1221
    %v1761 = vunpack.c.l.b16 %v1222
    %v1762 = vunpack.c.h.b16 %v1222
    %v1763 = vunpack.c.l.b16 %v1223
    %v1764 = vunpack.c.h.b16 %v1223
    %v1765 = vunpack.c.l.b16 %v1224
    %v1766 = vunpack.c.h.b16 %v1224
    %v1767 = vunpack.c.l.b16 %v1225
    %v1768 = vunpack.c.h.b16 %v1225
    %v1769 = vunpack.c.l.b16 %v1226
    %v1770 = vunpack.c.h.b16 %v1226
    %v1771 = vunpack.c.l.b16 %v1227
    %v1772 = vunpack.c.h.b16 %v1227
    %v1773 = vunpack.c.l.b16 %v1228
    %v1774 = vunpack.c.h.b16 %v1228
    %v1775 = vunpack.c.l.b16 %v1229
    %v1776 = vunpack.c.h.b16 %v1229
    %v1777 = vunpack.c.l.b16 %v1230
    %v1778 = vunpack.c.h.b16 %v1230
    %v1779 = vunpack.c.l.b16 %v1231
    %v1780 = vunpack.c.h.b16 %v1231
    %v1781 = vunpack.c.l.b16 %v1232
    %v1782 = vunpack.c.h.b16 %v1232
    %v1783 = vunpack.c.l.b16 %v1233
    %v1784 = vunpack.c.h.b16 %v1233
    %v1785 = vunpack.c.l.b16 %v1234
    %v1786 = vunpack.c.h.b16 %v1234
    %v1787 = vunpack.c.l.b16 %v1235
    %v1788 = vunpack.c.h.b16 %v1235
    %v1789 = vunpack.c.l.b16 %v1236
    %v1790 = vunpack.c.h.b16 %v1236
    %v1791 = vunpack.c.l.b16 %v1237
    %v1792 = vunpack.c.h.b16 %v1237
    %v1793 = vunpack.c.l.b16 %v1238
    %v1794 = vunpack.c.h.b16 %v1238
    %v1795 = vunpack.c.l.b16 %v1239
    %v1796 = vunpack.c.h.b16 %v1239
    %v1797 = vunpack.c.l.b16 %v1240
    %v1798 = vunpack.c.h.b16 %v1240
    %v1799 = vunpack.c.l.b16 %v1241
    %v1800 = vunpack.c.h.b16 %v1241
    %v1801 = vunpack.c.l.b16 %v1242
    %v1802 = vunpack.c.h.b16 %v1242
    %v1803 = vunpack.c.l.b16 %v1243
    %v1804 = vunpack.c.h.b16 %v1243
    %v1805 = vunpack.c.l.b16 %v1244
    %v1806 = vunpack.c.h.b16 %v1244
    %v1807 = vunpack.c.l.b16 %v1245
    %v1808 = vunpack.c.h.b16 %v1245
    %v1809 = vunpack.c.l.b16 %v1246
    %v1810 = vunpack.c.h.b16 %v1246
    %v1811 = vunpack.c.l.b16 %v1247
    %v1812 = vunpack.c.h.b16 %v1247
    %v1813 = vunpack.c.l.b16 %v1248
    %v1814 = vunpack.c.h.b16 %v1248
    %v1815 = vunpack.c.l.b16 %v1249
    %v1816 = vunpack.c.h.b16 %v1249
    %v1817 = vunpack.c.l.b16 %v1250
    %v1818 = vunpack.c.h.b16 %v1250
    %v1819 = vunpack.c.l.b16 %v1251
    %v1820 = vunpack.c.h.b16 %v1251
    %v1821 = vunpack.c.l.b16 %v1252
    %v1822 = vunpack.c.h.b16 %v1252
    %v1823 = vunpack.c.l.b16 %v1253
    %v1824 = vunpack.c.h.b16 %v1253
    %v1825 = vunpack.c.l.b16 %v1254
    %v1826 = vunpack.c.h.b16 %v1254
    %v1827 = vunpack.c.l.b16 %v1255
    %v1828 = vunpack.c.h.b16 %v1255
    %v1829 = vunpack.c.l.b16 %v1256
    %v1830 = vunpack.c.h.b16 %v1256
    %v1831 = vunpack.c.l.b16 %v1257
    %v1832 = vunpack.c.h.b16 %v1257
    %v1833 = vunpack.c.l.b16 %v1258
    %v1834 = vunpack.c.h.b16 %v1258
    %v1835 = vunpack.c.l.b16 %v1259
    %v1836 = vunpack.c.h.b16 %v1259
    %v1837 = vunpack.c.l.b16 %v1260
    %v1838 = vunpack.c.h.b16 %v1260
    %v1839 = vunpack.c.l.b16 %v1261
    %v1840 = vunpack.c.h.b16 %v1261
    %v1841 = vunpack.c.l.b16 %v1262
    %v1842 = vunpack.c.h.b16 %v1262
    %v1843 = vunpack.c.l.b16 %v1263
    %v1844 = vunpack.c.h.b16 %v1263
    %v1845 = vunpack.c.l.b16 %v1264
    %v1846 = vunpack.c.h.b16 %v1264
    %v1847 = vunpack.c.l.b16 %v1265
    %v1848 = vunpack.c.h.b16 %v1265
    %v1849 = vunpack.c.l.b16 %v1266
    %v1850 = vunpack.c.h.b16 %v1266
    %v1851 = vunpack.c.l.b16 %v1267
    %v1852 = vunpack.c.h.b16 %v1267
    %v1853 = vunpack.c.l.b16 %v1268
    %v1854 = vunpack.c.h.b16 %v1268
    %v1855 = vunpack.c.l.b16 %v1269
    %v1856 = vunpack.c.h.b16 %v1269
    %v1857 = vunpack.c.l.b16 %v1270
    %v1858 = vunpack.c.h.b16 %v1270
    %v1859 = vunpack.c.l.b16 %v1271
    %v1860 = vunpack.c.h.b16 %v1271
    %v1861 = vunpack.c.l.b16 %v1272
    %v1862 = vunpack.c.h.b16 %v1272
    %v1863 = vunpack.c.l.b16 %v1273
    %v1864 = vunpack.c.h.b16 %v1273
    %v1865 = vunpack.c.l.b16 %v1274
    %v1866 = vunpack.c.h.b16 %v1274
    %v1867 = vunpack.c.l.b16 %v1275
    %v1868 = vunpack.c.h.b16 %v1275
    %v1869 = vunpack.c.l.b16 %v1276
    %v1870 = vunpack.c.h.b16 %v1276
    %v1871 = vunpack.c.l.b16 %v1277
    %v1872 = vunpack.c.h.b16 %v1277
    %v1873 = vunpack.c.l.b16 %v1278
    %v1874 = vunpack.c.h.b16 %v1278
    %v1875 = vunpack.c.l.b16 %v1279
    %v1876 = vunpack.c.h.b16 %v1279
    %v1877 = vunpack.c.l.b16 %v1280
    %v1878 = vunpack.c.h.b16 %v1280
    %v1879 = vunpack.c.l.b16 %v1281
    %v1880 = vunpack.c.h.b16 %v1281
    %v1881 = vunpack.c.l.b16 %v1282
    %v1882 = vunpack.c.h.b16 %v1282
    %v1883 = vunpack.c.l.b16 %v1283
    %v1884 = vunpack.c.h.b16 %v1283
    %v1885 = vunpack.c.l.b16 %v1284
    %v1886 = vunpack.c.h.b16 %v1284
    %v1887 = vunpack.c.l.b16 %v1285
    %v1888 = vunpack.c.h.b16 %v1285
    %v1889 = vunpack.c.l.b16 %v1286
    %v1890 = vunpack.c.h.b16 %v1286
    %v1891 = vunpack.c.l.b16 %v1287
    %v1892 = vunpack.c.h.b16 %v1287
    %v1893 = vunpack.c.l.b16 %v1288
    %v1894 = vunpack.c.h.b16 %v1288
    %v1895 = vunpack.c.l.b16 %v1289
    %v1896 = vunpack.c.h.b16 %v1289
    %v1897 = vunpack.c.l.b16 %v1290
    %v1898 = vunpack.c.h.b16 %v1290
    %v1899 = vunpack.c.l.b16 %v1291
    %v1900 = vunpack.c.h.b16 %v1291
    %v1901 = vunpack.c.l.b16 %v1292
    %v1902 = vunpack.c.h.b16 %v1292
    %v1903 = vunpack.c.l.b16 %v1293
    %v1904 = vunpack.c.h.b16 %v1293
    %v1905 = vunpack.c.l.b16 %v1294
    %v1906 = vunpack.c.h.b16 %v1294
    %v1907 = vunpack.c.l.b16 %v1295
    %v1908 = vunpack.c.h.b16 %v1295
    %v1909 = vunpack.c.l.b16 %v1296
    %v1910 = vunpack.c.h.b16 %v1296
    %v1911 = vunpack.c.l.b16 %v1297
    %v1912 = vunpack.c.h.b16 %v1297
    %v1913 = vunpack.c.l.b16 %v1298
    %v1914 = vunpack.c.h.b16 %v1298
    %v1915 = vunpack.c.l.b16 %v1299
    %v1916 = vunpack.c.h.b16 %v1299
    %v1917 = vunpack.c.l.b16 %v1300
    %v1918 = vunpack.c.h.b16 %v1300
    %v1919 = vunpack.c.l.b16 %v1301
    %v1920 = vunpack.c.h.b16 %v1301
    %v1921 = vunpack.c.l.b16 %v1302
    %v1922 = vunpack.c.h.b16 %v1302
    %v1923 = vunpack.c.l.b16 %v1303
    %v1924 = vunpack.c.h.b16 %v1303
    %v1925 = vunpack.c.l.b16 %v1304
    %v1926 = vunpack.c.h.b16 %v1304
    %v1927 = vunpack.c.l.b16 %v1305
    %v1928 = vunpack.c.h.b16 %v1305
    %v1929 = vunpack.c.l.b16 %v1306
    %v1930 = vunpack.c.h.b16 %v1306
    %v1931 = vunpack.c.l.b16 %v1307
    %v1932 = vunpack.c.h.b16 %v1307
    %v1933 = vunpack.c.l.b16 %v1308
    %v1934 = vunpack.c.h.b16 %v1308
    %v1935 = vunpack.c.l.b16 %v1309
    %v1936 = vunpack.c.h.b16 %v1309
    %v1937 = vunpack.c.l.b16 %v1310
    %v1938 = vunpack.c.h.b16 %v1310
    %v1939 = vunpack.c.l.b16 %v1311
    %v1940 = vunpack.c.h.b16 %v1311
    %v1941 = vunpack.c.l.b16 %v1312
    %v1942 = vunpack.c.h.b16 %v1312
    %v1943 = vunpack.c.l.b16 %v1313
    %v1944 = vunpack.c.h.b16 %v1313
    %v1945 = vunpack.c.l.b16 %v1314
    %v1946 = vunpack.c.h.b16 %v1314
    %v1947 = vunpack.c.l.b16 %v1315
    %v1948 = vunpack.c.h.b16 %v1315
    %v1949 = vunpack.c.l.b16 %v1316
    %v1950 = vunpack.c.h.b16 %v1316
    %v1951 = vunpack.c.l.b16 %v1317
    %v1952 = vunpack.c.h.b16 %v1317
    %v1953 = vunpack.c.l.b16 %v1318
    %v1954 = vunpack.c.h.b16 %v1318
    %v1955 = vunpack.c.l.b16 %v1319
    %v1956 = vunpack.c.h.b16 %v1319
    %v1957 = vunpack.c.l.b16 %v1320
    %v1958 = vunpack.c.h.b16 %v1320
    %v1959 = vunpack.c.l.b16 %v1321
    %v1960 = vunpack.c.h.b16 %v1321
    %v1961 = vunpack.c.l.b16 %v1322
    %v1962 = vunpack.c.h.b16 %v1322
    %v1963 = vunpack.c.l.b16 %v1323
    %v1964 = vunpack.c.h.b16 %v1323
    %v1965 = vunpack.c.l.b16 %v1324
    %v1966 = vunpack.c.h.b16 %v1324
    %v1967 = vunpack.c.l.b16 %v1325
    %v1968 = vunpack.c.h.b16 %v1325
    %v1969 = vunpack.c.l.b16 %v1326
    %v1970 = vunpack.c.h.b16 %v1326
    %v1971 = vunpack.c.l.b16 %v1327
    %v1972 = vunpack.c.h.b16 %v1327
    %v1973 = vunpack.c.l.b16 %v1328
    %v1974 = vunpack.c.h.b16 %v1328
    %v1975 = vunpack.c.l.b16 %v1329
    %v1976 = vunpack.c.h.b16 %v1329
    %v1977 = vunpack.c.l.b16 %v1330
    %v1978 = vunpack.c.h.b16 %v1330
    %v1979 = vunpack.c.l.b16 %v1331
    %v1980 = vunpack.c.h.b16 %v1331
    %v1981 = vunpack.c.l.b16 %v1332
    %v1982 = vunpack.c.h.b16 %v1332
    %v1983 = vunpack.c.l.b16 %v1333
    %v1984 = vunpack.c.h.b16 %v1333
    %v1985 = vunpack.c.l.b16 %v1334
    %v1986 = vunpack.c.h.b16 %v1334
    %v1987 = vunpack.c.l.b16 %v1335
    %v1988 = vunpack.c.h.b16 %v1335
    %v1989 = vunpack.c.l.b16 %v1336
    %v1990 = vunpack.c.h.b16 %v1336
    %v1991 = vunpack.c.l.b16 %v1337
    %v1992 = vunpack.c.h.b16 %v1337
    %v1993 = vunpack.c.l.b16 %v1338
    %v1994 = vunpack.c.h.b16 %v1338
    %v1995 = vunpack.c.l.b16 %v1339
    %v1996 = vunpack.c.h.b16 %v1339
    %v1997 = vunpack.c.l.b16 %v1340
    %v1998 = vunpack.c.h.b16 %v1340
    %v1999 = vunpack.c.l.b16 %v1341
    %v2000 = vunpack.c.h.b16 %v1341
    %v2001 = vunpack.c.l.b16 %v1342
    %v2002 = vunpack.c.h.b16 %v1342
    %v2003 = vunpack.c.l.b16 %v1343
    %v2004 = vunpack.c.h.b16 %v1343
    %v2005 = vunpack.c.l.b16 %v1344
    %v2006 = vunpack.c.h.b16 %v1344
    %v2007 = vunpack.c.l.b16 %v1345
    %v2008 = vunpack.c.h.b16 %v1345
    %v2009 = vunpack.c.l.b16 %v1346
    %v2010 = vunpack.c.h.b16 %v1346
    %v2011 = vunpack.c.l.b16 %v1347
    %v2012 = vunpack.c.h.b16 %v1347
    %v2013 = vunpack.c.l.b16 %v1348
    %v2014 = vunpack.c.h.b16 %v1348
    %v2015 = vunpack.c.l.b16 %v1349
    %v2016 = vunpack.c.h.b16 %v1349
    %v2017 = vunpack.c.l.b16 %v1350
    %v2018 = vunpack.c.h.b16 %v1350
    %v2019 = vunpack.c.l.b16 %v1351
    %v2020 = vunpack.c.h.b16 %v1351
    %v2021 = vunpack.c.l.b16 %v1352
    %v2022 = vunpack.c.h.b16 %v1352
    %v2023 = vunpack.c.l.b16 %v1353
    %v2024 = vunpack.c.h.b16 %v1353
    %v2025 = vunpack.c.l.b16 %v1354
    %v2026 = vunpack.c.h.b16 %v1354
    %v2027 = vunpack.c.l.b16 %v1355
    %v2028 = vunpack.c.h.b16 %v1355
    %v2029 = vunpack.c.l.b16 %v1356
    %v2030 = vunpack.c.h.b16 %v1356
    %v2031 = vunpack.c.l.b16 %v1357
    %v2032 = vunpack.c.h.b16 %v1357
    %v2033 = vunpack.c.l.b16 %v1358
    %v2034 = vunpack.c.h.b16 %v1358
    %v2035 = vunpack.c.l.b16 %v1359
    %v2036 = vunpack.c.h.b16 %v1359
    %v2037 = vunpack.c.l.b16 %v1360
    %v2038 = vunpack.c.h.b16 %v1360
    %v2039 = vunpack.c.l.b16 %v1361
    %v2040 = vunpack.c.h.b16 %v1361
    %v2041 = vunpack.c.l.b16 %v1362
    %v2042 = vunpack.c.h.b16 %v1362
    %v2043 = vunpack.c.l.b16 %v1363
    %v2044 = vunpack.c.h.b16 %v1363
    %v2045 = vunpack.c.l.b16 %v1364
    %v2046 = vunpack.c.h.b16 %v1364
    %v2047 = vunpack.c.l.b16 %v1365
    %v2048 = vunpack.c.h.b16 %v1365
    %v2049 = vunpack.c.l.b16 %v1366
    %v2050 = vunpack.c.h.b16 %v1366
    %v2051 = vunpack.c.l.b16 %v1367
    %v2052 = vunpack.c.h.b16 %v1367
    %v2053 = vunpack.c.l.b16 %v1368
    %v2054 = vunpack.c.h.b16 %v1368
    %v2055 = vunpack.c.l.b16 %v1369
    %v2056 = vunpack.c.h.b16 %v1369
    %v2057 = vunpack.c.l.b16 %v1370
    %v2058 = vunpack.c.h.b16 %v1370
    %v2059 = vunpack.c.l.b16 %v1371
    %v2060 = vunpack.c.h.b16 %v1371
    %v2061 = vunpack.c.l.b16 %v1372
    %v2062 = vunpack.c.h.b16 %v1372
    %v2063 = vunpack.c.l.b16 %v1373
    %v2064 = vunpack.c.h.b16 %v1373
    %v2065 = vunpack.c.l.b16 %v1374
    %v2066 = vunpack.c.h.b16 %v1374
    %v2067 = vunpack.c.l.b16 %v1375
    %v2068 = vunpack.c.h.b16 %v1375
    %v2069 = vunpack.c.l.b16 %v1376
    %v2070 = vunpack.c.h.b16 %v1376
    %v2071 = vunpack.c.l.b16 %v1377
    %v2072 = vunpack.c.h.b16 %v1377
    %v2073 = vunpack.c.l.b16 %v1378
    %v2074 = vunpack.c.h.b16 %v1378
    %v2075 = vunpack.c.l.b16 %v1379
    %v2076 = vunpack.c.h.b16 %v1379
    %v2077 = vunpack.c.l.b16 %v1380
    %v2078 = vunpack.c.h.b16 %v1380
    %v2079 = vunpack.c.l.b16 %v1381
    %v2080 = vunpack.c.h.b16 %v1381
    %v2081 = vunpack.c.l.b16 %v1382
    %v2082 = vunpack.c.h.b16 %v1382
    %v2083 = vunpack.c.l.b16 %v1383
    %v2084 = vunpack.c.h.b16 %v1383
    %v2085 = vunpack.c.l.b16 %v1384
    %v2086 = vunpack.c.h.b16 %v1384
    %v2087 = vunpack.c.l.b16 %v1385
    %v2088 = vunpack.c.h.b16 %v1385
    %v2089 = vunpack.c.l.b16 %v1386
    %v2090 = vunpack.c.h.b16 %v1386
    %v2091 = vunpack.c.l.b16 %v1387
    %v2092 = vunpack.c.h.b16 %v1387
    %v2093 = vunpack.c.l.b16 %v1388
    %v2094 = vunpack.c.h.b16 %v1388
    %v2095 = vunpack.c.l.b16 %v1389
    %v2096 = vunpack.c.h.b16 %v1389
    %v2097 = vunpack.c.l.b16 %v1390
    %v2098 = vunpack.c.h.b16 %v1390
    %v2099 = vunpack.c.l.b16 %v1391
    %v2100 = vunpack.c.h.b16 %v1391
    %v2101 = vunpack.c.l.b16 %v1392
    %v2102 = vunpack.c.h.b16 %v1392
    %v2103 = vunpack.c.l.b16 %v1393
    %v2104 = vunpack.c.h.b16 %v1393
    %v2105 = vunpack.c.l.b16 %v1394
    %v2106 = vunpack.c.h.b16 %v1394
    %v2107 = vunpack.c.l.b16 %v1395
    %v2108 = vunpack.c.h.b16 %v1395
    %v2109 = vunpack.c.l.b16 %v1396
    %v2110 = vunpack.c.h.b16 %v1396
    %v2111 = vunpack.c.l.b16 %v1397
    %v2112 = vunpack.c.h.b16 %v1397
    %v2113 = vunpack.c.l.b16 %v1398
    %v2114 = vunpack.c.h.b16 %v1398
    %v2115 = vunpack.c.l.b16 %v1399
    %v2116 = vunpack.c.h.b16 %v1399
    %v2117 = vunpack.c.l.b16 %v1400
    %v2118 = vunpack.c.h.b16 %v1400
    %v2119 = vunpack.c.l.b16 %v1401
    %v2120 = vunpack.c.h.b16 %v1401
    %v2121 = vunpack.c.l.b16 %v1402
    %v2122 = vunpack.c.h.b16 %v1402
    %v2123 = vunpack.c.l.b16 %v1403
    %v2124 = vunpack.c.h.b16 %v1403
    %v2125 = vunpack.c.l.b16 %v1404
    %v2126 = vunpack.c.h.b16 %v1404
    %v2127 = vunpack.c.l.b16 %v1405
    %v2128 = vunpack.c.h.b16 %v1405
    %v2129 = vunpack.c.l.b16 %v1406
    %v2130 = vunpack.c.h.b16 %v1406
    %v2131 = vunpack.c.l.b16 %v1407
    %v2132 = vunpack.c.h.b16 %v1407
    %v2133 = vunpack.c.l.b16 %v1408
    %v2134 = vunpack.c.h.b16 %v1408
    %v2135 = vunpack.c.l.b16 %v1409
    %v2136 = vunpack.c.h.b16 %v1409
    %v2137 = vunpack.c.l.b16 %v1410
    %v2138 = vunpack.c.h.b16 %v1410
    %v2139 = vunpack.c.l.b16 %v1411
    %v2140 = vunpack.c.h.b16 %v1411
    %v2141 = vunpack.c.l.b16 %v1412
    %v2142 = vunpack.c.h.b16 %v1412
    %v2143 = vunpack.c.l.b16 %v1413
    %v2144 = vunpack.c.h.b16 %v1413
    %v2145 = vunpack.c.l.b16 %v1414
    %v2146 = vunpack.c.h.b16 %v1414
    %v2147 = vunpack.c.l.b16 %v1415
    %v2148 = vunpack.c.h.b16 %v1415
    %v2149 = vunpack.c.l.b16 %v1416
    %v2150 = vunpack.c.h.b16 %v1416
    %v2151 = vunpack.c.l.b16 %v1417
    %v2152 = vunpack.c.h.b16 %v1417
    %v2153 = vunpack.c.l.b16 %v1418
    %v2154 = vunpack.c.h.b16 %v1418
    %v2155 = vunpack.c.l.b16 %v1419
    %v2156 = vunpack.c.h.b16 %v1419
    %v2157 = vunpack.c.l.b16 %v1420
    %v2158 = vunpack.c.h.b16 %v1420
    %v2159 = vunpack.c.l.b16 %v1421
    %v2160 = vunpack.c.h.b16 %v1421
    %v2161 = vunpack.c.l.b16 %v1422
    %v2162 = vunpack.c.h.b16 %v1422
    %v2163 = vunpack.c.l.b16 %v1423
    %v2164 = vunpack.c.h.b16 %v1423
    %v2165 = vunpack.c.l.b16 %v1424
    %v2166 = vunpack.c.h.b16 %v1424
    %v2167 = vunpack.c.l.b16 %v1425
    %v2168 = vunpack.c.h.b16 %v1425
    %v2169 = vunpack.c.l.b16 %v1426
    %v2170 = vunpack.c.h.b16 %v1426
    %v2171 = vunpack.c.l.b16 %v1427
    %v2172 = vunpack.c.h.b16 %v1427
    %v2173 = vunpack.c.l.b16 %v1428
    %v2174 = vunpack.c.h.b16 %v1428
    %v2175 = vunpack.c.l.b16 %v1429
    %v2176 = vunpack.c.h.b16 %v1429
    %v2177 = vunpack.c.l.b16 %v1430
    %v2178 = vunpack.c.h.b16 %v1430
    %v2179 = vunpack.c.l.b16 %v1431
    %v2180 = vunpack.c.h.b16 %v1431
    %v2181 = vunpack.c.l.b16 %v1432
    %v2182 = vunpack.c.h.b16 %v1432
    %v2183 = vunpack.c.l.b16 %v1433
    %v2184 = vunpack.c.h.b16 %v1433
    %v2185 = vunpack.c.l.b16 %v1434
    %v2186 = vunpack.c.h.b16 %v1434
    %v2187 = vunpack.c.l.b16 %v1435
    %v2188 = vunpack.c.h.b16 %v1435
    %v2189 = vunpack.c.l.b16 %v1436
    %v2190 = vunpack.c.h.b16 %v1436
    %v2191 = vunpack.c.l.b16 %v1437
    %v2192 = vunpack.c.h.b16 %v1437
    %v2193 = vunpack.c.l.b16 %v1438
    %v2194 = vunpack.c.h.b16 %v1438
    %v2195 = vunpack.c.l.b16 %v1439
    %v2196 = vunpack.c.h.b16 %v1439
    %v2197 = vunpack.c.l.b16 %v1440
    %v2198 = vunpack.c.h.b16 %v1440
    %v2199 = vunpack.c.l.b16 %v1441
    %v2200 = vunpack.c.h.b16 %v1441
    %v2201 = vunpack.c.l.b16 %v1442
    %v2202 = vunpack.c.h.b16 %v1442
    %v2203 = vunpack.c.l.b16 %v1443
    %v2204 = vunpack.c.h.b16 %v1443
    %v2205 = vunpack.c.l.b16 %v1444
    %v2206 = vunpack.c.h.b16 %v1444
    %v2207 = vunpack.c.l.b16 %v1445
    %v2208 = vunpack.c.h.b16 %v1445
    %v2209 = vunpack.c.l.b16 %v1446
    %v2210 = vunpack.c.h.b16 %v1446
    %v2211 = vunpack.c.l.b16 %v1447
    %v2212 = vunpack.c.h.b16 %v1447
    %v2213 = vunpack.c.l.b16 %v1448
    %v2214 = vunpack.c.h.b16 %v1448
    %v2215 = vunpack.c.l.b16 %v1449
    %v2216 = vunpack.c.h.b16 %v1449
    %v2217 = vunpack.c.l.b16 %v1450
    %v2218 = vunpack.c.h.b16 %v1450
    %v2219 = vpack.c.b16 %v1711, %v1707
    %v2220 = vpack.c.b16 %v1712, %v1708
    %v2221 = vpack.c.b16 %v1713, %v1709
    %v2222 = vpack.c.b16 %v1714, %v1710
    %v2223 = vpack.c.b16 %v1719, %v1715
    %v2224 = vpack.c.b16 %v1720, %v1716
    %v2225 = vpack.c.b16 %v1721, %v1717
    %v2226 = vpack.c.b16 %v1722, %v1718
    %v2227 = vpack.c.b16 %v1727, %v1723
    %v2228 = vpack.c.b16 %v1728, %v1724
    %v2229 = vpack.c.b16 %v1729, %v1725
    %v2230 = vpack.c.b16 %v1730, %v1726
    %v2231 = vpack.c.b16 %v1735, %v1731
    %v2232 = vpack.c.b16 %v1736, %v1732
    %v2233 = vpack.c.b16 %v1737, %v1733
    %v2234 = vpack.c.b16 %v1738, %v1734
    %v2235 = vpack.c.b16 %v1743, %v1739
    %v2236 = vpack.c.b16 %v1744, %v1740
    %v2237 = vpack.c.b16 %v1745, %v1741
    %v2238 = vpack.c.b16 %v1746, %v1742
    %v2239 = vpack.c.b16 %v1751, %v1747
    %v2240 = vpack.c.b16 %v1752, %v1748
    %v2241 = vpack.c.b16 %v1753, %v1749
    %v2242 = vpack.c.b16 %v1754, %v1750
    %v2243 = vpack.c.b16 %v1759, %v1755
    %v2244 = vpack.c.b16 %v1760, %v1756
    %v2245 = vpack.c.b16 %v1761, %v1757
    %v2246 = vpack.c.b16 %v1762, %v1758
    %v2247 = vpack.c.b16 %v1767, %v1763
    %v2248 = vpack.c.b16 %v1768, %v1764
    %v2249 = vpack.c.b16 %v1769, %v1765
    %v2250 = vpack.c.b16 %v1770, %v1766
    %v2251 = vpack.c.b16 %v1775, %v1771
    %v2252 = vpack.c.b16 %v1776, %v1772
    %v2253 = vpack.c.b16 %v1777, %v1773
    %v2254 = vpack.c.b16 %v1778, %v1774
    %v2255 = vpack.c.b16 %v1783, %v1779
    %v2256 = vpack.c.b16 %v1784, %v1780
    %v2257 = vpack.c.b16 %v1785, %v1781
    %v2258 = vpack.c.b16 %v1786, %v1782
    %v2259 = vpack.c.b16 %v1791, %v1787
    %v2260 = vpack.c.b16 %v1792, %v1788
    %v2261 = vpack.c.b16 %v1793, %v1789
    %v2262 = vpack.c.b16 %v1794, %v1790
    %v2263 = vpack.c.b16 %v1799, %v1795
    %v2264 = vpack.c.b16 %v1800, %v1796
    %v2265 = vpack.c.b16 %v1801, %v1797
    %v2266 = vpack.c.b16 %v1802, %v1798
    %v2267 = vpack.c.b16 %v1807, %v1803
    %v2268 = vpack.c.b16 %v1808, %v1804
    %v2269 = vpack.c.b16 %v1809, %v1805
    %v2270 = vpack.c.b16 %v1810, %v1806
    %v2271 = vpack.c.b16 %v1815, %v1811
    %v2272 = vpack.c.b16 %v1816, %v1812
    %v2273 = vpack.c.b16 %v1817, %v1813
    %v2274 = vpack.c.b16 %v1818, %v1814
    %v2275 = vpack.c.b16 %v1823, %v1819
    %v2276 = vpack.c.b16 %v1824, %v1820
    %v2277 = vpack.c.b16 %v1825, %v1821
    %v2278 = vpack.c.b16 %v1826, %v1822
    %v2279 = vpack.c.b16 %v1831, %v1827
    %v2280 = vpack.c.b16 %v1832, %v1828
    %v2281 = vpack.c.b16 %v1833, %v1829
    %v2282 = vpack.c.b16 %v1834, %v1830
    %v2283 = vpack.c.b16 %v1839, %v1835
    %v2284 = vpack.c.b16 %v1840, %v1836
    %v2285 = vpack.c.b16 %v1841, %v1837
    %v2286 = vpack.c.b16 %v1842, %v1838
    %v2287 = vpack.c.b16 %v1847, %v1843
    %v2288 = vpack.c.b16 %v1848, %v1844
    %v2289 = vpack.c.b16 %v1849, %v1845
    %v2290 = vpack.c.b16 %v1850, %v1846
    %v2291 = vpack.c.b16 %v1855, %v1851
    %v2292 = vpack.c.b16 %v1856, %v1852
    %v2293 = vpack.c.b16 %v1857, %v1853
    %v2294 = vpack.c.b16 %v1858, %v1854
    %v2295 = vpack.c.b16 %v1863, %v1859
    %v2296 = vpack.c.b16 %v1864, %v1860
    %v2297 = vpack.c.b16 %v1865, %v1861
    %v2298 = vpack.c.b16 %v1866, %v1862
    %v2299 = vpack.c.b16 %v1871, %v1867
    %v2300 = vpack.c.b16 %v1872, %v1868
    %v2301 = vpack.c.b16 %v1873, %v1869
    %v2302 = vpack.c.b16 %v1874, %v1870
    %v2303 = vpack.c.b16 %v1879, %v1875
    %v2304 = vpack.c.b16 %v1880, %v1876
    %v2305 = vpack.c.b16 %v1881, %v1877
    %v2306 = vpack.c.b16 %v1882, %v1878
    %v2307 = vpack.c.b16 %v1887, %v1883
    %v2308 = vpack.c.b16 %v1888, %v1884
    %v2309 = vpack.c.b16 %v1889, %v1885
    %v2310 = vpack.c.b16 %v1890, %v1886
    %v2311 = vpack.c.b16 %v1895, %v1891
    %v2312 = vpack.c.b16 %v1896, %v1892
    %v2313 = vpack.c.b16 %v1897, %v1893
    %v2314 = vpack.c.b16 %v1898, %v1894
    %v2315 = vpack.c.b16 %v1903, %v1899
    %v2316 = vpack.c.b16 %v1904, %v1900
    %v2317 = vpack.c.b16 %v1905, %v1901
    %v2318 = vpack.c.b16 %v1906, %v1902
    %v2319 = vpack.c.b16 %v1911, %v1907
    %v2320 = vpack.c.b16 %v1912, %v1908
    %v2321 = vpack.c.b16 %v1913, %v1909
    %v2322 = vpack.c.b16 %v1914, %v1910
    %v2323 = vpack.c.b16 %v1919, %v1915
    %v2324 = vpack.c.b16 %v1920, %v1916
    %v2325 = vpack.c.b16 %v1921, %v1917
    %v2326 = vpack.c.b16 %v1922, %v1918
    %v2327 = vpack.c.b16 %v1927, %v1923
    %v2328 = vpack.c.b16 %v1928, %v1924
    %v2329 = vpack.c.b16 %v1929, %v1925
    %v2330 = vpack.c.b16 %v1930, %v1926
    %v2331 = vpack.c.b16 %v1935, %v1931
    %v2332 = vpack.c.b16 %v1936, %v1932
    %v2333 = vpack.c.b16 %v1937, %v1933
    %v2334 = vpack.c.b16 %v1938, %v1934
    %v2335 = vpack.c.b16 %v1943, %v1939
    %v2336 = vpack.c.b16 %v1944, %v1940
    %v2337 = vpack.c.b16 %v1945, %v1941
    %v2338 = vpack.c.b16 %v1946, %v1942
    %v2339 = vpack.c.b16 %v1951, %v1947
    %v2340 = vpack.c.b16 %v1952, %v1948
    %v2341 = vpack.c.b16 %v1953, %v1949
    %v2342 = vpack.c.b16 %v1954, %v1950
    %v2343 = vpack.c.b16 %v1959, %v1955
    %v2344 = vpack.c.b16 %v1960, %v1956
    %v2345 = vpack.c.b16 %v1961, %v1957
    %v2346 = vpack.c.b16 %v1962, %v1958
    %v2347 = vpack.c.b16 %v1967, %v1963
    %v2348 = vpack.c.b16 %v1968, %v1964
    %v2349 = vpack.c.b16 %v1969, %v1965
    %v2350 = vpack.c.b16 %v1970, %v1966
    %v2351 = vpack.c.b16 %v1975, %v1971
    %v2352 = vpack.c.b16 %v1976, %v1972
    %v2353 = vpack.c.b16 %v1977, %v1973
    %v2354 = vpack.c.b16 %v1978, %v1974
    %v2355 = vpack.c.b16 %v1983, %v1979
    %v2356 = vpack.c.b16 %v1984, %v1980
    %v2357 = vpack.c.b16 %v1985, %v1981
    %v2358 = vpack.c.b16 %v1986, %v1982
    %v2359 = vpack.c.b16 %v1991, %v1987
    %v2360 = vpack.c.b16 %v1992, %v1988
    %v2361 = vpack.c.b16 %v1993, %v1989
    %v2362 = vpack.c.b16 %v1994, %v1990
    %v2363 = vpack.c.b16 %v1999, %v1995
    %v2364 = vpack.c.b16 %v2000, %v1996
    %v2365 = vpack.c.b16 %v2001, %v1997
    %v2366 = vpack.c.b16 %v2002, %v1998
    %v2367 = vpack.c.b16 %v2007, %v2003
    %v2368 = vpack.c.b16 %v2008, %v2004
    %v2369 = vpack.c.b16 %v2009, %v2005
    %v2370 = vpack.c.b16 %v2010, %v2006
    %v2371 = vpack.c.b16 %v2015, %v2011
    %v2372 = vpack.c.b16 %v2016, %v2012
    %v2373 = vpack.c.b16 %v2017, %v2013
    %v2374 = vpack.c.b16 %v2018, %v2014
    %v2375 = vpack.c.b16 %v2023, %v2019
    %v2376 = vpack.c.b16 %v2024, %v2020
    %v2377 = vpack.c.b16 %v2025, %v2021
    %v2378 = vpack.c.b16 %v2026, %v2022
    %v2379 = vpack.c.b16 %v2031, %v2027
    %v2380 = vpack.c.b16 %v2032, %v2028
    %v2381 = vpack.c.b16 %v2033, %v2029
    %v2382 = vpack.c.b16 %v2034, %v2030
    %v2383 = vpack.c.b16 %v2039, %v2035
    %v2384 = vpack.c.b16 %v2040, %v2036
    %v2385 = vpack.c.b16 %v2041, %v2037
    %v2386 = vpack.c.b16 %v2042, %v2038
    %v2387 = vpack.c.b16 %v2047, %v2043
    %v2388 = vpack.c.b16 %v2048, %v2044
    %v2389 = vpack.c.b16 %v2049, %v2045
    %v2390 = vpack.c.b16 %v2050, %v2046
    %v2391 = vpack.c.b16 %v2055, %v2051
    %v2392 = vpack.c.b16 %v2056, %v2052
    %v2393 = vpack.c.b16 %v2057, %v2053
    %v2394 = vpack.c.b16 %v2058, %v2054
    %v2395 = vpack.c.b16 %v2063, %v2059
    %v2396 = vpack.c.b16 %v2064, %v2060
    %v2397 = vpack.c.b16 %v2065, %v2061
    %v2398 = vpack.c.b16 %v2066, %v2062
    %v2399 = vpack.c.b16 %v2071, %v2067
    %v2400 = vpack.c.b16 %v2072, %v2068
    %v2401 = vpack.c.b16 %v2073, %v2069
    %v2402 = vpack.c.b16 %v2074, %v2070
    %v2403 = vpack.c.b16 %v2079, %v2075
    %v2404 = vpack.c.b16 %v2080, %v2076
    %v2405 = vpack.c.b16 %v2081, %v2077
    %v2406 = vpack.c.b16 %v2082, %v2078
    %v2407 = vpack.c.b16 %v2087, %v2083
    %v2408 = vpack.c.b16 %v2088, %v2084
    %v2409 = vpack.c.b16 %v2089, %v2085
    %v2410 = vpack.c.b16 %v2090, %v2086
    %v2411 = vpack.c.b16 %v2095, %v2091
    %v2412 = vpack.c.b16 %v2096, %v2092
    %v2413 = vpack.c.b16 %v2097, %v2093
    %v2414 = vpack.c.b16 %v2098, %v2094
    %v2415 = vpack.c.b16 %v2103, %v2099
    %v2416 = vpack.c.b16 %v2104, %v2100
    %v2417 = vpack.c.b16 %v2105, %v2101
    %v2418 = vpack.c.b16 %v2106, %v2102
    %v2419 = vpack.c.b16 %v2111, %v2107
    %v2420 = vpack.c.b16 %v2112, %v2108
    %v2421 = vpack.c.b16 %v2113, %v2109
    %v2422 = vpack.c.b16 %v2114, %v2110
    %v2423 = vpack.c.b16 %v2119, %v2115
    %v2424 = vpack.c.b16 %v2120, %v2116
    %v2425 = vpack.c.b16 %v2121, %v2117
    %v2426 = vpack.c.b16 %v2122, %v2118
    %v2427 = vpack.c.b16 %v2127, %v2123
    %v2428 = vpack.c.b16 %v2128, %v2124
    %v2429 = vpack.c.b16 %v2129, %v2125
    %v2430 = vpack.c.b16 %v2130, %v2126
    %v2431 = vpack.c.b16 %v2135, %v2131
    %v2432 = vpack.c.b16 %v2136, %v2132
    %v2433 = vpack.c.b16 %v2137, %v2133
    %v2434 = vpack.c.b16 %v2138, %v2134
    %v2435 = vpack.c.b16 %v2143, %v2139
    %v2436 = vpack.c.b16 %v2144, %v2140
    %v2437 = vpack.c.b16 %v2145, %v2141
    %v2438 = vpack.c.b16 %v2146, %v2142
    %v2439 = vpack.c.b16 %v2151, %v2147
    %v2440 = vpack.c.b16 %v2152, %v2148
    %v2441 = vpack.c.b16 %v2153, %v2149
    %v2442 = vpack.c.b16 %v2154, %v2150
    %v2443 = vpack.c.b16 %v2159, %v2155
    %v2444 = vpack.c.b16 %v2160, %v2156
    %v2445 = vpack.c.b16 %v2161, %v2157
    %v2446 = vpack.c.b16 %v2162, %v2158
    %v2447 = vpack.c.b16 %v2167, %v2163
    %v2448 = vpack.c.b16 %v2168, %v2164
    %v2449 = vpack.c.b16 %v2169, %v2165
    %v2450 = vpack.c.b16 %v2170, %v2166
    %v2451 = vpack.c.b16 %v2175, %v2171
    %v2452 = vpack.c.b16 %v2176, %v2172
    %v2453 = vpack.c.b16 %v2177, %v2173
    %v2454 = vpack.c.b16 %v2178, %v2174
    %v2455 = vpack.c.b16 %v2183, %v2179
    %v2456 = vpack.c.b16 %v2184, %v2180
    %v2457 = vpack.c.b16 %v2185, %v2181
    %v2458 = vpack.c.b16 %v2186, %v2182
    %v2459 = vpack.c.b16 %v2191, %v2187
    %v2460 = vpack.c.b16 %v2192, %v2188
    %v2461 = vpack.c.b16 %v2193, %v2189
    %v2462 = vpack.c.b16 %v2194, %v2190
    %v2463 = vpack.c.b16 %v2199, %v2195
    %v2464 = vpack.c.b16 %v2200, %v2196
    %v2465 = vpack.c.b16 %v2201, %v2197
    %v2466 = vpack.c.b16 %v2202, %v2198
    %v2467 = vpack.c.b16 %v2207, %v2203
    %v2468 = vpack.c.b16 %v2208, %v2204
    %v2469 = vpack.c.b16 %v2209, %v2205
    %v2470 = vpack.c.b16 %v2210, %v2206
    %v2471 = vpack.c.b16 %v2215, %v2211
    %v2472 = vpack.c.b16 %v2216, %v2212
    %v2473 = vpack.c.b16 %v2217, %v2213
    %v2474 = vpack.c.b16 %v2218, %v2214
    %2731 = vmatprep.subr.bf16.mxu0 %v2248
    %2732 = vmatpush1.bf16.msra.mxu0 %v2247
    %2733 = vmatprep.subr.bf16.mxu0 %v2244
    %2734 = vmatpush1.bf16.msra.mxu0 %v2243
    %2735 = vmatprep.subr.bf16.mxu0 %v2240
    %2736 = vmatpush1.bf16.msra.mxu0 %v2239
    %2737 = vmatprep.subr.bf16.mxu0 %v2236
    %2738 = vmatpush1.bf16.msra.mxu0 %v2235
    %2739 = vmatprep.subr.bf16.mxu0 %v2232
    %2740 = vmatpush1.bf16.msra.mxu0 %v2231
    %2741 = vmatprep.subr.bf16.mxu0 %v2228
    %2742 = vmatpush1.bf16.msra.mxu0 %v2227
    %2743 = vmatprep.subr.bf16.mxu0 %v2224
    %2744 = vmatpush1.bf16.msra.mxu0 %v2223
    %2745 = vmatprep.subr.bf16.mxu0 %v2220
    %2746 = vmatpush1.bf16.msra.mxu0 %v2219
    %2747 = vmatprep.subr.bf16.mxu0 %v2280
    %2748 = vmatpush2.bf16.msra.mxu0 %v2279
    %2749 = vmatprep.subr.bf16.mxu0 %v2276
    %2750 = vmatpush2.bf16.msra.mxu0 %v2275
    %2751 = vmatprep.subr.bf16.mxu0 %v2272
    %2752 = vmatpush2.bf16.msra.mxu0 %v2271
    %2753 = vmatprep.subr.bf16.mxu0 %v2268
    %2754 = vmatpush2.bf16.msra.mxu0 %v2267
    %2755 = vmatprep.subr.bf16.mxu0 %v2264
    %2756 = vmatpush2.bf16.msra.mxu0 %v2263
    %2757 = vmatprep.subr.bf16.mxu0 %v2260
    %2758 = vmatpush2.bf16.msra.mxu0 %v2259
    %2759 = vmatprep.subr.bf16.mxu0 %v2256
    %2760 = vmatpush2.bf16.msra.mxu0 %v2255
    %2761 = vmatprep.subr.bf16.mxu0 %v2252
    %2762 = vmatpush2.bf16.msra.mxu0 %v2251
    %2763 = vmatprep.mubr.bf16.mxu0 %v1188
    %2764 = vmatmul.mubr.bf16.gmra.mxu0 %v1187
    %v2765 = vpop.f32.mrf.mxu0
    %v2766 = vadd.f32 0.0, %v2765
    %v2767 = vpop.f32.mrf.mxu0
    %v2768 = vadd.f32 0.0, %v2767
    %v2769 = vpop.f32.mrf.mxu0
    %v2770 = vadd.f32 0.0, %v2769
    %v2771 = vpop.f32.mrf.mxu0
    %v2772 = vadd.f32 0.0, %v2771
    %2773 = vdwg.mxu0
    %2774 = vmatprep.subr.bf16.mxu0 %v2312
    %2775 = vmatpush1.bf16.msra.mxu0 %v2311
    %2776 = vmatprep.subr.bf16.mxu0 %v2308
    %2777 = vmatpush1.bf16.msra.mxu0 %v2307
    %2778 = vmatprep.subr.bf16.mxu0 %v2304
    %2779 = vmatpush1.bf16.msra.mxu0 %v2303
    %2780 = vmatprep.subr.bf16.mxu0 %v2300
    %2781 = vmatpush1.bf16.msra.mxu0 %v2299
    %2782 = vmatprep.subr.bf16.mxu0 %v2296
    %2783 = vmatpush1.bf16.msra.mxu0 %v2295
    %2784 = vmatprep.subr.bf16.mxu0 %v2292
    %2785 = vmatpush1.bf16.msra.mxu0 %v2291
    %2786 = vmatprep.subr.bf16.mxu0 %v2288
    %2787 = vmatpush1.bf16.msra.mxu0 %v2287
    %2788 = vmatprep.subr.bf16.mxu0 %v2284
    %2789 = vmatpush1.bf16.msra.mxu0 %v2283
    %2790 = vmatprep.subr.bf16.mxu0 %v2344
    %2791 = vmatpush2.bf16.msra.mxu0 %v2343
    %2792 = vmatprep.subr.bf16.mxu0 %v2340
    %2793 = vmatpush2.bf16.msra.mxu0 %v2339
    %2794 = vmatprep.subr.bf16.mxu0 %v2336
    %2795 = vmatpush2.bf16.msra.mxu0 %v2335
    %2796 = vmatprep.subr.bf16.mxu0 %v2332
    %2797 = vmatpush2.bf16.msra.mxu0 %v2331
    %2798 = vmatprep.subr.bf16.mxu0 %v2328
    %2799 = vmatpush2.bf16.msra.mxu0 %v2327
    %2800 = vmatprep.subr.bf16.mxu0 %v2324
    %2801 = vmatpush2.bf16.msra.mxu0 %v2323
    %2802 = vmatprep.subr.bf16.mxu0 %v2320
    %2803 = vmatpush2.bf16.msra.mxu0 %v2319
    %2804 = vmatprep.subr.bf16.mxu0 %v2316
    %2805 = vmatpush2.bf16.msra.mxu0 %v2315
    %2806 = vmatprep.mubr.bf16.mxu0 %v1190
    %2807 = vmatmul.mubr.bf16.gmra.mxu0 %v1189
    %v2808 = vpop.f32.mrf.mxu0
    %v2809 = vadd.f32 %v2766, %v2808
    %v2810 = vpop.f32.mrf.mxu0
    %v2811 = vadd.f32 %v2768, %v2810
    %v2812 = vpop.f32.mrf.mxu0
    %v2813 = vadd.f32 %v2770, %v2812
    %v2814 = vpop.f32.mrf.mxu0
    %v2815 = vadd.f32 %v2772, %v2814
    %2816 = vdwg.mxu0
    %2817 = vmatprep.subr.bf16.mxu0 %v2376
    %2818 = vmatpush1.bf16.msra.mxu0 %v2375
    %2819 = vmatprep.subr.bf16.mxu0 %v2372
    %2820 = vmatpush1.bf16.msra.mxu0 %v2371
    %2821 = vmatprep.subr.bf16.mxu0 %v2368
    %2822 = vmatpush1.bf16.msra.mxu0 %v2367
    %2823 = vmatprep.subr.bf16.mxu0 %v2364
    %2824 = vmatpush1.bf16.msra.mxu0 %v2363
    %2825 = vmatprep.subr.bf16.mxu0 %v2360
    %2826 = vmatpush1.bf16.msra.mxu0 %v2359
    %2827 = vmatprep.subr.bf16.mxu0 %v2356
    %2828 = vmatpush1.bf16.msra.mxu0 %v2355
    %2829 = vmatprep.subr.bf16.mxu0 %v2352
    %2830 = vmatpush1.bf16.msra.mxu0 %v2351
    %2831 = vmatprep.subr.bf16.mxu0 %v2348
    %2832 = vmatpush1.bf16.msra.mxu0 %v2347
    %2833 = vmatprep.subr.bf16.mxu0 %v2408
    %2834 = vmatpush2.bf16.msra.mxu0 %v2407
    %2835 = vmatprep.subr.bf16.mxu0 %v2404
    %2836 = vmatpush2.bf16.msra.mxu0 %v2403
    %2837 = vmatprep.subr.bf16.mxu0 %v2400
    %2838 = vmatpush2.bf16.msra.mxu0 %v2399
    %2839 = vmatprep.subr.bf16.mxu0 %v2396
    %2840 = vmatpush2.bf16.msra.mxu0 %v2395
    %2841 = vmatprep.subr.bf16.mxu0 %v2392
    %2842 = vmatpush2.bf16.msra.mxu0 %v2391
    %2843 = vmatprep.subr.bf16.mxu0 %v2388
    %2844 = vmatpush2.bf16.msra.mxu0 %v2387
    %2845 = vmatprep.subr.bf16.mxu0 %v2384
    %2846 = vmatpush2.bf16.msra.mxu0 %v2383
    %2847 = vmatprep.subr.bf16.mxu0 %v2380
    %2848 = vmatpush2.bf16.msra.mxu0 %v2379
    %2849 = vmatprep.mubr.bf16.mxu0 %v1192
    %2850 = vmatmul.mubr.bf16.gmra.mxu0 %v1191
    %v2851 = vpop.f32.mrf.mxu0
    %v2852 = vadd.f32 %v2809, %v2851
    %v2853 = vpop.f32.mrf.mxu0
    %v2854 = vadd.f32 %v2811, %v2853
    %v2855 = vpop.f32.mrf.mxu0
    %v2856 = vadd.f32 %v2813, %v2855
    %v2857 = vpop.f32.mrf.mxu0
    %v2858 = vadd.f32 %v2815, %v2857
    %2859 = vdwg.mxu0
    %2860 = vmatprep.subr.bf16.mxu0 %v2440
    %2861 = vmatpush1.bf16.msra.mxu0 %v2439
    %2862 = vmatprep.subr.bf16.mxu0 %v2436
    %2863 = vmatpush1.bf16.msra.mxu0 %v2435
    %2864 = vmatprep.subr.bf16.mxu0 %v2432
    %2865 = vmatpush1.bf16.msra.mxu0 %v2431
    %2866 = vmatprep.subr.bf16.mxu0 %v2428
    %2867 = vmatpush1.bf16.msra.mxu0 %v2427
    %2868 = vmatprep.subr.bf16.mxu0 %v2424
    %2869 = vmatpush1.bf16.msra.mxu0 %v2423
    %2870 = vmatprep.subr.bf16.mxu0 %v2420
    %2871 = vmatpush1.bf16.msra.mxu0 %v2419
    %2872 = vmatprep.subr.bf16.mxu0 %v2416
    %2873 = vmatpush1.bf16.msra.mxu0 %v2415
    %2874 = vmatprep.subr.bf16.mxu0 %v2412
    %2875 = vmatpush1.bf16.msra.mxu0 %v2411
    %2876 = vmatprep.subr.bf16.mxu0 %v2472
    %2877 = vmatpush2.bf16.msra.mxu0 %v2471
    %2878 = vmatprep.subr.bf16.mxu0 %v2468
    %2879 = vmatpush2.bf16.msra.mxu0 %v2467
    %2880 = vmatprep.subr.bf16.mxu0 %v2464
    %2881 = vmatpush2.bf16.msra.mxu0 %v2463
    %2882 = vmatprep.subr.bf16.mxu0 %v2460
    %2883 = vmatpush2.bf16.msra.mxu0 %v2459
    %2884 = vmatprep.subr.bf16.mxu0 %v2456
    %2885 = vmatpush2.bf16.msra.mxu0 %v2455
    %2886 = vmatprep.subr.bf16.mxu0 %v2452
    %2887 = vmatpush2.bf16.msra.mxu0 %v2451
    %2888 = vmatprep.subr.bf16.mxu0 %v2448
    %2889 = vmatpush2.bf16.msra.mxu0 %v2447
    %2890 = vmatprep.subr.bf16.mxu0 %v2444
    %2891 = vmatpush2.bf16.msra.mxu0 %v2443
    %2892 = vmatprep.mubr.bf16.mxu0 %v1194
    %2893 = vmatmul.mubr.bf16.gmra.mxu0 %v1193
    %v2894 = vpop.f32.mrf.mxu0
    %v2895 = vadd.f32 %v2852, %v2894
    %v2896 = vpop.f32.mrf.mxu0
    %v2897 = vadd.f32 %v2854, %v2896
    %v2898 = vpop.f32.mrf.mxu0
    %v2899 = vadd.f32 %v2856, %v2898
    %v2900 = vpop.f32.mrf.mxu0
    %v2901 = vadd.f32 %v2858, %v2900
    %2902 = vdwg.mxu0
    %2903 = vmatprep.subr.bf16.mxu0 %v2250
    %2904 = vmatpush1.bf16.msra.mxu0 %v2249
    %2905 = vmatprep.subr.bf16.mxu0 %v2246
    %2906 = vmatpush1.bf16.msra.mxu0 %v2245
    %2907 = vmatprep.subr.bf16.mxu0 %v2242
    %2908 = vmatpush1.bf16.msra.mxu0 %v2241
    %2909 = vmatprep.subr.bf16.mxu0 %v2238
    %2910 = vmatpush1.bf16.msra.mxu0 %v2237
    %2911 = vmatprep.subr.bf16.mxu0 %v2234
    %2912 = vmatpush1.bf16.msra.mxu0 %v2233
    %2913 = vmatprep.subr.bf16.mxu0 %v2230
    %2914 = vmatpush1.bf16.msra.mxu0 %v2229
    %2915 = vmatprep.subr.bf16.mxu0 %v2226
    %2916 = vmatpush1.bf16.msra.mxu0 %v2225
    %2917 = vmatprep.subr.bf16.mxu0 %v2222
    %2918 = vmatpush1.bf16.msra.mxu0 %v2221
    %2919 = vmatprep.subr.bf16.mxu0 %v2282
    %2920 = vmatpush2.bf16.msra.mxu0 %v2281
    %2921 = vmatprep.subr.bf16.mxu0 %v2278
    %2922 = vmatpush2.bf16.msra.mxu0 %v2277
    %2923 = vmatprep.subr.bf16.mxu0 %v2274
    %2924 = vmatpush2.bf16.msra.mxu0 %v2273
    %2925 = vmatprep.subr.bf16.mxu0 %v2270
    %2926 = vmatpush2.bf16.msra.mxu0 %v2269
    %2927 = vmatprep.subr.bf16.mxu0 %v2266
    %2928 = vmatpush2.bf16.msra.mxu0 %v2265
    %2929 = vmatprep.subr.bf16.mxu0 %v2262
    %2930 = vmatpush2.bf16.msra.mxu0 %v2261
    %2931 = vmatprep.subr.bf16.mxu0 %v2258
    %2932 = vmatpush2.bf16.msra.mxu0 %v2257
    %2933 = vmatprep.subr.bf16.mxu0 %v2254
    %2934 = vmatpush2.bf16.msra.mxu0 %v2253
    %2935 = vmatprep.mubr.bf16.mxu0 %v1188
    %2936 = vmatmul.mubr.bf16.gmra.mxu0 %v1187
    %v2937 = vpop.f32.mrf.mxu0
    %v2938 = vadd.f32 0.0, %v2937
    %v2939 = vpop.f32.mrf.mxu0
    %v2940 = vadd.f32 0.0, %v2939
    %v2941 = vpop.f32.mrf.mxu0
    %v2942 = vadd.f32 0.0, %v2941
    %v2943 = vpop.f32.mrf.mxu0
    %v2944 = vadd.f32 0.0, %v2943
    %2945 = vdwg.mxu0
    %2946 = vmatprep.subr.bf16.mxu0 %v2314
    %2947 = vmatpush1.bf16.msra.mxu0 %v2313
    %2948 = vmatprep.subr.bf16.mxu0 %v2310
    %2949 = vmatpush1.bf16.msra.mxu0 %v2309
    %2950 = vmatprep.subr.bf16.mxu0 %v2306
    %2951 = vmatpush1.bf16.msra.mxu0 %v2305
    %2952 = vmatprep.subr.bf16.mxu0 %v2302
    %2953 = vmatpush1.bf16.msra.mxu0 %v2301
    %2954 = vmatprep.subr.bf16.mxu0 %v2298
    %2955 = vmatpush1.bf16.msra.mxu0 %v2297
    %2956 = vmatprep.subr.bf16.mxu0 %v2294
    %2957 = vmatpush1.bf16.msra.mxu0 %v2293
    %2958 = vmatprep.subr.bf16.mxu0 %v2290
    %2959 = vmatpush1.bf16.msra.mxu0 %v2289
    %2960 = vmatprep.subr.bf16.mxu0 %v2286
    %2961 = vmatpush1.bf16.msra.mxu0 %v2285
    %2962 = vmatprep.subr.bf16.mxu0 %v2346
    %2963 = vmatpush2.bf16.msra.mxu0 %v2345
    %2964 = vmatprep.subr.bf16.mxu0 %v2342
    %2965 = vmatpush2.bf16.msra.mxu0 %v2341
    %2966 = vmatprep.subr.bf16.mxu0 %v2338
    %2967 = vmatpush2.bf16.msra.mxu0 %v2337
    %2968 = vmatprep.subr.bf16.mxu0 %v2334
    %2969 = vmatpush2.bf16.msra.mxu0 %v2333
    %2970 = vmatprep.subr.bf16.mxu0 %v2330
    %2971 = vmatpush2.bf16.msra.mxu0 %v2329
    %2972 = vmatprep.subr.bf16.mxu0 %v2326
    %2973 = vmatpush2.bf16.msra.mxu0 %v2325
    %2974 = vmatprep.subr.bf16.mxu0 %v2322
    %2975 = vmatpush2.bf16.msra.mxu0 %v2321
    %2976 = vmatprep.subr.bf16.mxu0 %v2318
    %2977 = vmatpush2.bf16.msra.mxu0 %v2317
    %2978 = vmatprep.mubr.bf16.mxu0 %v1190
    %2979 = vmatmul.mubr.bf16.gmra.mxu0 %v1189
    %v2980 = vpop.f32.mrf.mxu0
    %v2981 = vadd.f32 %v2938, %v2980
    %v2982 = vpop.f32.mrf.mxu0
    %v2983 = vadd.f32 %v2940, %v2982
    %v2984 = vpop.f32.mrf.mxu0
    %v2985 = vadd.f32 %v2942, %v2984
    %v2986 = vpop.f32.mrf.mxu0
    %v2987 = vadd.f32 %v2944, %v2986
    %2988 = vdwg.mxu0
    %2989 = vmatprep.subr.bf16.mxu0 %v2378
    %2990 = vmatpush1.bf16.msra.mxu0 %v2377
    %2991 = vmatprep.subr.bf16.mxu0 %v2374
    %2992 = vmatpush1.bf16.msra.mxu0 %v2373
    %2993 = vmatprep.subr.bf16.mxu0 %v2370
    %2994 = vmatpush1.bf16.msra.mxu0 %v2369
    %2995 = vmatprep.subr.bf16.mxu0 %v2366
    %2996 = vmatpush1.bf16.msra.mxu0 %v2365
    %2997 = vmatprep.subr.bf16.mxu0 %v2362
    %2998 = vmatpush1.bf16.msra.mxu0 %v2361
    %2999 = vmatprep.subr.bf16.mxu0 %v2358
    %3000 = vmatpush1.bf16.msra.mxu0 %v2357
    %3001 = vmatprep.subr.bf16.mxu0 %v2354
    %3002 = vmatpush1.bf16.msra.mxu0 %v2353
    %3003 = vmatprep.subr.bf16.mxu0 %v2350
    %3004 = vmatpush1.bf16.msra.mxu0 %v2349
    %3005 = vmatprep.subr.bf16.mxu0 %v2410
    %3006 = vmatpush2.bf16.msra.mxu0 %v2409
    %3007 = vmatprep.subr.bf16.mxu0 %v2406
    %3008 = vmatpush2.bf16.msra.mxu0 %v2405
    %3009 = vmatprep.subr.bf16.mxu0 %v2402
    %3010 = vmatpush2.bf16.msra.mxu0 %v2401
    %3011 = vmatprep.subr.bf16.mxu0 %v2398
    %3012 = vmatpush2.bf16.msra.mxu0 %v2397
    %3013 = vmatprep.subr.bf16.mxu0 %v2394
    %3014 = vmatpush2.bf16.msra.mxu0 %v2393
    %3015 = vmatprep.subr.bf16.mxu0 %v2390
    %3016 = vmatpush2.bf16.msra.mxu0 %v2389
    %3017 = vmatprep.subr.bf16.mxu0 %v2386
    %3018 = vmatpush2.bf16.msra.mxu0 %v2385
    %3019 = vmatprep.subr.bf16.mxu0 %v2382
    %3020 = vmatpush2.bf16.msra.mxu0 %v2381
    %3021 = vmatprep.mubr.bf16.mxu0 %v1192
    %3022 = vmatmul.mubr.bf16.gmra.mxu0 %v1191
    %v3023 = vpop.f32.mrf.mxu0
    %v3024 = vadd.f32 %v2981, %v3023
    %v3025 = vpop.f32.mrf.mxu0
    %v3026 = vadd.f32 %v2983, %v3025
    %v3027 = vpop.f32.mrf.mxu0
    %v3028 = vadd.f32 %v2985, %v3027
    %v3029 = vpop.f32.mrf.mxu0
    %v3030 = vadd.f32 %v2987, %v3029
    %3031 = vdwg.mxu0
    %3032 = vmatprep.subr.bf16.mxu0 %v2442
    %3033 = vmatpush1.bf16.msra.mxu0 %v2441
    %3034 = vmatprep.subr.bf16.mxu0 %v2438
    %3035 = vmatpush1.bf16.msra.mxu0 %v2437
    %3036 = vmatprep.subr.bf16.mxu0 %v2434
    %3037 = vmatpush1.bf16.msra.mxu0 %v2433
    %3038 = vmatprep.subr.bf16.mxu0 %v2430
    %3039 = vmatpush1.bf16.msra.mxu0 %v2429
    %3040 = vmatprep.subr.bf16.mxu0 %v2426
    %3041 = vmatpush1.bf16.msra.mxu0 %v2425
    %3042 = vmatprep.subr.bf16.mxu0 %v2422
    %3043 = vmatpush1.bf16.msra.mxu0 %v2421
    %3044 = vmatprep.subr.bf16.mxu0 %v2418
    %3045 = vmatpush1.bf16.msra.mxu0 %v2417
    %3046 = vmatprep.subr.bf16.mxu0 %v2414
    %3047 = vmatpush1.bf16.msra.mxu0 %v2413
    %3048 = vmatprep.subr.bf16.mxu0 %v2474
    %3049 = vmatpush2.bf16.msra.mxu0 %v2473
    %3050 = vmatprep.subr.bf16.mxu0 %v2470
    %3051 = vmatpush2.bf16.msra.mxu0 %v2469
    %3052 = vmatprep.subr.bf16.mxu0 %v2466
    %3053 = vmatpush2.bf16.msra.mxu0 %v2465
    %3054 = vmatprep.subr.bf16.mxu0 %v2462
    %3055 = vmatpush2.bf16.msra.mxu0 %v2461
    %3056 = vmatprep.subr.bf16.mxu0 %v2458
    %3057 = vmatpush2.bf16.msra.mxu0 %v2457
    %3058 = vmatprep.subr.bf16.mxu0 %v2454
    %3059 = vmatpush2.bf16.msra.mxu0 %v2453
    %3060 = vmatprep.subr.bf16.mxu0 %v2450
    %3061 = vmatpush2.bf16.msra.mxu0 %v2449
    %3062 = vmatprep.subr.bf16.mxu0 %v2446
    %3063 = vmatpush2.bf16.msra.mxu0 %v2445
    %3064 = vmatprep.mubr.bf16.mxu0 %v1194
    %3065 = vmatmul.mubr.bf16.gmra.mxu0 %v1193
    %v3066 = vpop.f32.mrf.mxu0
    %v3067 = vadd.f32 %v3024, %v3066
    %v3068 = vpop.f32.mrf.mxu0
    %v3069 = vadd.f32 %v3026, %v3068
    %v3070 = vpop.f32.mrf.mxu0
    %v3071 = vadd.f32 %v3028, %v3070
    %v3072 = vpop.f32.mrf.mxu0
    %v3073 = vadd.f32 %v3030, %v3072
    %3074 = vdwg.mxu0
    %v3075 = vld [vmem:[%s5] sm:$0xf]
    %v3077 = vlaneseq
    %v3078 = vshrl.u32 %v3077, 7
    %v3079 = vsub.s32 0, %v3078
    %v3080 = vrot.slane %v3075, %v3079
    %v3081 = vlaneseq
    %v3082 = vshrl.u32 %v3081, 7
    %v3083 = vsub.s32 1, %v3082
    %v3084 = vrot.slane %v3075, %v3083
    %v3085 = vlaneseq
    %v3086 = vshrl.u32 %v3085, 7
    %v3087 = vsub.s32 2, %v3086
    %v3088 = vrot.slane %v3075, %v3087
    %v3089 = vlaneseq
    %v3090 = vshrl.u32 %v3089, 7
    %v3091 = vsub.s32 3, %v3090
    %v3092 = vrot.slane %v3075, %v3091
    %v3097 = vmul.f32 %v2895, %v3080
    %v3098 = vmul.f32 %v2897, %v3084
    %v3099 = vmul.f32 %v3067, %v3088
    %v3100 = vmul.f32 %v3069, %v3092
    %v3101 = vmul.f32 %v2899, %v3080
    %v3102 = vmul.f32 %v2901, %v3084
    %v3103 = vmul.f32 %v3071, %v3088
    %v3104 = vmul.f32 %v3073, %v3092
    %v3105 = vld [vmem:[%s6] sm:$0xf]
    %v3107 = vlaneseq
    %v3108 = vshrl.u32 %v3107, 7
    %v3109 = vsub.s32 0, %v3108
    %v3110 = vrot.slane %v3105, %v3109
    %v3111 = vlaneseq
    %v3112 = vshrl.u32 %v3111, 7
    %v3113 = vsub.s32 1, %v3112
    %v3114 = vrot.slane %v3105, %v3113
    %v3115 = vlaneseq
    %v3116 = vshrl.u32 %v3115, 7
    %v3117 = vsub.s32 2, %v3116
    %v3118 = vrot.slane %v3105, %v3117
    %v3119 = vlaneseq
    %v3120 = vshrl.u32 %v3119, 7
    %v3121 = vsub.s32 3, %v3120
    %v3122 = vrot.slane %v3105, %v3121
    %v3127 = vadd.f32 %v3097, %v3110
    %v3128 = vadd.f32 %v3098, %v3114
    %v3129 = vadd.f32 %v3099, %v3118
    %v3130 = vadd.f32 %v3100, %v3122
    %v3131 = vadd.f32 %v3101, %v3110
    %v3132 = vadd.f32 %v3102, %v3114
    %v3133 = vadd.f32 %v3103, %v3118
    %v3134 = vadd.f32 %v3104, %v3122
    %v3135 = vmax.f32 %v3127, 0.0
    %v3136 = vmax.f32 %v3128, 0.0
    %v3137 = vmax.f32 %v3129, 0.0
    %v3138 = vmax.f32 %v3130, 0.0
    %v3139 = vmax.f32 %v3131, 0.0
    %v3140 = vmax.f32 %v3132, 0.0
    %v3141 = vmax.f32 %v3133, 0.0
    %v3142 = vmax.f32 %v3134, 0.0
    %v3143 = vpack.c.bf16 %v3139, %v3135
    %v3144 = vpack.c.bf16 %v3140, %v3136
    %v3145 = vpack.c.bf16 %v3141, %v3137
    %v3146 = vpack.c.bf16 %v3142, %v3138
    %v3147 = vld [vmem:[#allocation6] sm:$0xff]
    %v3148 = vld [vmem:[#allocation6 + $0x8] sm:$0xff]
    %v3149 = vld [vmem:[#allocation6 + $0x10] sm:$0xff]
    %v3150 = vld [vmem:[#allocation6 + $0x18] sm:$0xff]
    %v3151 = vld [vmem:[#allocation6 + $0x20] sm:$0xff]
    %v3152 = vld [vmem:[#allocation6 + $0x28] sm:$0xff]
    %v3153 = vld [vmem:[#allocation6 + $0x30] sm:$0xff]
    %v3154 = vld [vmem:[#allocation6 + $0x38] sm:$0xff]
    %v3155 = vld [vmem:[#allocation6 + $0x40] sm:$0xff]
    %v3156 = vld [vmem:[#allocation6 + $0x48] sm:$0xff]
    %v3157 = vld [vmem:[#allocation6 + $0x50] sm:$0xff]
    %v3158 = vld [vmem:[#allocation6 + $0x58] sm:$0xff]
    %v3159 = vld [vmem:[#allocation6 + $0x60] sm:$0xff]
    %v3160 = vld [vmem:[#allocation6 + $0x68] sm:$0xff]
    %v3161 = vld [vmem:[#allocation6 + $0x70] sm:$0xff]
    %v3162 = vld [vmem:[#allocation6 + $0x78] sm:$0xff]
    %v3163 = vld [vmem:[#allocation6 + $0x80] sm:$0xff]
    %v3164 = vld [vmem:[#allocation6 + $0x88] sm:$0xff]
    %v3165 = vld [vmem:[#allocation6 + $0x90] sm:$0xff]
    %v3166 = vld [vmem:[#allocation6 + $0x98] sm:$0xff]
    %v3167 = vld [vmem:[#allocation6 + $0xa0] sm:$0xff]
    %v3168 = vld [vmem:[#allocation6 + $0xa8] sm:$0xff]
    %v3169 = vld [vmem:[#allocation6 + $0xb0] sm:$0xff]
    %v3170 = vld [vmem:[#allocation6 + $0xb8] sm:$0xff]
    %v3171 = vld [vmem:[#allocation6 + $0xc0] sm:$0xff]
    %v3172 = vld [vmem:[#allocation6 + $0xc8] sm:$0xff]
    %v3173 = vld [vmem:[#allocation6 + $0xd0] sm:$0xff]
    %v3174 = vld [vmem:[#allocation6 + $0xd8] sm:$0xff]
    %v3175 = vld [vmem:[#allocation6 + $0xe0] sm:$0xff]
    %v3176 = vld [vmem:[#allocation6 + $0xe8] sm:$0xff]
    %v3177 = vld [vmem:[#allocation6 + $0xf0] sm:$0xff]
    %v3178 = vld [vmem:[#allocation6 + $0xf8] sm:$0xff]
    %v3179 = vld [vmem:[#allocation6 + $0x100] sm:$0xff]
    %v3180 = vld [vmem:[#allocation6 + $0x108] sm:$0xff]
    %v3181 = vld [vmem:[#allocation6 + $0x110] sm:$0xff]
    %v3182 = vld [vmem:[#allocation6 + $0x118] sm:$0xff]
    %v3183 = vld [vmem:[#allocation6 + $0x120] sm:$0xff]
    %v3184 = vld [vmem:[#allocation6 + $0x128] sm:$0xff]
    %v3185 = vld [vmem:[#allocation6 + $0x130] sm:$0xff]
    %v3186 = vld [vmem:[#allocation6 + $0x138] sm:$0xff]
    %v3187 = vld [vmem:[#allocation6 + $0x140] sm:$0xff]
    %v3188 = vld [vmem:[#allocation6 + $0x148] sm:$0xff]
    %v3189 = vld [vmem:[#allocation6 + $0x150] sm:$0xff]
    %v3190 = vld [vmem:[#allocation6 + $0x158] sm:$0xff]
    %v3191 = vld [vmem:[#allocation6 + $0x160] sm:$0xff]
    %v3192 = vld [vmem:[#allocation6 + $0x168] sm:$0xff]
    %v3193 = vld [vmem:[#allocation6 + $0x170] sm:$0xff]
    %v3194 = vld [vmem:[#allocation6 + $0x178] sm:$0xff]
    %v3195 = vld [vmem:[#allocation6 + $0x180] sm:$0xff]
    %v3196 = vld [vmem:[#allocation6 + $0x188] sm:$0xff]
    %v3197 = vld [vmem:[#allocation6 + $0x190] sm:$0xff]
    %v3198 = vld [vmem:[#allocation6 + $0x198] sm:$0xff]
    %v3199 = vld [vmem:[#allocation6 + $0x1a0] sm:$0xff]
    %v3200 = vld [vmem:[#allocation6 + $0x1a8] sm:$0xff]
    %v3201 = vld [vmem:[#allocation6 + $0x1b0] sm:$0xff]
    %v3202 = vld [vmem:[#allocation6 + $0x1b8] sm:$0xff]
    %v3203 = vld [vmem:[#allocation6 + $0x1c0] sm:$0xff]
    %v3204 = vld [vmem:[#allocation6 + $0x1c8] sm:$0xff]
    %v3205 = vld [vmem:[#allocation6 + $0x1d0] sm:$0xff]
    %v3206 = vld [vmem:[#allocation6 + $0x1d8] sm:$0xff]
    %v3207 = vld [vmem:[#allocation6 + $0x1e0] sm:$0xff]
    %v3208 = vld [vmem:[#allocation6 + $0x1e8] sm:$0xff]
    %v3209 = vld [vmem:[#allocation6 + $0x1f0] sm:$0xff]
    %v3210 = vld [vmem:[#allocation6 + $0x1f8] sm:$0xff]
    %v3275 = vunpack.c.l.b16 %v3147
    %v3276 = vunpack.c.h.b16 %v3147
    %v3277 = vunpack.c.l.b16 %v3148
    %v3278 = vunpack.c.h.b16 %v3148
    %v3279 = vunpack.c.l.b16 %v3149
    %v3280 = vunpack.c.h.b16 %v3149
    %v3281 = vunpack.c.l.b16 %v3150
    %v3282 = vunpack.c.h.b16 %v3150
    %v3283 = vunpack.c.l.b16 %v3151
    %v3284 = vunpack.c.h.b16 %v3151
    %v3285 = vunpack.c.l.b16 %v3152
    %v3286 = vunpack.c.h.b16 %v3152
    %v3287 = vunpack.c.l.b16 %v3153
    %v3288 = vunpack.c.h.b16 %v3153
    %v3289 = vunpack.c.l.b16 %v3154
    %v3290 = vunpack.c.h.b16 %v3154
    %v3291 = vunpack.c.l.b16 %v3155
    %v3292 = vunpack.c.h.b16 %v3155
    %v3293 = vunpack.c.l.b16 %v3156
    %v3294 = vunpack.c.h.b16 %v3156
    %v3295 = vunpack.c.l.b16 %v3157
    %v3296 = vunpack.c.h.b16 %v3157
    %v3297 = vunpack.c.l.b16 %v3158
    %v3298 = vunpack.c.h.b16 %v3158
    %v3299 = vunpack.c.l.b16 %v3159
    %v3300 = vunpack.c.h.b16 %v3159
    %v3301 = vunpack.c.l.b16 %v3160
    %v3302 = vunpack.c.h.b16 %v3160
    %v3303 = vunpack.c.l.b16 %v3161
    %v3304 = vunpack.c.h.b16 %v3161
    %v3305 = vunpack.c.l.b16 %v3162
    %v3306 = vunpack.c.h.b16 %v3162
    %v3307 = vunpack.c.l.b16 %v3163
    %v3308 = vunpack.c.h.b16 %v3163
    %v3309 = vunpack.c.l.b16 %v3164
    %v3310 = vunpack.c.h.b16 %v3164
    %v3311 = vunpack.c.l.b16 %v3165
    %v3312 = vunpack.c.h.b16 %v3165
    %v3313 = vunpack.c.l.b16 %v3166
    %v3314 = vunpack.c.h.b16 %v3166
    %v3315 = vunpack.c.l.b16 %v3167
    %v3316 = vunpack.c.h.b16 %v3167
    %v3317 = vunpack.c.l.b16 %v3168
    %v3318 = vunpack.c.h.b16 %v3168
    %v3319 = vunpack.c.l.b16 %v3169
    %v3320 = vunpack.c.h.b16 %v3169
    %v3321 = vunpack.c.l.b16 %v3170
    %v3322 = vunpack.c.h.b16 %v3170
    %v3323 = vunpack.c.l.b16 %v3171
    %v3324 = vunpack.c.h.b16 %v3171
    %v3325 = vunpack.c.l.b16 %v3172
    %v3326 = vunpack.c.h.b16 %v3172
    %v3327 = vunpack.c.l.b16 %v3173
    %v3328 = vunpack.c.h.b16 %v3173
    %v3329 = vunpack.c.l.b16 %v3174
    %v3330 = vunpack.c.h.b16 %v3174
    %v3331 = vunpack.c.l.b16 %v3175
    %v3332 = vunpack.c.h.b16 %v3175
    %v3333 = vunpack.c.l.b16 %v3176
    %v3334 = vunpack.c.h.b16 %v3176
    %v3335 = vunpack.c.l.b16 %v3177
    %v3336 = vunpack.c.h.b16 %v3177
    %v3337 = vunpack.c.l.b16 %v3178
    %v3338 = vunpack.c.h.b16 %v3178
    %v3339 = vunpack.c.l.b16 %v3179
    %v3340 = vunpack.c.h.b16 %v3179
    %v3341 = vunpack.c.l.b16 %v3180
    %v3342 = vunpack.c.h.b16 %v3180
    %v3343 = vunpack.c.l.b16 %v3181
    %v3344 = vunpack.c.h.b16 %v3181
    %v3345 = vunpack.c.l.b16 %v3182
    %v3346 = vunpack.c.h.b16 %v3182
    %v3347 = vunpack.c.l.b16 %v3183
    %v3348 = vunpack.c.h.b16 %v3183
    %v3349 = vunpack.c.l.b16 %v3184
    %v3350 = vunpack.c.h.b16 %v3184
    %v3351 = vunpack.c.l.b16 %v3185
    %v3352 = vunpack.c.h.b16 %v3185
    %v3353 = vunpack.c.l.b16 %v3186
    %v3354 = vunpack.c.h.b16 %v3186
    %v3355 = vunpack.c.l.b16 %v3187
    %v3356 = vunpack.c.h.b16 %v3187
    %v3357 = vunpack.c.l.b16 %v3188
    %v3358 = vunpack.c.h.b16 %v3188
    %v3359 = vunpack.c.l.b16 %v3189
    %v3360 = vunpack.c.h.b16 %v3189
    %v3361 = vunpack.c.l.b16 %v3190
    %v3362 = vunpack.c.h.b16 %v3190
    %v3363 = vunpack.c.l.b16 %v3191
    %v3364 = vunpack.c.h.b16 %v3191
    %v3365 = vunpack.c.l.b16 %v3192
    %v3366 = vunpack.c.h.b16 %v3192
    %v3367 = vunpack.c.l.b16 %v3193
    %v3368 = vunpack.c.h.b16 %v3193
    %v3369 = vunpack.c.l.b16 %v3194
    %v3370 = vunpack.c.h.b16 %v3194
    %v3371 = vunpack.c.l.b16 %v3195
    %v3372 = vunpack.c.h.b16 %v3195
    %v3373 = vunpack.c.l.b16 %v3196
    %v3374 = vunpack.c.h.b16 %v3196
    %v3375 = vunpack.c.l.b16 %v3197
    %v3376 = vunpack.c.h.b16 %v3197
    %v3377 = vunpack.c.l.b16 %v3198
    %v3378 = vunpack.c.h.b16 %v3198
    %v3379 = vunpack.c.l.b16 %v3199
    %v3380 = vunpack.c.h.b16 %v3199
    %v3381 = vunpack.c.l.b16 %v3200
    %v3382 = vunpack.c.h.b16 %v3200
    %v3383 = vunpack.c.l.b16 %v3201
    %v3384 = vunpack.c.h.b16 %v3201
    %v3385 = vunpack.c.l.b16 %v3202
    %v3386 = vunpack.c.h.b16 %v3202
    %v3387 = vunpack.c.l.b16 %v3203
    %v3388 = vunpack.c.h.b16 %v3203
    %v3389 = vunpack.c.l.b16 %v3204
    %v3390 = vunpack.c.h.b16 %v3204
    %v3391 = vunpack.c.l.b16 %v3205
    %v3392 = vunpack.c.h.b16 %v3205
    %v3393 = vunpack.c.l.b16 %v3206
    %v3394 = vunpack.c.h.b16 %v3206
    %v3395 = vunpack.c.l.b16 %v3207
    %v3396 = vunpack.c.h.b16 %v3207
    %v3397 = vunpack.c.l.b16 %v3208
    %v3398 = vunpack.c.h.b16 %v3208
    %v3399 = vunpack.c.l.b16 %v3209
    %v3400 = vunpack.c.h.b16 %v3209
    %v3401 = vunpack.c.l.b16 %v3210
    %v3402 = vunpack.c.h.b16 %v3210
    %v3403 = vpack.c.b16 %v3277, %v3275
    %v3404 = vpack.c.b16 %v3278, %v3276
    %v3405 = vpack.c.b16 %v3281, %v3279
    %v3406 = vpack.c.b16 %v3282, %v3280
    %v3407 = vpack.c.b16 %v3285, %v3283
    %v3408 = vpack.c.b16 %v3286, %v3284
    %v3409 = vpack.c.b16 %v3289, %v3287
    %v3410 = vpack.c.b16 %v3290, %v3288
    %v3411 = vpack.c.b16 %v3293, %v3291
    %v3412 = vpack.c.b16 %v3294, %v3292
    %v3413 = vpack.c.b16 %v3297, %v3295
    %v3414 = vpack.c.b16 %v3298, %v3296
    %v3415 = vpack.c.b16 %v3301, %v3299
    %v3416 = vpack.c.b16 %v3302, %v3300
    %v3417 = vpack.c.b16 %v3305, %v3303
    %v3418 = vpack.c.b16 %v3306, %v3304
    %v3419 = vpack.c.b16 %v3309, %v3307
    %v3420 = vpack.c.b16 %v3310, %v3308
    %v3421 = vpack.c.b16 %v3313, %v3311
    %v3422 = vpack.c.b16 %v3314, %v3312
    %v3423 = vpack.c.b16 %v3317, %v3315
    %v3424 = vpack.c.b16 %v3318, %v3316
    %v3425 = vpack.c.b16 %v3321, %v3319
    %v3426 = vpack.c.b16 %v3322, %v3320
    %v3427 = vpack.c.b16 %v3325, %v3323
    %v3428 = vpack.c.b16 %v3326, %v3324
    %v3429 = vpack.c.b16 %v3329, %v3327
    %v3430 = vpack.c.b16 %v3330, %v3328
    %v3431 = vpack.c.b16 %v3333, %v3331
    %v3432 = vpack.c.b16 %v3334, %v3332
    %v3433 = vpack.c.b16 %v3337, %v3335
    %v3434 = vpack.c.b16 %v3338, %v3336
    %v3435 = vpack.c.b16 %v3341, %v3339
    %v3436 = vpack.c.b16 %v3342, %v3340
    %v3437 = vpack.c.b16 %v3345, %v3343
    %v3438 = vpack.c.b16 %v3346, %v3344
    %v3439 = vpack.c.b16 %v3349, %v3347
    %v3440 = vpack.c.b16 %v3350, %v3348
    %v3441 = vpack.c.b16 %v3353, %v3351
    %v3442 = vpack.c.b16 %v3354, %v3352
    %v3443 = vpack.c.b16 %v3357, %v3355
    %v3444 = vpack.c.b16 %v3358, %v3356
    %v3445 = vpack.c.b16 %v3361, %v3359
    %v3446 = vpack.c.b16 %v3362, %v3360
    %v3447 = vpack.c.b16 %v3365, %v3363
    %v3448 = vpack.c.b16 %v3366, %v3364
    %v3449 = vpack.c.b16 %v3369, %v3367
    %v3450 = vpack.c.b16 %v3370, %v3368
    %v3451 = vpack.c.b16 %v3373, %v3371
    %v3452 = vpack.c.b16 %v3374, %v3372
    %v3453 = vpack.c.b16 %v3377, %v3375
    %v3454 = vpack.c.b16 %v3378, %v3376
    %v3455 = vpack.c.b16 %v3381, %v3379
    %v3456 = vpack.c.b16 %v3382, %v3380
    %v3457 = vpack.c.b16 %v3385, %v3383
    %v3458 = vpack.c.b16 %v3386, %v3384
    %v3459 = vpack.c.b16 %v3389, %v3387
    %v3460 = vpack.c.b16 %v3390, %v3388
    %v3461 = vpack.c.b16 %v3393, %v3391
    %v3462 = vpack.c.b16 %v3394, %v3392
    %v3463 = vpack.c.b16 %v3397, %v3395
    %v3464 = vpack.c.b16 %v3398, %v3396
    %v3465 = vpack.c.b16 %v3401, %v3399
    %v3466 = vpack.c.b16 %v3402, %v3400
    %3531 = vmatprep.subr.bf16.mxu0 %v3418
    %3532 = vmatpush1.bf16.msra.mxu0 %v3417
    %3533 = vmatprep.subr.bf16.mxu0 %v3416
    %3534 = vmatpush1.bf16.msra.mxu0 %v3415
    %3535 = vmatprep.subr.bf16.mxu0 %v3414
    %3536 = vmatpush1.bf16.msra.mxu0 %v3413
    %3537 = vmatprep.subr.bf16.mxu0 %v3412
    %3538 = vmatpush1.bf16.msra.mxu0 %v3411
    %3539 = vmatprep.subr.bf16.mxu0 %v3410
    %3540 = vmatpush1.bf16.msra.mxu0 %v3409
    %3541 = vmatprep.subr.bf16.mxu0 %v3408
    %3542 = vmatpush1.bf16.msra.mxu0 %v3407
    %3543 = vmatprep.subr.bf16.mxu0 %v3406
    %3544 = vmatpush1.bf16.msra.mxu0 %v3405
    %3545 = vmatprep.subr.bf16.mxu0 %v3404
    %3546 = vmatpush1.bf16.msra.mxu0 %v3403
    %3547 = vmatprep.subr.bf16.mxu0 %v3434
    %3548 = vmatpush2.bf16.msra.mxu0 %v3433
    %3549 = vmatprep.subr.bf16.mxu0 %v3432
    %3550 = vmatpush2.bf16.msra.mxu0 %v3431
    %3551 = vmatprep.subr.bf16.mxu0 %v3430
    %3552 = vmatpush2.bf16.msra.mxu0 %v3429
    %3553 = vmatprep.subr.bf16.mxu0 %v3428
    %3554 = vmatpush2.bf16.msra.mxu0 %v3427
    %3555 = vmatprep.subr.bf16.mxu0 %v3426
    %3556 = vmatpush2.bf16.msra.mxu0 %v3425
    %3557 = vmatprep.subr.bf16.mxu0 %v3424
    %3558 = vmatpush2.bf16.msra.mxu0 %v3423
    %3559 = vmatprep.subr.bf16.mxu0 %v3422
    %3560 = vmatpush2.bf16.msra.mxu0 %v3421
    %3561 = vmatprep.subr.bf16.mxu0 %v3420
    %3562 = vmatpush2.bf16.msra.mxu0 %v3419
    %3563 = vmatprep.mubr.bf16.mxu0 %v3144
    %3564 = vmatmul.mubr.bf16.gmra.mxu0 %v3143
    %v3565 = vpop.f32.mrf.mxu0
    %v3566 = vadd.f32 0.0, %v3565
    %v3567 = vpop.f32.mrf.mxu0
    %v3568 = vadd.f32 0.0, %v3567
    %v3569 = vpop.f32.mrf.mxu0
    %v3570 = vadd.f32 0.0, %v3569
    %v3571 = vpop.f32.mrf.mxu0
    %v3572 = vadd.f32 0.0, %v3571
    %3573 = vdwg.mxu0
    %3574 = vmatprep.subr.bf16.mxu0 %v3450
    %3575 = vmatpush1.bf16.msra.mxu0 %v3449
    %3576 = vmatprep.subr.bf16.mxu0 %v3448
    %3577 = vmatpush1.bf16.msra.mxu0 %v3447
    %3578 = vmatprep.subr.bf16.mxu0 %v3446
    %3579 = vmatpush1.bf16.msra.mxu0 %v3445
    %3580 = vmatprep.subr.bf16.mxu0 %v3444
    %3581 = vmatpush1.bf16.msra.mxu0 %v3443
    %3582 = vmatprep.subr.bf16.mxu0 %v3442
    %3583 = vmatpush1.bf16.msra.mxu0 %v3441
    %3584 = vmatprep.subr.bf16.mxu0 %v3440
    %3585 = vmatpush1.bf16.msra.mxu0 %v3439
    %3586 = vmatprep.subr.bf16.mxu0 %v3438
    %3587 = vmatpush1.bf16.msra.mxu0 %v3437
    %3588 = vmatprep.subr.bf16.mxu0 %v3436
    %3589 = vmatpush1.bf16.msra.mxu0 %v3435
    %3590 = vmatprep.subr.bf16.mxu0 %v3466
    %3591 = vmatpush2.bf16.msra.mxu0 %v3465
    %3592 = vmatprep.subr.bf16.mxu0 %v3464
    %3593 = vmatpush2.bf16.msra.mxu0 %v3463
    %3594 = vmatprep.subr.bf16.mxu0 %v3462
    %3595 = vmatpush2.bf16.msra.mxu0 %v3461
    %3596 = vmatprep.subr.bf16.mxu0 %v3460
    %3597 = vmatpush2.bf16.msra.mxu0 %v3459
    %3598 = vmatprep.subr.bf16.mxu0 %v3458
    %3599 = vmatpush2.bf16.msra.mxu0 %v3457
    %3600 = vmatprep.subr.bf16.mxu0 %v3456
    %3601 = vmatpush2.bf16.msra.mxu0 %v3455
    %3602 = vmatprep.subr.bf16.mxu0 %v3454
    %3603 = vmatpush2.bf16.msra.mxu0 %v3453
    %3604 = vmatprep.subr.bf16.mxu0 %v3452
    %3605 = vmatpush2.bf16.msra.mxu0 %v3451
    %3606 = vmatprep.mubr.bf16.mxu0 %v3146
    %3607 = vmatmul.mubr.bf16.gmra.mxu0 %v3145
    %v3608 = vpop.f32.mrf.mxu0
    %v3609 = vadd.f32 %v3566, %v3608
    %v3610 = vpop.f32.mrf.mxu0
    %v3611 = vadd.f32 %v3568, %v3610
    %v3612 = vpop.f32.mrf.mxu0
    %v3613 = vadd.f32 %v3570, %v3612
    %v3614 = vpop.f32.mrf.mxu0
    %v3615 = vadd.f32 %v3572, %v3614
    %3616 = vdwg.mxu0
    %v3617 = vld [vmem:[%s8] sm:$0x3]
    %v3619 = vlaneseq
    %v3620 = vshrl.u32 %v3619, 7
    %v3621 = vsub.s32 0, %v3620
    %v3622 = vrot.slane %v3617, %v3621
    %v3623 = vlaneseq
    %v3624 = vshrl.u32 %v3623, 7
    %v3625 = vsub.s32 1, %v3624
    %v3626 = vrot.slane %v3617, %v3625
    %v3629 = vmul.f32 %v3609, %v3622
    %v3630 = vmul.f32 %v3611, %v3626
    %v3631 = vmul.f32 %v3613, %v3622
    %v3632 = vmul.f32 %v3615, %v3626
    %v3633 = vld [vmem:[%s9] sm:$0x3]
    %v3635 = vlaneseq
    %v3636 = vshrl.u32 %v3635, 7
    %v3637 = vsub.s32 0, %v3636
    %v3638 = vrot.slane %v3633, %v3637
    %v3639 = vlaneseq
    %v3640 = vshrl.u32 %v3639, 7
    %v3641 = vsub.s32 1, %v3640
    %v3642 = vrot.slane %v3633, %v3641
    %v3645 = vadd.f32 %v3629, %v3638
    %v3646 = vadd.f32 %v3630, %v3642
    %v3647 = vadd.f32 %v3631, %v3638
    %v3648 = vadd.f32 %v3632, %v3642
    %v3649 = vmax.f32 %v3645, 0.0
    %v3650 = vmax.f32 %v3646, 0.0
    %v3651 = vmax.f32 %v3647, 0.0
    %v3652 = vmax.f32 %v3648, 0.0
    %v3653 = vpack.c.bf16 %v3651, %v3649
    %v3654 = vpack.c.bf16 %v3652, %v3650
    %v3655 = vld [vmem:[#allocation7] sm:$0xf]
    %v3656 = vld [vmem:[#allocation7 + $0x4] sm:$0xf]
    %v3657 = vld [vmem:[#allocation7 + $0x8] sm:$0xf]
    %v3658 = vld [vmem:[#allocation7 + $0xc] sm:$0xf]
    %v3659 = vld [vmem:[#allocation7 + $0x10] sm:$0xf]
    %v3660 = vld [vmem:[#allocation7 + $0x14] sm:$0xf]
    %v3661 = vld [vmem:[#allocation7 + $0x18] sm:$0xf]
    %v3662 = vld [vmem:[#allocation7 + $0x1c] sm:$0xf]
    %v3663 = vld [vmem:[#allocation7 + $0x20] sm:$0xf]
    %v3664 = vld [vmem:[#allocation7 + $0x24] sm:$0xf]
    %v3665 = vld [vmem:[#allocation7 + $0x28] sm:$0xf]
    %v3666 = vld [vmem:[#allocation7 + $0x2c] sm:$0xf]
    %v3667 = vld [vmem:[#allocation7 + $0x30] sm:$0xf]
    %v3668 = vld [vmem:[#allocation7 + $0x34] sm:$0xf]
    %v3669 = vld [vmem:[#allocation7 + $0x38] sm:$0xf]
    %v3670 = vld [vmem:[#allocation7 + $0x3c] sm:$0xf]
    %v3671 = vld [vmem:[#allocation7 + $0x40] sm:$0xf]
    %v3672 = vld [vmem:[#allocation7 + $0x44] sm:$0xf]
    %v3673 = vld [vmem:[#allocation7 + $0x48] sm:$0xf]
    %v3674 = vld [vmem:[#allocation7 + $0x4c] sm:$0xf]
    %v3675 = vld [vmem:[#allocation7 + $0x50] sm:$0xf]
    %v3676 = vld [vmem:[#allocation7 + $0x54] sm:$0xf]
    %v3677 = vld [vmem:[#allocation7 + $0x58] sm:$0xf]
    %v3678 = vld [vmem:[#allocation7 + $0x5c] sm:$0xf]
    %v3679 = vld [vmem:[#allocation7 + $0x60] sm:$0xf]
    %v3680 = vld [vmem:[#allocation7 + $0x64] sm:$0xf]
    %v3681 = vld [vmem:[#allocation7 + $0x68] sm:$0xf]
    %v3682 = vld [vmem:[#allocation7 + $0x6c] sm:$0xf]
    %v3683 = vld [vmem:[#allocation7 + $0x70] sm:$0xf]
    %v3684 = vld [vmem:[#allocation7 + $0x74] sm:$0xf]
    %v3685 = vld [vmem:[#allocation7 + $0x78] sm:$0xf]
    %v3686 = vld [vmem:[#allocation7 + $0x7c] sm:$0xf]
    %v3687 = vld [vmem:[%s11] sm:$0x1]
    %v3689 = vlaneseq
    %v3690 = vshrl.u32 %v3689, 7
    %v3691 = vsub.s32 0, %v3690
    %v3692 = vrot.slane %v3687, %v3691
    %v3726 = vunpack.c.l.b16 %v3655
    %v3727 = vunpack.c.l.b16 %v3656
    %v3728 = vunpack.c.l.b16 %v3657
    %v3729 = vunpack.c.l.b16 %v3658
    %v3730 = vunpack.c.l.b16 %v3659
    %v3731 = vunpack.c.l.b16 %v3660
    %v3732 = vunpack.c.l.b16 %v3661
    %v3733 = vunpack.c.l.b16 %v3662
    %v3734 = vunpack.c.l.b16 %v3663
    %v3735 = vunpack.c.l.b16 %v3664
    %v3736 = vunpack.c.l.b16 %v3665
    %v3737 = vunpack.c.l.b16 %v3666
    %v3738 = vunpack.c.l.b16 %v3667
    %v3739 = vunpack.c.l.b16 %v3668
    %v3740 = vunpack.c.l.b16 %v3669
    %v3741 = vunpack.c.l.b16 %v3670
    %v3742 = vunpack.c.l.b16 %v3671
    %v3743 = vunpack.c.l.b16 %v3672
    %v3744 = vunpack.c.l.b16 %v3673
    %v3745 = vunpack.c.l.b16 %v3674
    %v3746 = vunpack.c.l.b16 %v3675
    %v3747 = vunpack.c.l.b16 %v3676
    %v3748 = vunpack.c.l.b16 %v3677
    %v3749 = vunpack.c.l.b16 %v3678
    %v3750 = vunpack.c.l.b16 %v3679
    %v3751 = vunpack.c.l.b16 %v3680
    %v3752 = vunpack.c.l.b16 %v3681
    %v3753 = vunpack.c.l.b16 %v3682
    %v3754 = vunpack.c.l.b16 %v3683
    %v3755 = vunpack.c.l.b16 %v3684
    %v3756 = vunpack.c.l.b16 %v3685
    %v3757 = vunpack.c.l.b16 %v3686
    %v3758 = vpack.c.b16 %v3727, %v3726
    %v3759 = vpack.c.b16 %v3729, %v3728
    %v3760 = vpack.c.b16 %v3731, %v3730
    %v3761 = vpack.c.b16 %v3733, %v3732
    %v3762 = vpack.c.b16 %v3735, %v3734
    %v3763 = vpack.c.b16 %v3737, %v3736
    %v3764 = vpack.c.b16 %v3739, %v3738
    %v3765 = vpack.c.b16 %v3741, %v3740
    %v3766 = vpack.c.b16 %v3743, %v3742
    %v3767 = vpack.c.b16 %v3745, %v3744
    %v3768 = vpack.c.b16 %v3747, %v3746
    %v3769 = vpack.c.b16 %v3749, %v3748
    %v3770 = vpack.c.b16 %v3751, %v3750
    %v3771 = vpack.c.b16 %v3753, %v3752
    %v3772 = vpack.c.b16 %v3755, %v3754
    %v3773 = vpack.c.b16 %v3757, %v3756
    %3790 = vmatprep.subr.bf16.mxu0 0
    %3791 = vmatpush1.bf16.msra.mxu0 %v3765
    %3792 = vmatprep.subr.bf16.mxu0 0
    %3793 = vmatpush1.bf16.msra.mxu0 %v3764
    %3794 = vmatprep.subr.bf16.mxu0 0
    %3795 = vmatpush1.bf16.msra.mxu0 %v3763
    %3796 = vmatprep.subr.bf16.mxu0 0
    %3797 = vmatpush1.bf16.msra.mxu0 %v3762
    %3798 = vmatprep.subr.bf16.mxu0 0
    %3799 = vmatpush1.bf16.msra.mxu0 %v3761
    %3800 = vmatprep.subr.bf16.mxu0 0
    %3801 = vmatpush1.bf16.msra.mxu0 %v3760
    %3802 = vmatprep.subr.bf16.mxu0 0
    %3803 = vmatpush1.bf16.msra.mxu0 %v3759
    %3804 = vmatprep.subr.bf16.mxu0 0
    %3805 = vmatpush1.bf16.msra.mxu0 %v3758
    %3806 = vmatprep.subr.bf16.mxu0 0
    %3807 = vmatpush2.bf16.msra.mxu0 %v3773
    %3808 = vmatprep.subr.bf16.mxu0 0
    %3809 = vmatpush2.bf16.msra.mxu0 %v3772
    %3810 = vmatprep.subr.bf16.mxu0 0
    %3811 = vmatpush2.bf16.msra.mxu0 %v3771
    %3812 = vmatprep.subr.bf16.mxu0 0
    %3813 = vmatpush2.bf16.msra.mxu0 %v3770
    %3814 = vmatprep.subr.bf16.mxu0 0
    %3815 = vmatpush2.bf16.msra.mxu0 %v3769
    %3816 = vmatprep.subr.bf16.mxu0 0
    %3817 = vmatpush2.bf16.msra.mxu0 %v3768
    %3818 = vmatprep.subr.bf16.mxu0 0
    %3819 = vmatpush2.bf16.msra.mxu0 %v3767
    %3820 = vmatprep.subr.bf16.mxu0 0
    %3821 = vmatpush2.bf16.msra.mxu0 %v3766
    %3822 = vmatprep.mubr.bf16.mxu0 %v3654
    %3823 = vmatmul.mubr.bf16.gmra.mxu0 %v3653
    %v3824 = vpop.f32.mrf.mxu0
    %v3825 = vadd.f32 %v3692, %v3824
    %v3826 = vpop.f32.mrf.mxu0
    %v3827 = vpop.f32.mrf.mxu0
    %v3828 = vadd.f32 %v3692, %v3827
    %v3829 = vpop.f32.mrf.mxu0
    %3830 = vdwg.mxu0
    %v3831 = vmax.f32 %v3825, 0.0
    %v3832 = vmax.f32 %v3828, 0.0
    %v3833 = vpack.c.bf16 %v3832, %v3831
    %v3834 = vld [vmem:[%s12] sm:$0xf]
    %v3835 = vld [vmem:[%s12 + $0x4] sm:$0xf]
    %v3836 = vld [vmem:[%s12 + $0x8] sm:$0xf]
    %v3837 = vld [vmem:[%s12 + $0xc] sm:$0xf]
    %v3838 = vld [vmem:[%s12 + $0x10] sm:$0xf]
    %v3839 = vld [vmem:[%s12 + $0x14] sm:$0xf]
    %v3840 = vld [vmem:[%s12 + $0x18] sm:$0xf]
    %v3841 = vld [vmem:[%s12 + $0x1c] sm:$0xf]
    %v3842 = vld [vmem:[%s12 + $0x20] sm:$0xf]
    %v3843 = vld [vmem:[%s12 + $0x24] sm:$0xf]
    %v3844 = vld [vmem:[%s12 + $0x28] sm:$0xf]
    %v3845 = vld [vmem:[%s12 + $0x2c] sm:$0xf]
    %v3846 = vld [vmem:[%s12 + $0x30] sm:$0xf]
    %v3847 = vld [vmem:[%s12 + $0x34] sm:$0xf]
    %v3848 = vld [vmem:[%s12 + $0x38] sm:$0xf]
    %v3849 = vld [vmem:[%s12 + $0x3c] sm:$0xf]
    %v3850 = vld [vmem:[%s13] sm:$0x1]
    %v3852 = vlaneseq
    %v3853 = vshrl.u32 %v3852, 7
    %v3854 = vsub.s32 0, %v3853
    %v3855 = vrot.slane %v3850, %v3854
    %v3873 = vunpack.c.l.b16 %v3834
    %v3874 = vunpack.c.l.b16 %v3835
    %v3875 = vunpack.c.l.b16 %v3836
    %v3876 = vunpack.c.l.b16 %v3837
    %v3877 = vunpack.c.l.b16 %v3838
    %v3878 = vunpack.c.l.b16 %v3839
    %v3879 = vunpack.c.l.b16 %v3840
    %v3880 = vunpack.c.l.b16 %v3841
    %v3881 = vunpack.c.l.b16 %v3842
    %v3882 = vunpack.c.l.b16 %v3843
    %v3883 = vunpack.c.l.b16 %v3844
    %v3884 = vunpack.c.l.b16 %v3845
    %v3885 = vunpack.c.l.b16 %v3846
    %v3886 = vunpack.c.l.b16 %v3847
    %v3887 = vunpack.c.l.b16 %v3848
    %v3888 = vunpack.c.l.b16 %v3849
    %v3889 = vpack.c.b16 %v3874, %v3873
    %v3890 = vpack.c.b16 %v3876, %v3875
    %v3891 = vpack.c.b16 %v3878, %v3877
    %v3892 = vpack.c.b16 %v3880, %v3879
    %v3893 = vpack.c.b16 %v3882, %v3881
    %v3894 = vpack.c.b16 %v3884, %v3883
    %v3895 = vpack.c.b16 %v3886, %v3885
    %v3896 = vpack.c.b16 %v3888, %v3887
    %3905 = vmatprep.subr.bf16.mxu0 0
    %3906 = vmatpush1.bf16.msra.mxu0 %v3896
    %3907 = vmatprep.subr.bf16.mxu0 0
    %3908 = vmatpush1.bf16.msra.mxu0 %v3895
    %3909 = vmatprep.subr.bf16.mxu0 0
    %3910 = vmatpush1.bf16.msra.mxu0 %v3894
    %3911 = vmatprep.subr.bf16.mxu0 0
    %3912 = vmatpush1.bf16.msra.mxu0 %v3893
    %3913 = vmatprep.subr.bf16.mxu0 0
    %3914 = vmatpush1.bf16.msra.mxu0 %v3892
    %3915 = vmatprep.subr.bf16.mxu0 0
    %3916 = vmatpush1.bf16.msra.mxu0 %v3891
    %3917 = vmatprep.subr.bf16.mxu0 0
    %3918 = vmatpush1.bf16.msra.mxu0 %v3890
    %3919 = vmatprep.subr.bf16.mxu0 0
    %3920 = vmatpush1.bf16.msra.mxu0 %v3889
    %3921 = vmatprep.subr.bf16.mxu0 0
    %3922 = vmatpush2.bf16.msra.mxu0 0
    %3923 = vmatprep.subr.bf16.mxu0 0
    %3924 = vmatpush2.bf16.msra.mxu0 0
    %3925 = vmatprep.subr.bf16.mxu0 0
    %3926 = vmatpush2.bf16.msra.mxu0 0
    %3927 = vmatprep.subr.bf16.mxu0 0
    %3928 = vmatpush2.bf16.msra.mxu0 0
    %3929 = vmatprep.subr.bf16.mxu0 0
    %3930 = vmatpush2.bf16.msra.mxu0 0
    %3931 = vmatprep.subr.bf16.mxu0 0
    %3932 = vmatpush2.bf16.msra.mxu0 0
    %3933 = vmatprep.subr.bf16.mxu0 0
    %3934 = vmatpush2.bf16.msra.mxu0 0
    %3935 = vmatprep.subr.bf16.mxu0 0
    %3936 = vmatpush2.bf16.msra.mxu0 0
    %3937 = vmatprep.mubr.bf16.mxu0 0
    %3938 = vmatmul.mubr.bf16.gmra.mxu0 %v3833
    %v3939 = vpop.f32.mrf.mxu0
    %v3940 = vadd.f32 %v3855, %v3939
    %v3941 = vpop.f32.mrf.mxu0
    %v3942 = vpop.f32.mrf.mxu0
    %v3943 = vadd.f32 %v3855, %v3942
    %v3944 = vpop.f32.mrf.mxu0
    %3945 = vdwg.mxu0
    %v3946 = vmax.f32 %v3940, 0.0
    %v3947 = vmax.f32 %v3943, 0.0
    %3948 = vst [vmem:[%s14] sm:$0xff] %v3946
    %3949 = vst [vmem:[%s14 + $0x8] sm:$0xff] %v3947
    // Predicated region
    $region74: #{forward.1} parent=1 // pred_check
      _
    $region75: #{forward.1} parent=1 // pred_check_branch
      %3951 = sbr.rel (0) target = $region77
    $region76: #{forward.1} parent=1 // pred_region
      _
    $region77: #{forward.1} parent=1 // pred_fallthru
      _
    // Predicated region
    $region78: #{forward.1} parent=1 // pred_check
      _
    $region79: #{forward.1} parent=1 // pred_check_branch
      %3953 = sbr.rel (0) target = $region81
    $region80: #{forward.1} parent=1 // pred_region
      _
    $region81: #{forward.1} parent=1 // pred_fallthru
      _
    %3954 = vsyncpa [#allocation3], 1
    %3955 = vsyncpa [#allocation5], 1
    %3956 = vsyncpa [#allocation8], 1

</llo_original>
